<compile_context>
chip_gen: v5e
topology: v5e:2x2
jax: 0.10.0
libtpu: 0.0.40
codegen_flags: <defaults>
</compile_context>

<pallas_src>
import jax
import jax.numpy as jnp
from jax.experimental import pallas as pl
from jax.experimental.pallas import tpu as pltpu

# ---------------- small synthetic Whisper-like config ----------------
MEL = 8          # num_mel_bins
SEQ = 16         # input mel frames
D = 32           # d_model (embed_dim)
H = 4            # attention heads
HD = D // H      # head_dim
FFN = 64         # encoder ffn dim
ENC_LAYERS = 2   # encoder layers
DEC_LAYERS = 2   # decoder layers (cross-attn KV cache entries)
T = SEQ // 2     # max_source_positions after conv2 (stride 2)
EPS = 1e-5       # nn.LayerNorm default eps


# ---------------- pure-jnp helpers (used both in-kernel and in the reference) ----------------
def _gelu(x):
    # exact (erf-based) GELU, matching torch.nn.functional.gelu default
    return 0.5 * x * (1.0 + jax.lax.erf(x / jnp.sqrt(2.0).astype(x.dtype)))


def _layernorm(x, g, b):
    mu = jnp.mean(x, axis=-1, keepdims=True)
    var = jnp.mean(jnp.square(x - mu), axis=-1, keepdims=True)
    return (x - mu) * jax.lax.rsqrt(var + EPS) * g + b


def _mm(a, b):
    return jnp.dot(a, b, preferred_element_type=jnp.float32)


# ---------------- the single fused encoder kernel ----------------
def encoder_kernel(
    ae_ref, ao_ref,
    c1w_ref, c1b_ref, c2w_ref, c2b_ref, pos_ref,
    ln1g_ref, ln1b_ref, wqkv_ref, bqkv_ref, wo_ref, bo_ref,
    ln2g_ref, ln2b_ref, w1_ref, b1_ref, w2_ref, b2_ref,
    lnfg_ref, lnfb_ref, dwkv_ref, dbkv_ref,
    kv_ref,
):
    # ---- conv stem: conv1(1x3, pad 1) -> gelu -> conv2(1x3, stride 2, pad 1) -> gelu ----
    # conv1 operands arrive pre-packed lane-dense from the wrapper (pure layout):
    #   ae[t] = [x[2t-1], x[2t],   x[2t+1]]  -> g1[2t]   (even output phase)
    #   ao[t] = [x[2t],   x[2t+1], x[2t+2]]  -> g1[2t+1] (odd output phase)
    c1w = c1w_ref[...]                                 # (3*MEL, D), taps-major
    c1b = c1b_ref[...]                                 # (1, D)
    ge = _gelu(_mm(ae_ref[...], c1w) + c1b)            # g1[2t],   (T, D)
    go = _gelu(_mm(ao_ref[...], c1w) + c1b)            # g1[2t+1], (T, D)

    # conv2 (stride 2): y2[t] = g1[2t-1]@W0 + g1[2t]@W1 + g1[2t+1]@W2
    # g1[2t-1] = go[t-1]: single sublane roll (XLU) + one hoisted boundary mask; no lane concat.
    row0 = jax.lax.broadcasted_iota(jnp.int32, (T, D), 0) == 0
    go_prev = jnp.where(row0, 0.0, pltpu.roll(go, shift=1, axis=0))
    y2 = (_mm(go_prev, c2w_ref[0]) + _mm(ge, c2w_ref[1]) + _mm(go, c2w_ref[2])
          + c2b_ref[...])
    h = _gelu(y2) + pos_ref[...]                       # (T, D), + embed_positions

    # ---- encoder layers (unrolled; all weights stacked on a leading layer axis) ----
    for l in range(ENC_LAYERS):
        # self-attention (SHAAttention): q weight/bias already carry head_dim**-0.5 scaling.
        # One fused QKV matmul (lane-dense 3D-wide result), heads viewed via lane slices.
        xn = _layernorm(h, ln1g_ref[l], ln1b_ref[l])                  # (T, D)
        qkv = _mm(xn, wqkv_ref[l]) + bqkv_ref[l]                      # (T, 3D)
        q3 = jnp.transpose(qkv[:, 0 * D:1 * D].reshape(T, H, HD), (1, 0, 2))   # (H, T, HD)
        k3 = jnp.transpose(qkv[:, 1 * D:2 * D].reshape(T, H, HD), (1, 0, 2))
        v3 = jnp.transpose(qkv[:, 2 * D:3 * D].reshape(T, H, HD), (1, 0, 2))

        s = jnp.einsum("hqe,hke->hqk", q3, k3,
                       preferred_element_type=jnp.float32)            # (H, T, T)
        s = s - jnp.max(s, axis=-1, keepdims=True)
        p = jnp.exp(s)
        # approx reciprocal (EUP slot); ~1e-3 rel. error vs exact softmax — fine for inference.
        p = p * pl.reciprocal(jnp.sum(p, axis=-1, keepdims=True), approx=True)
        ctx = jnp.einsum("hqk,hke->hqe", p, v3,
                         preferred_element_type=jnp.float32)          # (H, T, HD)
        ctx2 = jnp.transpose(ctx, (1, 0, 2)).reshape(T, D)            # (T, D) = concat heads

        h = h + _mm(ctx2, wo_ref[l]) + bo_ref[l]                      # single (T,D)@(D,D) out proj

        # MLP (fc1 -> gelu -> fc2) + residual
        xn2 = _layernorm(h, ln2g_ref[l], ln2b_ref[l])
        f = _gelu(_mm(xn2, w1_ref[l]) + b1_ref[l])
        h = h + _mm(f, w2_ref[l]) + b2_ref[l]

    # ---- final LayerNorm + cross-attention KV projections for every decoder layer ----
    # All DEC_LAYERS K and V projections packed into ONE lane-dense (D, 2*DEC_LAYERS*D) matmul;
    # the single (T, 128) store is a full unmasked vreg writeback.
    h_ln = _layernorm(h, lnfg_ref[...], lnfb_ref[...])
    kv_ref[...] = _mm(h_ln, dwkv_ref[...]) + dbkv_ref[...]


# ---------------- full QcWhisperEncoder.forward (B == 1) ----------------
def qc_whisper_encoder(input_features, packed):
    # input_features: (B=1, MEL, SEQ), same axis convention as the torch module input.
    x = jnp.transpose(input_features[0], (1, 0))       # (SEQ, MEL) channels-last
    xe = x[0::2]                                       # even frames  (T, MEL): x[2t]
    xo = x[1::2]                                       # odd frames   (T, MEL): x[2t+1]
    zero = jnp.zeros((1, MEL), x.dtype)
    xo_prev = jnp.concatenate([zero, xo[:-1]], axis=0)     # x[2t-1] (zero-pad at t=0)
    xe_next = jnp.concatenate([xe[1:], zero], axis=0)      # x[2t+2] (zero-pad at t=T-1)
    ae = jnp.concatenate([xo_prev, xe, xo], axis=-1)       # (T, 3*MEL), conv1 even-phase taps
    ao = jnp.concatenate([xe, xo, xe_next], axis=-1)       # (T, 3*MEL), conv1 odd-phase taps

    kv = pl.pallas_call(
        encoder_kernel,
        out_shape=jax.ShapeDtypeStruct((T, 2 * DEC_LAYERS * D), jnp.float32),  # lane-dense slab
    )(
        ae, ao,
        packed["c1w"], packed["c1b"], packed["c2w"], packed["c2b"], packed["pos"],
        packed["ln1_g"], packed["ln1_b"], packed["wqkv"], packed["bqkv"],
        packed["wo"], packed["bo"],
        packed["ln2_g"], packed["ln2_b"],
        packed["w1"], packed["b1"], packed["w2"], packed["b2"],
        packed["lnf_g"], packed["lnf_b"], packed["dwkv"], packed["dbkv"],
    )

    # torch contract: per decoder layer, K cache (H*B, 1, HD, T), V cache (H*B, 1, T, HD).
    # Split + transpose are pure layout and done here in the wrapper.
    kc = kv[:, :DEC_LAYERS * D].reshape(T, DEC_LAYERS, H, HD)
    vc = kv[:, DEC_LAYERS * D:].reshape(T, DEC_LAYERS, H, HD)
    next_cache = tuple(
        (jnp.transpose(kc[:, l], (1, 2, 0))[:, None, :, :],   # (H, 1, HD, T)
         jnp.transpose(vc[:, l], (1, 0, 2))[:, None, :, :])   # (H, 1, T, HD)
        for l in range(DEC_LAYERS)
    )
    return (next_cache,)


# ---------------- deterministic synthetic parameters ----------------
def init_params(key):
    def nrm(k, shape, scale=0.05):
        return scale * jax.random.normal(k, shape, dtype=jnp.float32)

    keys = jax.random.split(key, 64)
    ki = iter(keys)
    scaling = HD ** (-0.5)

    params = {
        "conv1_w": nrm(next(ki), (3, MEL, D)),   # conv1.weight (D, MEL, 1, 3) -> taps-major (3, MEL, D)
        "conv1_b": nrm(next(ki), (1, D)),
        "conv2_w": nrm(next(ki), (3, D, D)),
        "conv2_b": nrm(next(ki), (1, D)),
        "pos": nrm(next(ki), (T, D)),            # embed_positions[:max_source_positions]
    }
    layers = []
    for _ in range(ENC_LAYERS):
        layers.append(dict(
            ln1_g=jnp.ones((1, D), jnp.float32), ln1_b=jnp.zeros((1, D), jnp.float32),
            # q projection carries the scaling, exactly like SHAAttention.__init__
            wq=nrm(next(ki), (D, D)) * scaling, bq=nrm(next(ki), (1, D)) * scaling,
            wk=nrm(next(ki), (D, D)),
            wv=nrm(next(ki), (D, D)), bv=nrm(next(ki), (1, D)),
            wo=nrm(next(ki), (D, D)), bo=nrm(next(ki), (1, D)),
            ln2_g=jnp.ones((1, D), jnp.float32), ln2_b=jnp.zeros((1, D), jnp.float32),
            w1=nrm(next(ki), (D, FFN)), b1=nrm(next(ki), (1, FFN)),
            w2=nrm(next(ki), (FFN, D)), b2=nrm(next(ki), (1, D)),
        ))
    params["layers"] = layers
    params["ln_f_g"] = jnp.ones((1, D), jnp.float32)
    params["ln_f_b"] = jnp.zeros((1, D), jnp.float32)
    # decoder cross-attention k/v projections copied into the encoder (encoder_k/v_proj_sha)
    params["dec_wk"] = nrm(next(ki), (DEC_LAYERS, D, D))
    params["dec_wv"] = nrm(next(ki), (DEC_LAYERS, D, D))
    params["dec_bv"] = nrm(next(ki), (DEC_LAYERS, 1, D))
    return params


def pack_params(p):
    """Repack logical params into the kernel layouts (stacked layers, fused QKV, packed taps/KV)."""
    # TODO(synk): for v6e/v7x production runs cast these packed weights (and the matmul
    # activations in-kernel) to bfloat16 with f32 accumulation; tolerances must be revalidated.
    stack = lambda name: jnp.stack([lp[name] for lp in p["layers"]])

    wq, wk, wv = stack("wq"), stack("wk"), stack("wv")                # (L, D, D) each (q pre-scaled)
    bq, bv = stack("bq"), stack("bv")                                 # (L, 1, D)
    wqkv = jnp.concatenate([wq, wk, wv], axis=-1)                     # (L, D, 3D) fused QKV
    bqkv = jnp.concatenate([bq, jnp.zeros_like(bq), bv], axis=-1)     # (L, 1, 3D), k has no bias

    dwk = p["dec_wk"].transpose(1, 0, 2).reshape(D, DEC_LAYERS * D)
    dwv = p["dec_wv"].transpose(1, 0, 2).reshape(D, DEC_LAYERS * D)
    dbv = p["dec_bv"].transpose(1, 0, 2).reshape(1, DEC_LAYERS * D)
    dwkv = jnp.concatenate([dwk, dwv], axis=-1)                       # (D, 2*DEC_LAYERS*D) = (D, 128)
    dbkv = jnp.concatenate([jnp.zeros_like(dbv), dbv], axis=-1)       # (1, 128), k has no bias

    return dict(
        c1w=p["conv1_w"].reshape(3 * MEL, D), c1b=p["conv1_b"],
        c2w=p["conv2_w"], c2b=p["conv2_b"],                           # conv2 kept per-tap (3, D, D)
        pos=p["pos"],
        ln1_g=stack("ln1_g"), ln1_b=stack("ln1_b"),
        wqkv=wqkv, bqkv=bqkv,
        wo=stack("wo"), bo=stack("bo"),
        ln2_g=stack("ln2_g"), ln2_b=stack("ln2_b"),
        w1=stack("w1"), b1=stack("b1"), w2=stack("w2"), b2=stack("b2"),
        lnf_g=p["ln_f_g"], lnf_b=p["ln_f_b"],
        dwkv=dwkv, dbkv=dbkv,
    )


# ---------------- pure-JAX reference of the torch module (for numerical verification) ----------------
def encoder_ref(input_features, params):
    x = jnp.transpose(input_features[0], (1, 0))                       # (SEQ, MEL)
    xp = jnp.pad(x, ((1, 1), (0, 0)))
    y1 = sum(xp[j:j + SEQ] @ params["conv1_w"][j] for j in range(3)) + params["conv1_b"]
    g1 = _gelu(y1)
    g1p = jnp.pad(g1, ((1, 1), (0, 0)))
    y2 = sum(g1p[j:j + 2 * T:2] @ params["conv2_w"][j] for j in range(3)) + params["conv2_b"]
    h = _gelu(y2) + params["pos"]
    for lp in params["layers"]:
        xn = _layernorm(h, lp["ln1_g"], lp["ln1_b"])
        q = xn @ lp["wq"] + lp["bq"]
        k = xn @ lp["wk"]
        v = xn @ lp["wv"] + lp["bv"]
        heads = []
        for i in range(H):
            sl = slice(i * HD, (i + 1) * HD)
            p = jax.nn.softmax(q[:, sl] @ k[:, sl].T, axis=-1)
            heads.append(p @ v[:, sl])
        h = h + jnp.concatenate(heads, axis=-1) @ lp["wo"] + lp["bo"]
        xn2 = _layernorm(h, lp["ln2_g"], lp["ln2_b"])
        f = _gelu(xn2 @ lp["w1"] + lp["b1"])
        h = h + f @ lp["w2"] + lp["b2"]
    h = _layernorm(h, params["ln_f_g"], params["ln_f_b"])
    caches = []
    for l in range(DEC_LAYERS):
        kk = h @ params["dec_wk"][l]
        vv = h @ params["dec_wv"][l] + params["dec_bv"][l]
        caches.append((kk.reshape(T, H, HD).transpose(1, 2, 0)[:, None],
                       vv.reshape(T, H, HD).transpose(1, 0, 2)[:, None]))
    return (tuple(caches),)


if __name__ == "__main__":
    key = jax.random.PRNGKey(0)
    pkey, xkey = jax.random.split(key)
    params = init_params(pkey)
    packed = pack_params(params)
    input_features = jax.random.normal(xkey, (1, MEL, SEQ), dtype=jnp.float32)

    run = jax.jit(qc_whisper_encoder)
    out = jax.block_until_ready(run(input_features, packed))
    (cache,) = out

    (ref_cache,) = encoder_ref(input_features, params)

    assert len(cache) == DEC_LAYERS
    for (k_l, v_l), (kr, vr) in zip(cache, ref_cache):
        assert k_l.shape == (H, 1, HD, T), k_l.shape
        assert v_l.shape == (H, 1, T, HD), v_l.shape
        assert bool(jnp.allclose(k_l, kr, rtol=5e-2, atol=5e-3)), float(jnp.max(jnp.abs(k_l - kr)))
        assert bool(jnp.allclose(v_l, vr, rtol=5e-2, atol=5e-3)), float(jnp.max(jnp.abs(v_l - vr)))
    print("KERNEL_OK")
</pallas_src>

<mosaic_0001>
module attributes {stable_mosaic.version = 11 : i64} {
  func.func @encoder_kernel(%arg0: memref<8x24xf32, #tpu.memory_space<vmem>>, %arg1: memref<8x24xf32, #tpu.memory_space<vmem>>, %arg2: memref<24x32xf32, #tpu.memory_space<vmem>>, %arg3: memref<1x32xf32, #tpu.memory_space<vmem>>, %arg4: memref<3x32x32xf32, #tpu.memory_space<vmem>>, %arg5: memref<1x32xf32, #tpu.memory_space<vmem>>, %arg6: memref<8x32xf32, #tpu.memory_space<vmem>>, %arg7: memref<2x1x32xf32, #tpu.memory_space<vmem>>, %arg8: memref<2x1x32xf32, #tpu.memory_space<vmem>>, %arg9: memref<2x32x96xf32, #tpu.memory_space<vmem>>, %arg10: memref<2x1x96xf32, #tpu.memory_space<vmem>>, %arg11: memref<2x32x32xf32, #tpu.memory_space<vmem>>, %arg12: memref<2x1x32xf32, #tpu.memory_space<vmem>>, %arg13: memref<2x1x32xf32, #tpu.memory_space<vmem>>, %arg14: memref<2x1x32xf32, #tpu.memory_space<vmem>>, %arg15: memref<2x32x64xf32, #tpu.memory_space<vmem>>, %arg16: memref<2x1x64xf32, #tpu.memory_space<vmem>>, %arg17: memref<2x64x32xf32, #tpu.memory_space<vmem>>, %arg18: memref<2x1x32xf32, #tpu.memory_space<vmem>>, %arg19: memref<1x32xf32, #tpu.memory_space<vmem>>, %arg20: memref<1x32xf32, #tpu.memory_space<vmem>>, %arg21: memref<32x128xf32, #tpu.memory_space<vmem>>, %arg22: memref<1x128xf32, #tpu.memory_space<vmem>>, %arg23: memref<8x128xf32, #tpu.memory_space<vmem>>) attributes {dimension_semantics = [], scalar_prefetch = 0 : i64, scratch_operands = 0 : i64, tpu.core_type = #tpu.core_type<tc>} {
    %c0 = arith.constant 0 : index
    %c0_0 = arith.constant 0 : index
    %0 = vector.load %arg2[%c0, %c0_0] : memref<24x32xf32, #tpu.memory_space<vmem>>, vector<24x32xf32>
    %c0_1 = arith.constant 0 : index
    %c0_2 = arith.constant 0 : index
    %1 = vector.load %arg3[%c0_1, %c0_2] : memref<1x32xf32, #tpu.memory_space<vmem>>, vector<1x32xf32>
    %c0_3 = arith.constant 0 : index
    %c0_4 = arith.constant 0 : index
    %2 = vector.load %arg0[%c0_3, %c0_4] : memref<8x24xf32, #tpu.memory_space<vmem>>, vector<8x24xf32>
    %cst = arith.constant dense<0.000000e+00> : vector<8x32xf32>
    %3 = tpu.matmul %2, %0, %cst {dimension_numbers = #tpu.dot_dimension_numbers<[1], [0], [0], [1], [0, 0, 1, 1], [], []>} : vector<8x24xf32>, vector<24x32xf32>, vector<8x32xf32> -> vector<8x32xf32>
    %4 = vector.broadcast %1 : vector<1x32xf32> to vector<8x32xf32>
    %5 = arith.addf %3, %4 : vector<8x32xf32>
    %cst_5 = arith.constant 5.000000e-01 : f32
    %6 = vector.broadcast %cst_5 : f32 to vector<8x32xf32>
    %7 = arith.mulf %6, %5 : vector<8x32xf32>
    %cst_6 = arith.constant 2.000000e+00 : f32
    %8 = math.sqrt %cst_6 : f32
    %9 = vector.broadcast %8 : f32 to vector<8x32xf32>
    %10 = arith.divf %5, %9 : vector<8x32xf32>
    %11 = math.erf %10 : vector<8x32xf32>
    %cst_7 = arith.constant 1.000000e+00 : f32
    %12 = vector.broadcast %cst_7 : f32 to vector<8x32xf32>
    %13 = arith.addf %12, %11 : vector<8x32xf32>
    %14 = arith.mulf %7, %13 : vector<8x32xf32>
    %c0_8 = arith.constant 0 : index
    %c0_9 = arith.constant 0 : index
    %15 = vector.load %arg1[%c0_8, %c0_9] : memref<8x24xf32, #tpu.memory_space<vmem>>, vector<8x24xf32>
    %cst_10 = arith.constant dense<0.000000e+00> : vector<8x32xf32>
    %16 = tpu.matmul %15, %0, %cst_10 {dimension_numbers = #tpu.dot_dimension_numbers<[1], [0], [0], [1], [0, 0, 1, 1], [], []>} : vector<8x24xf32>, vector<24x32xf32>, vector<8x32xf32> -> vector<8x32xf32>
    %17 = vector.broadcast %1 : vector<1x32xf32> to vector<8x32xf32>
    %18 = arith.addf %16, %17 : vector<8x32xf32>
    %cst_11 = arith.constant 5.000000e-01 : f32
    %19 = vector.broadcast %cst_11 : f32 to vector<8x32xf32>
    %20 = arith.mulf %19, %18 : vector<8x32xf32>
    %cst_12 = arith.constant 2.000000e+00 : f32
    %21 = math.sqrt %cst_12 : f32
    %22 = vector.broadcast %21 : f32 to vector<8x32xf32>
    %23 = arith.divf %18, %22 : vector<8x32xf32>
    %24 = math.erf %23 : vector<8x32xf32>
    %cst_13 = arith.constant 1.000000e+00 : f32
    %25 = vector.broadcast %cst_13 : f32 to vector<8x32xf32>
    %26 = arith.addf %25, %24 : vector<8x32xf32>
    %27 = arith.mulf %20, %26 : vector<8x32xf32>
    %28 = tpu.iota {dimensions = array<i32: 0>} : vector<8x32xi32>
    %c0_i32 = arith.constant 0 : i32
    %29 = vector.broadcast %c0_i32 : i32 to vector<8x32xi32>
    %30 = arith.cmpi eq, %28, %29 : vector<8x32xi32>
    %c1_i32 = arith.constant 1 : i32
    %31 = tpu.dynamic_rotate %27 by %c1_i32 dim 0 : vector<8x32xf32>, i32 -> vector<8x32xf32>
    %cst_14 = arith.constant 0.000000e+00 : f32
    %32 = vector.broadcast %cst_14 : f32 to vector<8x32xf32>
    %33 = arith.select %30, %32, %31 : vector<8x32xi1>, vector<8x32xf32>
    %c0_15 = arith.constant 0 : index
    %c0_16 = arith.constant 0 : index
    %c0_17 = arith.constant 0 : index
    %34 = vector.load %arg4[%c0_15, %c0_16, %c0_17] : memref<3x32x32xf32, #tpu.memory_space<vmem>>, vector<1x32x32xf32>
    %35 = vector.shape_cast %34 : vector<1x32x32xf32> to vector<32x32xf32>
    %cst_18 = arith.constant dense<0.000000e+00> : vector<8x32xf32>
    %36 = tpu.matmul %33, %35, %cst_18 {dimension_numbers = #tpu.dot_dimension_numbers<[1], [0], [0], [1], [0, 0, 1, 1], [], []>} : vector<8x32xf32>, vector<32x32xf32>, vector<8x32xf32> -> vector<8x32xf32>
    %c1 = arith.constant 1 : index
    %c0_19 = arith.constant 0 : index
    %c0_20 = arith.constant 0 : index
    %37 = vector.load %arg4[%c1, %c0_19, %c0_20] : memref<3x32x32xf32, #tpu.memory_space<vmem>>, vector<1x32x32xf32>
    %38 = vector.shape_cast %37 : vector<1x32x32xf32> to vector<32x32xf32>
    %cst_21 = arith.constant dense<0.000000e+00> : vector<8x32xf32>
    %39 = tpu.matmul %14, %38, %cst_21 {dimension_numbers = #tpu.dot_dimension_numbers<[1], [0], [0], [1], [0, 0, 1, 1], [], []>} : vector<8x32xf32>, vector<32x32xf32>, vector<8x32xf32> -> vector<8x32xf32>
    %40 = arith.addf %36, %39 : vector<8x32xf32>
    %c2 = arith.constant 2 : index
    %c0_22 = arith.constant 0 : index
    %c0_23 = arith.constant 0 : index
    %41 = vector.load %arg4[%c2, %c0_22, %c0_23] : memref<3x32x32xf32, #tpu.memory_space<vmem>>, vector<1x32x32xf32>
    %42 = vector.shape_cast %41 : vector<1x32x32xf32> to vector<32x32xf32>
    %cst_24 = arith.constant dense<0.000000e+00> : vector<8x32xf32>
    %43 = tpu.matmul %27, %42, %cst_24 {dimension_numbers = #tpu.dot_dimension_numbers<[1], [0], [0], [1], [0, 0, 1, 1], [], []>} : vector<8x32xf32>, vector<32x32xf32>, vector<8x32xf32> -> vector<8x32xf32>
    %44 = arith.addf %40, %43 : vector<8x32xf32>
    %c0_25 = arith.constant 0 : index
    %c0_26 = arith.constant 0 : index
    %45 = vector.load %arg5[%c0_25, %c0_26] : memref<1x32xf32, #tpu.memory_space<vmem>>, vector<1x32xf32>
    %46 = vector.broadcast %45 : vector<1x32xf32> to vector<8x32xf32>
    %47 = arith.addf %44, %46 : vector<8x32xf32>
    %cst_27 = arith.constant 5.000000e-01 : f32
    %48 = vector.broadcast %cst_27 : f32 to vector<8x32xf32>
    %49 = arith.mulf %48, %47 : vector<8x32xf32>
    %cst_28 = arith.constant 2.000000e+00 : f32
    %50 = math.sqrt %cst_28 : f32
    %51 = vector.broadcast %50 : f32 to vector<8x32xf32>
    %52 = arith.divf %47, %51 : vector<8x32xf32>
    %53 = math.erf %52 : vector<8x32xf32>
    %cst_29 = arith.constant 1.000000e+00 : f32
    %54 = vector.broadcast %cst_29 : f32 to vector<8x32xf32>
    %55 = arith.addf %54, %53 : vector<8x32xf32>
    %56 = arith.mulf %49, %55 : vector<8x32xf32>
    %c0_30 = arith.constant 0 : index
    %c0_31 = arith.constant 0 : index
    %57 = vector.load %arg6[%c0_30, %c0_31] : memref<8x32xf32, #tpu.memory_space<vmem>>, vector<8x32xf32>
    %58 = arith.addf %56, %57 : vector<8x32xf32>
    %c0_32 = arith.constant 0 : index
    %c0_33 = arith.constant 0 : index
    %c0_34 = arith.constant 0 : index
    %59 = vector.load %arg7[%c0_32, %c0_33, %c0_34] : memref<2x1x32xf32, #tpu.memory_space<vmem>>, vector<1x1x32xf32>
    %60 = vector.shape_cast %59 : vector<1x1x32xf32> to vector<1x32xf32>
    %c0_35 = arith.constant 0 : index
    %c0_36 = arith.constant 0 : index
    %c0_37 = arith.constant 0 : index
    %61 = vector.load %arg8[%c0_35, %c0_36, %c0_37] : memref<2x1x32xf32, #tpu.memory_space<vmem>>, vector<1x1x32xf32>
    %62 = vector.shape_cast %61 : vector<1x1x32xf32> to vector<1x32xf32>
    %cst_38 = arith.constant dense<0.000000e+00> : vector<8xf32>
    %63 = vector.multi_reduction <add>, %58, %cst_38 [1] : vector<8x32xf32> to vector<8xf32>
    %64 = vector.shape_cast %63 : vector<8xf32> to vector<8x1xf32>
    %cst_39 = arith.constant 3.200000e+01 : f32
    %65 = vector.broadcast %cst_39 : f32 to vector<8x1xf32>
    %66 = arith.divf %64, %65 : vector<8x1xf32>
    %67 = vector.broadcast %66 : vector<8x1xf32> to vector<8x32xf32>
    %68 = arith.subf %58, %67 : vector<8x32xf32>
    %69 = arith.mulf %68, %68 : vector<8x32xf32>
    %cst_40 = arith.constant dense<0.000000e+00> : vector<8xf32>
    %70 = vector.multi_reduction <add>, %69, %cst_40 [1] : vector<8x32xf32> to vector<8xf32>
    %71 = vector.shape_cast %70 : vector<8xf32> to vector<8x1xf32>
    %cst_41 = arith.constant 3.200000e+01 : f32
    %72 = vector.broadcast %cst_41 : f32 to vector<8x1xf32>
    %73 = arith.divf %71, %72 : vector<8x1xf32>
    %74 = vector.broadcast %66 : vector<8x1xf32> to vector<8x32xf32>
    %75 = arith.subf %58, %74 : vector<8x32xf32>
    %cst_42 = arith.constant 9.99999974E-6 : f32
    %76 = vector.broadcast %cst_42 : f32 to vector<8x1xf32>
    %77 = arith.addf %73, %76 : vector<8x1xf32>
    %78 = math.rsqrt %77 : vector<8x1xf32>
    %79 = vector.broadcast %78 : vector<8x1xf32> to vector<8x32xf32>
    %80 = arith.mulf %75, %79 : vector<8x32xf32>
    %81 = vector.broadcast %60 : vector<1x32xf32> to vector<8x32xf32>
    %82 = arith.mulf %80, %81 : vector<8x32xf32>
    %83 = vector.broadcast %62 : vector<1x32xf32> to vector<8x32xf32>
    %84 = arith.addf %82, %83 : vector<8x32xf32>
    %c0_43 = arith.constant 0 : index
    %c0_44 = arith.constant 0 : index
    %c0_45 = arith.constant 0 : index
    %85 = vector.load %arg9[%c0_43, %c0_44, %c0_45] : memref<2x32x96xf32, #tpu.memory_space<vmem>>, vector<1x32x96xf32>
    %86 = vector.shape_cast %85 : vector<1x32x96xf32> to vector<32x96xf32>
    %cst_46 = arith.constant dense<0.000000e+00> : vector<8x96xf32>
    %87 = tpu.matmul %84, %86, %cst_46 {dimension_numbers = #tpu.dot_dimension_numbers<[1], [0], [0], [1], [0, 0, 1, 1], [], []>} : vector<8x32xf32>, vector<32x96xf32>, vector<8x96xf32> -> vector<8x96xf32>
    %c0_47 = arith.constant 0 : index
    %c0_48 = arith.constant 0 : index
    %c0_49 = arith.constant 0 : index
    %88 = vector.load %arg10[%c0_47, %c0_48, %c0_49] : memref<2x1x96xf32, #tpu.memory_space<vmem>>, vector<1x1x96xf32>
    %89 = vector.shape_cast %88 : vector<1x1x96xf32> to vector<1x96xf32>
    %90 = vector.broadcast %89 : vector<1x96xf32> to vector<8x96xf32>
    %91 = arith.addf %87, %90 : vector<8x96xf32>
    %92 = vector.extract_strided_slice %91 {offsets = [0, 0], sizes = [8, 32], strides = [1, 1]} : vector<8x96xf32> to vector<8x32xf32>
    %93 = vector.shape_cast %92 : vector<8x32xf32> to vector<8x4x8xf32>
    %94 = tpu.transpose %93, [1, 0, 2] : vector<8x4x8xf32> -> vector<4x8x8xf32>
    %95 = vector.extract_strided_slice %91 {offsets = [0, 32], sizes = [8, 32], strides = [1, 1]} : vector<8x96xf32> to vector<8x32xf32>
    %96 = vector.shape_cast %95 : vector<8x32xf32> to vector<8x4x8xf32>
    %97 = tpu.transpose %96, [1, 0, 2] : vector<8x4x8xf32> -> vector<4x8x8xf32>
    %98 = vector.extract_strided_slice %91 {offsets = [0, 64], sizes = [8, 32], strides = [1, 1]} : vector<8x96xf32> to vector<8x32xf32>
    %99 = vector.shape_cast %98 : vector<8x32xf32> to vector<8x4x8xf32>
    %100 = tpu.transpose %99, [1, 0, 2] : vector<8x4x8xf32> -> vector<4x8x8xf32>
    "tpu.trace_start"() <{level = 10 : i32, message = "hqe,hke->hqk"}> : () -> ()
    %cst_50 = arith.constant dense<0.000000e+00> : vector<4x8x8xf32>
    %101 = tpu.matmul %94, %97, %cst_50 {dimension_numbers = #tpu.dot_dimension_numbers<[2], [2], [1], [1], [0, 0, 0, 1, 1, 1], [0], [0]>} : vector<4x8x8xf32>, vector<4x8x8xf32>, vector<4x8x8xf32> -> vector<4x8x8xf32>
    "tpu.trace_stop"() : () -> ()
    %cst_51 = arith.constant dense<0xFF800000> : vector<4x8xf32>
    %102 = vector.multi_reduction <maximumf>, %101, %cst_51 [2] : vector<4x8x8xf32> to vector<4x8xf32>
    %103 = vector.shape_cast %102 : vector<4x8xf32> to vector<4x8x1xf32>
    %104 = vector.broadcast %103 : vector<4x8x1xf32> to vector<4x8x8xf32>
    %105 = arith.subf %101, %104 : vector<4x8x8xf32>
    %106 = math.exp %105 : vector<4x8x8xf32>
    %cst_52 = arith.constant dense<0.000000e+00> : vector<4x8xf32>
    %107 = vector.multi_reduction <add>, %106, %cst_52 [2] : vector<4x8x8xf32> to vector<4x8xf32>
    %108 = vector.shape_cast %107 : vector<4x8xf32> to vector<4x8x1xf32>
    %109 = tpu.reciprocal %108 {approx = true} : vector<4x8x1xf32> -> vector<4x8x1xf32>
    %110 = vector.broadcast %109 : vector<4x8x1xf32> to vector<4x8x8xf32>
    %111 = arith.mulf %106, %110 : vector<4x8x8xf32>
    "tpu.trace_start"() <{level = 10 : i32, message = "hqk,hke->hqe"}> : () -> ()
    %cst_53 = arith.constant dense<0.000000e+00> : vector<4x8x8xf32>
    %112 = tpu.matmul %111, %100, %cst_53 {dimension_numbers = #tpu.dot_dimension_numbers<[2], [1], [1], [2], [0, 0, 0, 1, 1, 2], [0], [0]>} : vector<4x8x8xf32>, vector<4x8x8xf32>, vector<4x8x8xf32> -> vector<4x8x8xf32>
    "tpu.trace_stop"() : () -> ()
    %113 = tpu.transpose %112, [1, 0, 2] : vector<4x8x8xf32> -> vector<8x4x8xf32>
    %114 = vector.shape_cast %113 : vector<8x4x8xf32> to vector<8x32xf32>
    %c0_54 = arith.constant 0 : index
    %c0_55 = arith.constant 0 : index
    %c0_56 = arith.constant 0 : index
    %115 = vector.load %arg11[%c0_54, %c0_55, %c0_56] : memref<2x32x32xf32, #tpu.memory_space<vmem>>, vector<1x32x32xf32>
    %116 = vector.shape_cast %115 : vector<1x32x32xf32> to vector<32x32xf32>
    %cst_57 = arith.constant dense<0.000000e+00> : vector<8x32xf32>
    %117 = tpu.matmul %114, %116, %cst_57 {dimension_numbers = #tpu.dot_dimension_numbers<[1], [0], [0], [1], [0, 0, 1, 1], [], []>} : vector<8x32xf32>, vector<32x32xf32>, vector<8x32xf32> -> vector<8x32xf32>
    %118 = arith.addf %58, %117 : vector<8x32xf32>
    %c0_58 = arith.constant 0 : index
    %c0_59 = arith.constant 0 : index
    %c0_60 = arith.constant 0 : index
    %119 = vector.load %arg12[%c0_58, %c0_59, %c0_60] : memref<2x1x32xf32, #tpu.memory_space<vmem>>, vector<1x1x32xf32>
    %120 = vector.shape_cast %119 : vector<1x1x32xf32> to vector<1x32xf32>
    %121 = vector.broadcast %120 : vector<1x32xf32> to vector<8x32xf32>
    %122 = arith.addf %118, %121 : vector<8x32xf32>
    %c0_61 = arith.constant 0 : index
    %c0_62 = arith.constant 0 : index
    %c0_63 = arith.constant 0 : index
    %123 = vector.load %arg13[%c0_61, %c0_62, %c0_63] : memref<2x1x32xf32, #tpu.memory_space<vmem>>, vector<1x1x32xf32>
    %124 = vector.shape_cast %123 : vector<1x1x32xf32> to vector<1x32xf32>
    %c0_64 = arith.constant 0 : index
    %c0_65 = arith.constant 0 : index
    %c0_66 = arith.constant 0 : index
    %125 = vector.load %arg14[%c0_64, %c0_65, %c0_66] : memref<2x1x32xf32, #tpu.memory_space<vmem>>, vector<1x1x32xf32>
    %126 = vector.shape_cast %125 : vector<1x1x32xf32> to vector<1x32xf32>
    %cst_67 = arith.constant dense<0.000000e+00> : vector<8xf32>
    %127 = vector.multi_reduction <add>, %122, %cst_67 [1] : vector<8x32xf32> to vector<8xf32>
    %128 = vector.shape_cast %127 : vector<8xf32> to vector<8x1xf32>
    %cst_68 = arith.constant 3.200000e+01 : f32
    %129 = vector.broadcast %cst_68 : f32 to vector<8x1xf32>
    %130 = arith.divf %128, %129 : vector<8x1xf32>
    %131 = vector.broadcast %130 : vector<8x1xf32> to vector<8x32xf32>
    %132 = arith.subf %122, %131 : vector<8x32xf32>
    %133 = arith.mulf %132, %132 : vector<8x32xf32>
    %cst_69 = arith.constant dense<0.000000e+00> : vector<8xf32>
    %134 = vector.multi_reduction <add>, %133, %cst_69 [1] : vector<8x32xf32> to vector<8xf32>
    %135 = vector.shape_cast %134 : vector<8xf32> to vector<8x1xf32>
    %cst_70 = arith.constant 3.200000e+01 : f32
    %136 = vector.broadcast %cst_70 : f32 to vector<8x1xf32>
    %137 = arith.divf %135, %136 : vector<8x1xf32>
    %138 = vector.broadcast %130 : vector<8x1xf32> to vector<8x32xf32>
    %139 = arith.subf %122, %138 : vector<8x32xf32>
    %cst_71 = arith.constant 9.99999974E-6 : f32
    %140 = vector.broadcast %cst_71 : f32 to vector<8x1xf32>
    %141 = arith.addf %137, %140 : vector<8x1xf32>
    %142 = math.rsqrt %141 : vector<8x1xf32>
    %143 = vector.broadcast %142 : vector<8x1xf32> to vector<8x32xf32>
    %144 = arith.mulf %139, %143 : vector<8x32xf32>
    %145 = vector.broadcast %124 : vector<1x32xf32> to vector<8x32xf32>
    %146 = arith.mulf %144, %145 : vector<8x32xf32>
    %147 = vector.broadcast %126 : vector<1x32xf32> to vector<8x32xf32>
    %148 = arith.addf %146, %147 : vector<8x32xf32>
    %c0_72 = arith.constant 0 : index
    %c0_73 = arith.constant 0 : index
    %c0_74 = arith.constant 0 : index
    %149 = vector.load %arg15[%c0_72, %c0_73, %c0_74] : memref<2x32x64xf32, #tpu.memory_space<vmem>>, vector<1x32x64xf32>
    %150 = vector.shape_cast %149 : vector<1x32x64xf32> to vector<32x64xf32>
    %cst_75 = arith.constant dense<0.000000e+00> : vector<8x64xf32>
    %151 = tpu.matmul %148, %150, %cst_75 {dimension_numbers = #tpu.dot_dimension_numbers<[1], [0], [0], [1], [0, 0, 1, 1], [], []>} : vector<8x32xf32>, vector<32x64xf32>, vector<8x64xf32> -> vector<8x64xf32>
    %c0_76 = arith.constant 0 : index
    %c0_77 = arith.constant 0 : index
    %c0_78 = arith.constant 0 : index
    %152 = vector.load %arg16[%c0_76, %c0_77, %c0_78] : memref<2x1x64xf32, #tpu.memory_space<vmem>>, vector<1x1x64xf32>
    %153 = vector.shape_cast %152 : vector<1x1x64xf32> to vector<1x64xf32>
    %154 = vector.broadcast %153 : vector<1x64xf32> to vector<8x64xf32>
    %155 = arith.addf %151, %154 : vector<8x64xf32>
    %cst_79 = arith.constant 5.000000e-01 : f32
    %156 = vector.broadcast %cst_79 : f32 to vector<8x64xf32>
    %157 = arith.mulf %156, %155 : vector<8x64xf32>
    %cst_80 = arith.constant 2.000000e+00 : f32
    %158 = math.sqrt %cst_80 : f32
    %159 = vector.broadcast %158 : f32 to vector<8x64xf32>
    %160 = arith.divf %155, %159 : vector<8x64xf32>
    %161 = math.erf %160 : vector<8x64xf32>
    %cst_81 = arith.constant 1.000000e+00 : f32
    %162 = vector.broadcast %cst_81 : f32 to vector<8x64xf32>
    %163 = arith.addf %162, %161 : vector<8x64xf32>
    %164 = arith.mulf %157, %163 : vector<8x64xf32>
    %c0_82 = arith.constant 0 : index
    %c0_83 = arith.constant 0 : index
    %c0_84 = arith.constant 0 : index
    %165 = vector.load %arg17[%c0_82, %c0_83, %c0_84] : memref<2x64x32xf32, #tpu.memory_space<vmem>>, vector<1x64x32xf32>
    %166 = vector.shape_cast %165 : vector<1x64x32xf32> to vector<64x32xf32>
    %cst_85 = arith.constant dense<0.000000e+00> : vector<8x32xf32>
    %167 = tpu.matmul %164, %166, %cst_85 {dimension_numbers = #tpu.dot_dimension_numbers<[1], [0], [0], [1], [0, 0, 1, 1], [], []>} : vector<8x64xf32>, vector<64x32xf32>, vector<8x32xf32> -> vector<8x32xf32>
    %168 = arith.addf %122, %167 : vector<8x32xf32>
    %c0_86 = arith.constant 0 : index
    %c0_87 = arith.constant 0 : index
    %c0_88 = arith.constant 0 : index
    %169 = vector.load %arg18[%c0_86, %c0_87, %c0_88] : memref<2x1x32xf32, #tpu.memory_space<vmem>>, vector<1x1x32xf32>
    %170 = vector.shape_cast %169 : vector<1x1x32xf32> to vector<1x32xf32>
    %171 = vector.broadcast %170 : vector<1x32xf32> to vector<8x32xf32>
    %172 = arith.addf %168, %171 : vector<8x32xf32>
    %c1_89 = arith.constant 1 : index
    %c0_90 = arith.constant 0 : index
    %c0_91 = arith.constant 0 : index
    %173 = vector.load %arg7[%c1_89, %c0_90, %c0_91] : memref<2x1x32xf32, #tpu.memory_space<vmem>>, vector<1x1x32xf32>
    %174 = vector.shape_cast %173 : vector<1x1x32xf32> to vector<1x32xf32>
    %c1_92 = arith.constant 1 : index
    %c0_93 = arith.constant 0 : index
    %c0_94 = arith.constant 0 : index
    %175 = vector.load %arg8[%c1_92, %c0_93, %c0_94] : memref<2x1x32xf32, #tpu.memory_space<vmem>>, vector<1x1x32xf32>
    %176 = vector.shape_cast %175 : vector<1x1x32xf32> to vector<1x32xf32>
    %cst_95 = arith.constant dense<0.000000e+00> : vector<8xf32>
    %177 = vector.multi_reduction <add>, %172, %cst_95 [1] : vector<8x32xf32> to vector<8xf32>
    %178 = vector.shape_cast %177 : vector<8xf32> to vector<8x1xf32>
    %cst_96 = arith.constant 3.200000e+01 : f32
    %179 = vector.broadcast %cst_96 : f32 to vector<8x1xf32>
    %180 = arith.divf %178, %179 : vector<8x1xf32>
    %181 = vector.broadcast %180 : vector<8x1xf32> to vector<8x32xf32>
    %182 = arith.subf %172, %181 : vector<8x32xf32>
    %183 = arith.mulf %182, %182 : vector<8x32xf32>
    %cst_97 = arith.constant dense<0.000000e+00> : vector<8xf32>
    %184 = vector.multi_reduction <add>, %183, %cst_97 [1] : vector<8x32xf32> to vector<8xf32>
    %185 = vector.shape_cast %184 : vector<8xf32> to vector<8x1xf32>
    %cst_98 = arith.constant 3.200000e+01 : f32
    %186 = vector.broadcast %cst_98 : f32 to vector<8x1xf32>
    %187 = arith.divf %185, %186 : vector<8x1xf32>
    %188 = vector.broadcast %180 : vector<8x1xf32> to vector<8x32xf32>
    %189 = arith.subf %172, %188 : vector<8x32xf32>
    %cst_99 = arith.constant 9.99999974E-6 : f32
    %190 = vector.broadcast %cst_99 : f32 to vector<8x1xf32>
    %191 = arith.addf %187, %190 : vector<8x1xf32>
    %192 = math.rsqrt %191 : vector<8x1xf32>
    %193 = vector.broadcast %192 : vector<8x1xf32> to vector<8x32xf32>
    %194 = arith.mulf %189, %193 : vector<8x32xf32>
    %195 = vector.broadcast %174 : vector<1x32xf32> to vector<8x32xf32>
    %196 = arith.mulf %194, %195 : vector<8x32xf32>
    %197 = vector.broadcast %176 : vector<1x32xf32> to vector<8x32xf32>
    %198 = arith.addf %196, %197 : vector<8x32xf32>
    %c1_100 = arith.constant 1 : index
    %c0_101 = arith.constant 0 : index
    %c0_102 = arith.constant 0 : index
    %199 = vector.load %arg9[%c1_100, %c0_101, %c0_102] : memref<2x32x96xf32, #tpu.memory_space<vmem>>, vector<1x32x96xf32>
    %200 = vector.shape_cast %199 : vector<1x32x96xf32> to vector<32x96xf32>
    %cst_103 = arith.constant dense<0.000000e+00> : vector<8x96xf32>
    %201 = tpu.matmul %198, %200, %cst_103 {dimension_numbers = #tpu.dot_dimension_numbers<[1], [0], [0], [1], [0, 0, 1, 1], [], []>} : vector<8x32xf32>, vector<32x96xf32>, vector<8x96xf32> -> vector<8x96xf32>
    %c1_104 = arith.constant 1 : index
    %c0_105 = arith.constant 0 : index
    %c0_106 = arith.constant 0 : index
    %202 = vector.load %arg10[%c1_104, %c0_105, %c0_106] : memref<2x1x96xf32, #tpu.memory_space<vmem>>, vector<1x1x96xf32>
    %203 = vector.shape_cast %202 : vector<1x1x96xf32> to vector<1x96xf32>
    %204 = vector.broadcast %203 : vector<1x96xf32> to vector<8x96xf32>
    %205 = arith.addf %201, %204 : vector<8x96xf32>
    %206 = vector.extract_strided_slice %205 {offsets = [0, 0], sizes = [8, 32], strides = [1, 1]} : vector<8x96xf32> to vector<8x32xf32>
    %207 = vector.shape_cast %206 : vector<8x32xf32> to vector<8x4x8xf32>
    %208 = tpu.transpose %207, [1, 0, 2] : vector<8x4x8xf32> -> vector<4x8x8xf32>
    %209 = vector.extract_strided_slice %205 {offsets = [0, 32], sizes = [8, 32], strides = [1, 1]} : vector<8x96xf32> to vector<8x32xf32>
    %210 = vector.shape_cast %209 : vector<8x32xf32> to vector<8x4x8xf32>
    %211 = tpu.transpose %210, [1, 0, 2] : vector<8x4x8xf32> -> vector<4x8x8xf32>
    %212 = vector.extract_strided_slice %205 {offsets = [0, 64], sizes = [8, 32], strides = [1, 1]} : vector<8x96xf32> to vector<8x32xf32>
    %213 = vector.shape_cast %212 : vector<8x32xf32> to vector<8x4x8xf32>
    %214 = tpu.transpose %213, [1, 0, 2] : vector<8x4x8xf32> -> vector<4x8x8xf32>
    "tpu.trace_start"() <{level = 10 : i32, message = "hqe,hke->hqk"}> : () -> ()
    %cst_107 = arith.constant dense<0.000000e+00> : vector<4x8x8xf32>
    %215 = tpu.matmul %208, %211, %cst_107 {dimension_numbers = #tpu.dot_dimension_numbers<[2], [2], [1], [1], [0, 0, 0, 1, 1, 1], [0], [0]>} : vector<4x8x8xf32>, vector<4x8x8xf32>, vector<4x8x8xf32> -> vector<4x8x8xf32>
    "tpu.trace_stop"() : () -> ()
    %cst_108 = arith.constant dense<0xFF800000> : vector<4x8xf32>
    %216 = vector.multi_reduction <maximumf>, %215, %cst_108 [2] : vector<4x8x8xf32> to vector<4x8xf32>
    %217 = vector.shape_cast %216 : vector<4x8xf32> to vector<4x8x1xf32>
    %218 = vector.broadcast %217 : vector<4x8x1xf32> to vector<4x8x8xf32>
    %219 = arith.subf %215, %218 : vector<4x8x8xf32>
    %220 = math.exp %219 : vector<4x8x8xf32>
    %cst_109 = arith.constant dense<0.000000e+00> : vector<4x8xf32>
    %221 = vector.multi_reduction <add>, %220, %cst_109 [2] : vector<4x8x8xf32> to vector<4x8xf32>
    %222 = vector.shape_cast %221 : vector<4x8xf32> to vector<4x8x1xf32>
    %223 = tpu.reciprocal %222 {approx = true} : vector<4x8x1xf32> -> vector<4x8x1xf32>
    %224 = vector.broadcast %223 : vector<4x8x1xf32> to vector<4x8x8xf32>
    %225 = arith.mulf %220, %224 : vector<4x8x8xf32>
    "tpu.trace_start"() <{level = 10 : i32, message = "hqk,hke->hqe"}> : () -> ()
    %cst_110 = arith.constant dense<0.000000e+00> : vector<4x8x8xf32>
    %226 = tpu.matmul %225, %214, %cst_110 {dimension_numbers = #tpu.dot_dimension_numbers<[2], [1], [1], [2], [0, 0, 0, 1, 1, 2], [0], [0]>} : vector<4x8x8xf32>, vector<4x8x8xf32>, vector<4x8x8xf32> -> vector<4x8x8xf32>
    "tpu.trace_stop"() : () -> ()
    %227 = tpu.transpose %226, [1, 0, 2] : vector<4x8x8xf32> -> vector<8x4x8xf32>
    %228 = vector.shape_cast %227 : vector<8x4x8xf32> to vector<8x32xf32>
    %c1_111 = arith.constant 1 : index
    %c0_112 = arith.constant 0 : index
    %c0_113 = arith.constant 0 : index
    %229 = vector.load %arg11[%c1_111, %c0_112, %c0_113] : memref<2x32x32xf32, #tpu.memory_space<vmem>>, vector<1x32x32xf32>
    %230 = vector.shape_cast %229 : vector<1x32x32xf32> to vector<32x32xf32>
    %cst_114 = arith.constant dense<0.000000e+00> : vector<8x32xf32>
    %231 = tpu.matmul %228, %230, %cst_114 {dimension_numbers = #tpu.dot_dimension_numbers<[1], [0], [0], [1], [0, 0, 1, 1], [], []>} : vector<8x32xf32>, vector<32x32xf32>, vector<8x32xf32> -> vector<8x32xf32>
    %232 = arith.addf %172, %231 : vector<8x32xf32>
    %c1_115 = arith.constant 1 : index
    %c0_116 = arith.constant 0 : index
    %c0_117 = arith.constant 0 : index
    %233 = vector.load %arg12[%c1_115, %c0_116, %c0_117] : memref<2x1x32xf32, #tpu.memory_space<vmem>>, vector<1x1x32xf32>
    %234 = vector.shape_cast %233 : vector<1x1x32xf32> to vector<1x32xf32>
    %235 = vector.broadcast %234 : vector<1x32xf32> to vector<8x32xf32>
    %236 = arith.addf %232, %235 : vector<8x32xf32>
    %c1_118 = arith.constant 1 : index
    %c0_119 = arith.constant 0 : index
    %c0_120 = arith.constant 0 : index
    %237 = vector.load %arg13[%c1_118, %c0_119, %c0_120] : memref<2x1x32xf32, #tpu.memory_space<vmem>>, vector<1x1x32xf32>
    %238 = vector.shape_cast %237 : vector<1x1x32xf32> to vector<1x32xf32>
    %c1_121 = arith.constant 1 : index
    %c0_122 = arith.constant 0 : index
    %c0_123 = arith.constant 0 : index
    %239 = vector.load %arg14[%c1_121, %c0_122, %c0_123] : memref<2x1x32xf32, #tpu.memory_space<vmem>>, vector<1x1x32xf32>
    %240 = vector.shape_cast %239 : vector<1x1x32xf32> to vector<1x32xf32>
    %cst_124 = arith.constant dense<0.000000e+00> : vector<8xf32>
    %241 = vector.multi_reduction <add>, %236, %cst_124 [1] : vector<8x32xf32> to vector<8xf32>
    %242 = vector.shape_cast %241 : vector<8xf32> to vector<8x1xf32>
    %cst_125 = arith.constant 3.200000e+01 : f32
    %243 = vector.broadcast %cst_125 : f32 to vector<8x1xf32>
    %244 = arith.divf %242, %243 : vector<8x1xf32>
    %245 = vector.broadcast %244 : vector<8x1xf32> to vector<8x32xf32>
    %246 = arith.subf %236, %245 : vector<8x32xf32>
    %247 = arith.mulf %246, %246 : vector<8x32xf32>
    %cst_126 = arith.constant dense<0.000000e+00> : vector<8xf32>
    %248 = vector.multi_reduction <add>, %247, %cst_126 [1] : vector<8x32xf32> to vector<8xf32>
    %249 = vector.shape_cast %248 : vector<8xf32> to vector<8x1xf32>
    %cst_127 = arith.constant 3.200000e+01 : f32
    %250 = vector.broadcast %cst_127 : f32 to vector<8x1xf32>
    %251 = arith.divf %249, %250 : vector<8x1xf32>
    %252 = vector.broadcast %244 : vector<8x1xf32> to vector<8x32xf32>
    %253 = arith.subf %236, %252 : vector<8x32xf32>
    %cst_128 = arith.constant 9.99999974E-6 : f32
    %254 = vector.broadcast %cst_128 : f32 to vector<8x1xf32>
    %255 = arith.addf %251, %254 : vector<8x1xf32>
    %256 = math.rsqrt %255 : vector<8x1xf32>
    %257 = vector.broadcast %256 : vector<8x1xf32> to vector<8x32xf32>
    %258 = arith.mulf %253, %257 : vector<8x32xf32>
    %259 = vector.broadcast %238 : vector<1x32xf32> to vector<8x32xf32>
    %260 = arith.mulf %258, %259 : vector<8x32xf32>
    %261 = vector.broadcast %240 : vector<1x32xf32> to vector<8x32xf32>
    %262 = arith.addf %260, %261 : vector<8x32xf32>
    %c1_129 = arith.constant 1 : index
    %c0_130 = arith.constant 0 : index
    %c0_131 = arith.constant 0 : index
    %263 = vector.load %arg15[%c1_129, %c0_130, %c0_131] : memref<2x32x64xf32, #tpu.memory_space<vmem>>, vector<1x32x64xf32>
    %264 = vector.shape_cast %263 : vector<1x32x64xf32> to vector<32x64xf32>
    %cst_132 = arith.constant dense<0.000000e+00> : vector<8x64xf32>
    %265 = tpu.matmul %262, %264, %cst_132 {dimension_numbers = #tpu.dot_dimension_numbers<[1], [0], [0], [1], [0, 0, 1, 1], [], []>} : vector<8x32xf32>, vector<32x64xf32>, vector<8x64xf32> -> vector<8x64xf32>
    %c1_133 = arith.constant 1 : index
    %c0_134 = arith.constant 0 : index
    %c0_135 = arith.constant 0 : index
    %266 = vector.load %arg16[%c1_133, %c0_134, %c0_135] : memref<2x1x64xf32, #tpu.memory_space<vmem>>, vector<1x1x64xf32>
    %267 = vector.shape_cast %266 : vector<1x1x64xf32> to vector<1x64xf32>
    %268 = vector.broadcast %267 : vector<1x64xf32> to vector<8x64xf32>
    %269 = arith.addf %265, %268 : vector<8x64xf32>
    %cst_136 = arith.constant 5.000000e-01 : f32
    %270 = vector.broadcast %cst_136 : f32 to vector<8x64xf32>
    %271 = arith.mulf %270, %269 : vector<8x64xf32>
    %cst_137 = arith.constant 2.000000e+00 : f32
    %272 = math.sqrt %cst_137 : f32
    %273 = vector.broadcast %272 : f32 to vector<8x64xf32>
    %274 = arith.divf %269, %273 : vector<8x64xf32>
    %275 = math.erf %274 : vector<8x64xf32>
    %cst_138 = arith.constant 1.000000e+00 : f32
    %276 = vector.broadcast %cst_138 : f32 to vector<8x64xf32>
    %277 = arith.addf %276, %275 : vector<8x64xf32>
    %278 = arith.mulf %271, %277 : vector<8x64xf32>
    %c1_139 = arith.constant 1 : index
    %c0_140 = arith.constant 0 : index
    %c0_141 = arith.constant 0 : index
    %279 = vector.load %arg17[%c1_139, %c0_140, %c0_141] : memref<2x64x32xf32, #tpu.memory_space<vmem>>, vector<1x64x32xf32>
    %280 = vector.shape_cast %279 : vector<1x64x32xf32> to vector<64x32xf32>
    %cst_142 = arith.constant dense<0.000000e+00> : vector<8x32xf32>
    %281 = tpu.matmul %278, %280, %cst_142 {dimension_numbers = #tpu.dot_dimension_numbers<[1], [0], [0], [1], [0, 0, 1, 1], [], []>} : vector<8x64xf32>, vector<64x32xf32>, vector<8x32xf32> -> vector<8x32xf32>
    %282 = arith.addf %236, %281 : vector<8x32xf32>
    %c1_143 = arith.constant 1 : index
    %c0_144 = arith.constant 0 : index
    %c0_145 = arith.constant 0 : index
    %283 = vector.load %arg18[%c1_143, %c0_144, %c0_145] : memref<2x1x32xf32, #tpu.memory_space<vmem>>, vector<1x1x32xf32>
    %284 = vector.shape_cast %283 : vector<1x1x32xf32> to vector<1x32xf32>
    %285 = vector.broadcast %284 : vector<1x32xf32> to vector<8x32xf32>
    %286 = arith.addf %282, %285 : vector<8x32xf32>
    %c0_146 = arith.constant 0 : index
    %c0_147 = arith.constant 0 : index
    %287 = vector.load %arg19[%c0_146, %c0_147] : memref<1x32xf32, #tpu.memory_space<vmem>>, vector<1x32xf32>
    %c0_148 = arith.constant 0 : index
    %c0_149 = arith.constant 0 : index
    %288 = vector.load %arg20[%c0_148, %c0_149] : memref<1x32xf32, #tpu.memory_space<vmem>>, vector<1x32xf32>
    %cst_150 = arith.constant dense<0.000000e+00> : vector<8xf32>
    %289 = vector.multi_reduction <add>, %286, %cst_150 [1] : vector<8x32xf32> to vector<8xf32>
    %290 = vector.shape_cast %289 : vector<8xf32> to vector<8x1xf32>
    %cst_151 = arith.constant 3.200000e+01 : f32
    %291 = vector.broadcast %cst_151 : f32 to vector<8x1xf32>
    %292 = arith.divf %290, %291 : vector<8x1xf32>
    %293 = vector.broadcast %292 : vector<8x1xf32> to vector<8x32xf32>
    %294 = arith.subf %286, %293 : vector<8x32xf32>
    %295 = arith.mulf %294, %294 : vector<8x32xf32>
    %cst_152 = arith.constant dense<0.000000e+00> : vector<8xf32>
    %296 = vector.multi_reduction <add>, %295, %cst_152 [1] : vector<8x32xf32> to vector<8xf32>
    %297 = vector.shape_cast %296 : vector<8xf32> to vector<8x1xf32>
    %cst_153 = arith.constant 3.200000e+01 : f32
    %298 = vector.broadcast %cst_153 : f32 to vector<8x1xf32>
    %299 = arith.divf %297, %298 : vector<8x1xf32>
    %300 = vector.broadcast %292 : vector<8x1xf32> to vector<8x32xf32>
    %301 = arith.subf %286, %300 : vector<8x32xf32>
    %cst_154 = arith.constant 9.99999974E-6 : f32
    %302 = vector.broadcast %cst_154 : f32 to vector<8x1xf32>
    %303 = arith.addf %299, %302 : vector<8x1xf32>
    %304 = math.rsqrt %303 : vector<8x1xf32>
    %305 = vector.broadcast %304 : vector<8x1xf32> to vector<8x32xf32>
    %306 = arith.mulf %301, %305 : vector<8x32xf32>
    %307 = vector.broadcast %287 : vector<1x32xf32> to vector<8x32xf32>
    %308 = arith.mulf %306, %307 : vector<8x32xf32>
    %309 = vector.broadcast %288 : vector<1x32xf32> to vector<8x32xf32>
    %310 = arith.addf %308, %309 : vector<8x32xf32>
    %c0_155 = arith.constant 0 : index
    %c0_156 = arith.constant 0 : index
    %311 = vector.load %arg21[%c0_155, %c0_156] : memref<32x128xf32, #tpu.memory_space<vmem>>, vector<32x128xf32>
    %cst_157 = arith.constant dense<0.000000e+00> : vector<8x128xf32>
    %312 = tpu.matmul %310, %311, %cst_157 {dimension_numbers = #tpu.dot_dimension_numbers<[1], [0], [0], [1], [0, 0, 1, 1], [], []>} : vector<8x32xf32>, vector<32x128xf32>, vector<8x128xf32> -> vector<8x128xf32>
    %c0_158 = arith.constant 0 : index
    %c0_159 = arith.constant 0 : index
    %313 = vector.load %arg22[%c0_158, %c0_159] : memref<1x128xf32, #tpu.memory_space<vmem>>, vector<1x128xf32>
    %314 = vector.broadcast %313 : vector<1x128xf32> to vector<8x128xf32>
    %315 = arith.addf %312, %314 : vector<8x128xf32>
    %c0_160 = arith.constant 0 : index
    %c0_161 = arith.constant 0 : index
    %316 = vector.load %arg23[%c0_160, %c0_161] : memref<8x128xf32, #tpu.memory_space<vmem>>, vector<8x128xf32>
    tpu.vector_store %arg23[%c0_160, %c0_161], %315 {strides = array<i32>} : memref<8x128xf32, #tpu.memory_space<vmem>>, vector<8x128xf32>,
    return
  }
}

</mosaic_0001>

<llo_original>
// kernel: qc_whisper_encoder.1
$region0: #{qc_whisper_encoder.1}
  #allocation0 [shape = 'u32[]', space=smem, size = 0x4, offset = 0x4, fixed_abs, tag = 'smem constant byte address 0x4 - core index']
  #allocation1 [shape = 'u32[72,128]{1,0:T(1,128)}', space=vmem, size = 0x9000, scoped, tag = 'internal scratch']
  %s0 = inlined_call_operand.vmem [shape: f32[8,24], index: 0, kind: input, shape index: {}]
  %s1 = inlined_call_operand.vmem [shape: f32[8,24], index: 1, kind: input, shape index: {}]
  %s2 = inlined_call_operand.hbm [shape: f32[24,32], index: 2, kind: input, shape index: {}]
  %s3 = inlined_call_operand.vmem [shape: f32[1,32], index: 3, kind: input, shape index: {}]
  %s4 = inlined_call_operand.vmem [shape: f32[3,32,32], index: 4, kind: input, shape index: {}]
  %s5 = inlined_call_operand.hbm [shape: f32[1,32], index: 5, kind: input, shape index: {}]
  %s6 = inlined_call_operand.vmem [shape: f32[8,32], index: 6, kind: input, shape index: {}]
  %s7 = inlined_call_operand.vmem [shape: f32[2,1,32], index: 7, kind: input, shape index: {}]
  %s8 = inlined_call_operand.hbm [shape: f32[2,1,32], index: 8, kind: input, shape index: {}]
  %s9 = inlined_call_operand.vmem [shape: f32[2,32,96], index: 9, kind: input, shape index: {}]
  %s10 = inlined_call_operand.hbm [shape: f32[2,1,96], index: 10, kind: input, shape index: {}]
  %s11 = inlined_call_operand.vmem [shape: f32[2,32,32], index: 11, kind: input, shape index: {}]
  %s12 = inlined_call_operand.hbm [shape: f32[2,1,32], index: 12, kind: input, shape index: {}]
  %s13 = inlined_call_operand.hbm [shape: f32[2,1,32], index: 13, kind: input, shape index: {}]
  %s14 = inlined_call_operand.hbm [shape: f32[2,1,32], index: 14, kind: input, shape index: {}]
  %s15 = inlined_call_operand.hbm [shape: f32[2,32,64], index: 15, kind: input, shape index: {}]
  %s16 = inlined_call_operand.hbm [shape: f32[2,1,64], index: 16, kind: input, shape index: {}]
  %s17 = inlined_call_operand.vmem [shape: f32[2,64,32], index: 17, kind: input, shape index: {}]
  %s18 = inlined_call_operand.hbm [shape: f32[2,1,32], index: 18, kind: input, shape index: {}]
  %s19 = inlined_call_operand.hbm [shape: f32[1,32], index: 19, kind: input, shape index: {}]
  %s20 = inlined_call_operand.hbm [shape: f32[1,32], index: 20, kind: input, shape index: {}]
  %s21 = inlined_call_operand.vmem [shape: f32[32,128], index: 21, kind: input, shape index: {}]
  %s22 = inlined_call_operand.hbm [shape: f32[1,128], index: 22, kind: input, shape index: {}]
  %s23 = inlined_call_operand.vmem [shape: f32[8,128], index: 23, kind: output, shape index: {}]
  %s24 = sld [smem:[#allocation0]]
  $region154: #{qc_whisper_encoder.1} parent=0
    _
  %s26 = ssub.s32 1, %s24
  %s27 = scalar_select 0, %s26, %s24
  $region1: #{qc_whisper_encoder.1} parent=0
    #allocation2 [shape = 'u8[12288]{0}', space=vmem, size = 0x3000, scoped, tag = 'input window, operand 2, single buffered']
    #allocation3 [shape = 's32[1]{0}', space=sflag, size = 0x4, scoped, tag = 'scoped memory for qc_whisper_encoder.1']
    #allocation4 [shape = 'u8[512]{0}', space=vmem, size = 0x400, scoped, tag = 'input window, operand 5, single buffered']
    #allocation5 [shape = 's32[1]{0}', space=sflag, size = 0x4, scoped, tag = 'scoped memory for qc_whisper_encoder.1']
    #allocation6 [shape = 'u8[1024]{0}', space=vmem, size = 0x400, scoped, tag = 'input window, operand 8, single buffered']
    #allocation7 [shape = 'u8[1024]{0}', space=vmem, size = 0x400, scoped, tag = 'input window, operand 10, single buffered']
    #allocation8 [shape = 's32[1]{0}', space=sflag, size = 0x4, scoped, tag = 'scoped memory for qc_whisper_encoder.1']
    #allocation9 [shape = 'u8[1024]{0}', space=vmem, size = 0x400, scoped, tag = 'input window, operand 12, single buffered']
    #allocation10 [shape = 'u8[1024]{0}', space=vmem, size = 0x400, scoped, tag = 'input window, operand 13, single buffered']
    #allocation11 [shape = 's32[1]{0}', space=sflag, size = 0x4, scoped, tag = 'scoped memory for qc_whisper_encoder.1']
    #allocation12 [shape = 'u8[1024]{0}', space=vmem, size = 0x400, scoped, tag = 'input window, operand 14, single buffered']
    #allocation13 [shape = 'u8[32768]{0}', space=vmem, size = 0x8000, scoped, tag = 'input window, operand 15, single buffered']
    #allocation14 [shape = 's32[1]{0}', space=sflag, size = 0x4, scoped, tag = 'scoped memory for qc_whisper_encoder.1']
    #allocation15 [shape = 'u8[1024]{0}', space=vmem, size = 0x400, scoped, tag = 'input window, operand 16, single buffered']
    #allocation16 [shape = 'u8[1024]{0}', space=vmem, size = 0x400, scoped, tag = 'input window, operand 18, single buffered']
    #allocation17 [shape = 's32[1]{0}', space=sflag, size = 0x4, scoped, tag = 'scoped memory for qc_whisper_encoder.1']
    #allocation18 [shape = 'u8[512]{0}', space=vmem, size = 0x400, scoped, tag = 'input window, operand 19, single buffered']
    #allocation19 [shape = 'u8[512]{0}', space=vmem, size = 0x400, scoped, tag = 'input window, operand 20, single buffered']
    #allocation20 [shape = 's32[1]{0}', space=sflag, size = 0x4, scoped, tag = 'scoped memory for qc_whisper_encoder.1']
    #allocation21 [shape = 'u8[512]{0}', space=vmem, size = 0x400, scoped, tag = 'input window, operand 22, single buffered']
    %28 = vsyncpa [#allocation3], 0
    %29 = vsyncpa [#allocation5], 0
    %30 = vsyncpa [#allocation8], 0
    %31 = vsyncpa [#allocation11], 0
    %32 = vsyncpa [#allocation14], 0
    %33 = vsyncpa [#allocation17], 0
    %34 = vsyncpa [#allocation20], 0
    // Predicated region
    $region2: #{qc_whisper_encoder.1} parent=1 // pred_check
      _
    $region3: #{qc_whisper_encoder.1} parent=1 // pred_check_branch
      %36 = sbr.rel (0) target = $region5
    $region4: #{qc_whisper_encoder.1} parent=1 // pred_region
      _
    $region5: #{qc_whisper_encoder.1} parent=1 // pred_fallthru
      _
    // Predicated region
    $region6: #{qc_whisper_encoder.1} parent=1 // pred_check
      _
    $region7: #{qc_whisper_encoder.1} parent=1 // pred_check_branch
      %38 = sbr.rel (0) target = $region9
    $region8: #{qc_whisper_encoder.1} parent=1 // pred_region
      _
    $region9: #{qc_whisper_encoder.1} parent=1 // pred_fallthru
      _
    // Predicated region
    $region10: #{qc_whisper_encoder.1} parent=1 // pred_check
      _
    $region11: #{qc_whisper_encoder.1} parent=1 // pred_check_branch
      %40 = sbr.rel (0) target = $region13
    $region12: #{qc_whisper_encoder.1} parent=1 // pred_region
      %42 = vsyncadd [#allocation3], 0
      %s43 = sshll.u32 %s2, 4
      %s44 = int_to_ptr.hbm [resolvable:$true] %s43
      %s45 = sshll.u32 [#allocation2], 4
      %s46 = int_to_ptr.vmem [resolvable:$true] %s45
      %51 = dma.hbm_to_vmem [thread:$0]  %s44, 384, %s46, [#allocation3], 128, 128, 8
    $region13: #{qc_whisper_encoder.1} parent=1 // pred_fallthru
      _
    // Predicated region
    $region14: #{qc_whisper_encoder.1} parent=1 // pred_check
      _
    $region15: #{qc_whisper_encoder.1} parent=1 // pred_check_branch
      %53 = sbr.rel (0) target = $region17
    $region16: #{qc_whisper_encoder.1} parent=1 // pred_region
      _
    $region17: #{qc_whisper_encoder.1} parent=1 // pred_fallthru
      _
    // Predicated region
    $region18: #{qc_whisper_encoder.1} parent=1 // pred_check
      _
    $region19: #{qc_whisper_encoder.1} parent=1 // pred_check_branch
      %55 = sbr.rel (0) target = $region21
    $region20: #{qc_whisper_encoder.1} parent=1 // pred_region
      _
    $region21: #{qc_whisper_encoder.1} parent=1 // pred_fallthru
      _
    // Predicated region
    $region22: #{qc_whisper_encoder.1} parent=1 // pred_check
      _
    $region23: #{qc_whisper_encoder.1} parent=1 // pred_check_branch
      %57 = sbr.rel (0) target = $region25
    $region24: #{qc_whisper_encoder.1} parent=1 // pred_region
      %59 = vsyncadd [#allocation5], 0
      %s61 = sshll.u32 %s5, 4
      %s62 = int_to_ptr.hbm [resolvable:$true] %s61
      %s63 = sshll.u32 [#allocation4], 4
      %s64 = int_to_ptr.vmem [resolvable:$true] %s63
      %66 = dma.hbm_to_vmem [thread:$0]  %s62, 16, %s64, [#allocation5]
    $region25: #{qc_whisper_encoder.1} parent=1 // pred_fallthru
      _
    // Predicated region
    $region26: #{qc_whisper_encoder.1} parent=1 // pred_check
      _
    $region27: #{qc_whisper_encoder.1} parent=1 // pred_check_branch
      %68 = sbr.rel (0) target = $region29
    $region28: #{qc_whisper_encoder.1} parent=1 // pred_region
      _
    $region29: #{qc_whisper_encoder.1} parent=1 // pred_fallthru
      _
    // Predicated region
    $region30: #{qc_whisper_encoder.1} parent=1 // pred_check
      _
    $region31: #{qc_whisper_encoder.1} parent=1 // pred_check_branch
      %70 = sbr.rel (0) target = $region33
    $region32: #{qc_whisper_encoder.1} parent=1 // pred_region
      _
    $region33: #{qc_whisper_encoder.1} parent=1 // pred_fallthru
      _
    // Predicated region
    $region34: #{qc_whisper_encoder.1} parent=1 // pred_check
      _
    $region35: #{qc_whisper_encoder.1} parent=1 // pred_check_branch
      %72 = sbr.rel (0) target = $region37
    $region36: #{qc_whisper_encoder.1} parent=1 // pred_region
      %74 = vsyncadd [#allocation5], 0
      %s75 = sshll.u32 %s8, 4
      %s76 = int_to_ptr.hbm [resolvable:$true] %s75
      %s77 = sshll.u32 [#allocation6], 4
      %s78 = int_to_ptr.vmem [resolvable:$true] %s77
      %83 = dma.hbm_to_vmem [thread:$0]  %s76, 32, %s78, [#allocation5], 16, 16, 1
    $region37: #{qc_whisper_encoder.1} parent=1 // pred_fallthru
      _
    // Predicated region
    $region38: #{qc_whisper_encoder.1} parent=1 // pred_check
      _
    $region39: #{qc_whisper_encoder.1} parent=1 // pred_check_branch
      %85 = sbr.rel (0) target = $region41
    $region40: #{qc_whisper_encoder.1} parent=1 // pred_region
      _
    $region41: #{qc_whisper_encoder.1} parent=1 // pred_fallthru
      _
    // Predicated region
    $region42: #{qc_whisper_encoder.1} parent=1 // pred_check
      _
    $region43: #{qc_whisper_encoder.1} parent=1 // pred_check_branch
      %87 = sbr.rel (0) target = $region45
    $region44: #{qc_whisper_encoder.1} parent=1 // pred_region
      %89 = vsyncadd [#allocation8], 0
      %s90 = sshll.u32 %s10, 4
      %s91 = int_to_ptr.hbm [resolvable:$true] %s90
      %s92 = sshll.u32 [#allocation7], 4
      %s93 = int_to_ptr.vmem [resolvable:$true] %s92
      %98 = dma.hbm_to_vmem [thread:$0]  %s91, 32, %s93, [#allocation8], 16, 16, 1
    $region45: #{qc_whisper_encoder.1} parent=1 // pred_fallthru
      _
    // Predicated region
    $region46: #{qc_whisper_encoder.1} parent=1 // pred_check
      _
    $region47: #{qc_whisper_encoder.1} parent=1 // pred_check_branch
      %100 = sbr.rel (0) target = $region49
    $region48: #{qc_whisper_encoder.1} parent=1 // pred_region
      _
    $region49: #{qc_whisper_encoder.1} parent=1 // pred_fallthru
      _
    // Predicated region
    $region50: #{qc_whisper_encoder.1} parent=1 // pred_check
      _
    $region51: #{qc_whisper_encoder.1} parent=1 // pred_check_branch
      %102 = sbr.rel (0) target = $region53
    $region52: #{qc_whisper_encoder.1} parent=1 // pred_region
      %104 = vsyncadd [#allocation8], 0
      %s105 = sshll.u32 %s12, 4
      %s106 = int_to_ptr.hbm [resolvable:$true] %s105
      %s107 = sshll.u32 [#allocation9], 4
      %s108 = int_to_ptr.vmem [resolvable:$true] %s107
      %113 = dma.hbm_to_vmem [thread:$0]  %s106, 32, %s108, [#allocation8], 16, 16, 1
    $region53: #{qc_whisper_encoder.1} parent=1 // pred_fallthru
      _
    // Predicated region
    $region54: #{qc_whisper_encoder.1} parent=1 // pred_check
      _
    $region55: #{qc_whisper_encoder.1} parent=1 // pred_check_branch
      %115 = sbr.rel (0) target = $region57
    $region56: #{qc_whisper_encoder.1} parent=1 // pred_region
      %117 = vsyncadd [#allocation11], 0
      %s118 = sshll.u32 %s13, 4
      %s119 = int_to_ptr.hbm [resolvable:$true] %s118
      %s120 = sshll.u32 [#allocation10], 4
      %s121 = int_to_ptr.vmem [resolvable:$true] %s120
      %126 = dma.hbm_to_vmem [thread:$0]  %s119, 32, %s121, [#allocation11], 16, 16, 1
    $region57: #{qc_whisper_encoder.1} parent=1 // pred_fallthru
      _
    // Predicated region
    $region58: #{qc_whisper_encoder.1} parent=1 // pred_check
      _
    $region59: #{qc_whisper_encoder.1} parent=1 // pred_check_branch
      %128 = sbr.rel (0) target = $region61
    $region60: #{qc_whisper_encoder.1} parent=1 // pred_region
      %130 = vsyncadd [#allocation11], 0
      %s131 = sshll.u32 %s14, 4
      %s132 = int_to_ptr.hbm [resolvable:$true] %s131
      %s133 = sshll.u32 [#allocation12], 4
      %s134 = int_to_ptr.vmem [resolvable:$true] %s133
      %139 = dma.hbm_to_vmem [thread:$0]  %s132, 32, %s134, [#allocation11], 16, 16, 1
    $region61: #{qc_whisper_encoder.1} parent=1 // pred_fallthru
      _
    // Predicated region
    $region62: #{qc_whisper_encoder.1} parent=1 // pred_check
      _
    $region63: #{qc_whisper_encoder.1} parent=1 // pred_check_branch
      %141 = sbr.rel (0) target = $region65
    $region64: #{qc_whisper_encoder.1} parent=1 // pred_region
      %143 = vsyncadd [#allocation14], 0
      %s144 = sshll.u32 %s15, 4
      %s145 = int_to_ptr.hbm [resolvable:$true] %s144
      %s146 = sshll.u32 [#allocation13], 4
      %s147 = int_to_ptr.vmem [resolvable:$true] %s146
      %152 = dma.hbm_to_vmem [thread:$0]  %s145, 1024, %s147, [#allocation14], 128, 128, 8
    $region65: #{qc_whisper_encoder.1} parent=1 // pred_fallthru
      _
    // Predicated region
    $region66: #{qc_whisper_encoder.1} parent=1 // pred_check
      _
    $region67: #{qc_whisper_encoder.1} parent=1 // pred_check_branch
      %154 = sbr.rel (0) target = $region69
    $region68: #{qc_whisper_encoder.1} parent=1 // pred_region
      %156 = vsyncadd [#allocation14], 0
      %s157 = sshll.u32 %s16, 4
      %s158 = int_to_ptr.hbm [resolvable:$true] %s157
      %s159 = sshll.u32 [#allocation15], 4
      %s160 = int_to_ptr.vmem [resolvable:$true] %s159
      %165 = dma.hbm_to_vmem [thread:$0]  %s158, 32, %s160, [#allocation14], 16, 16, 1
    $region69: #{qc_whisper_encoder.1} parent=1 // pred_fallthru
      _
    // Predicated region
    $region70: #{qc_whisper_encoder.1} parent=1 // pred_check
      _
    $region71: #{qc_whisper_encoder.1} parent=1 // pred_check_branch
      %167 = sbr.rel (0) target = $region73
    $region72: #{qc_whisper_encoder.1} parent=1 // pred_region
      _
    $region73: #{qc_whisper_encoder.1} parent=1 // pred_fallthru
      _
    // Predicated region
    $region74: #{qc_whisper_encoder.1} parent=1 // pred_check
      _
    $region75: #{qc_whisper_encoder.1} parent=1 // pred_check_branch
      %169 = sbr.rel (0) target = $region77
    $region76: #{qc_whisper_encoder.1} parent=1 // pred_region
      %171 = vsyncadd [#allocation17], 0
      %s172 = sshll.u32 %s18, 4
      %s173 = int_to_ptr.hbm [resolvable:$true] %s172
      %s174 = sshll.u32 [#allocation16], 4
      %s175 = int_to_ptr.vmem [resolvable:$true] %s174
      %180 = dma.hbm_to_vmem [thread:$0]  %s173, 32, %s175, [#allocation17], 16, 16, 1
    $region77: #{qc_whisper_encoder.1} parent=1 // pred_fallthru
      _
    // Predicated region
    $region78: #{qc_whisper_encoder.1} parent=1 // pred_check
      _
    $region79: #{qc_whisper_encoder.1} parent=1 // pred_check_branch
      %182 = sbr.rel (0) target = $region81
    $region80: #{qc_whisper_encoder.1} parent=1 // pred_region
      %184 = vsyncadd [#allocation17], 0
      %s186 = sshll.u32 %s19, 4
      %s187 = int_to_ptr.hbm [resolvable:$true] %s186
      %s188 = sshll.u32 [#allocation18], 4
      %s189 = int_to_ptr.vmem [resolvable:$true] %s188
      %191 = dma.hbm_to_vmem [thread:$0]  %s187, 16, %s189, [#allocation17]
    $region81: #{qc_whisper_encoder.1} parent=1 // pred_fallthru
      _
    // Predicated region
    $region82: #{qc_whisper_encoder.1} parent=1 // pred_check
      _
    $region83: #{qc_whisper_encoder.1} parent=1 // pred_check_branch
      %193 = sbr.rel (0) target = $region85
    $region84: #{qc_whisper_encoder.1} parent=1 // pred_region
      %195 = vsyncadd [#allocation20], 0
      %s197 = sshll.u32 %s20, 4
      %s198 = int_to_ptr.hbm [resolvable:$true] %s197
      %s199 = sshll.u32 [#allocation19], 4
      %s200 = int_to_ptr.vmem [resolvable:$true] %s199
      %202 = dma.hbm_to_vmem [thread:$0]  %s198, 16, %s200, [#allocation20]
    $region85: #{qc_whisper_encoder.1} parent=1 // pred_fallthru
      _
    // Predicated region
    $region86: #{qc_whisper_encoder.1} parent=1 // pred_check
      _
    $region87: #{qc_whisper_encoder.1} parent=1 // pred_check_branch
      %204 = sbr.rel (0) target = $region89
    $region88: #{qc_whisper_encoder.1} parent=1 // pred_region
      _
    $region89: #{qc_whisper_encoder.1} parent=1 // pred_fallthru
      _
    // Predicated region
    $region90: #{qc_whisper_encoder.1} parent=1 // pred_check
      _
    $region91: #{qc_whisper_encoder.1} parent=1 // pred_check_branch
      %206 = sbr.rel (0) target = $region93
    $region92: #{qc_whisper_encoder.1} parent=1 // pred_region
      %208 = vsyncadd [#allocation20], 0
      %s210 = sshll.u32 %s22, 4
      %s211 = int_to_ptr.hbm [resolvable:$true] %s210
      %s212 = sshll.u32 [#allocation21], 4
      %s213 = int_to_ptr.vmem [resolvable:$true] %s212
      %215 = dma.hbm_to_vmem [thread:$0]  %s211, 16, %s213, [#allocation20]
    $region93: #{qc_whisper_encoder.1} parent=1 // pred_fallthru
      _
    // Predicated region
    $region94: #{qc_whisper_encoder.1} parent=1 // pred_check
      _
    $region95: #{qc_whisper_encoder.1} parent=1 // pred_check_branch
      %217 = sbr.rel (0) target = $region97
    $region96: #{qc_whisper_encoder.1} parent=1 // pred_region
      %219 = dma.done [#allocation3], 384
    $region97: #{qc_whisper_encoder.1} parent=1 // pred_fallthru
      _
    // Predicated region
    $region98: #{qc_whisper_encoder.1} parent=1 // pred_check
      _
    $region99: #{qc_whisper_encoder.1} parent=1 // pred_check_branch
      %221 = sbr.rel (0) target = $region101
    $region100: #{qc_whisper_encoder.1} parent=1 // pred_region
      %223 = dma.done [#allocation5], 16
    $region101: #{qc_whisper_encoder.1} parent=1 // pred_fallthru
      _
    // Predicated region
    $region102: #{qc_whisper_encoder.1} parent=1 // pred_check
      _
    $region103: #{qc_whisper_encoder.1} parent=1 // pred_check_branch
      %225 = sbr.rel (0) target = $region105
    $region104: #{qc_whisper_encoder.1} parent=1 // pred_region
      %227 = dma.done [#allocation5], 32
    $region105: #{qc_whisper_encoder.1} parent=1 // pred_fallthru
      _
    // Predicated region
    $region106: #{qc_whisper_encoder.1} parent=1 // pred_check
      _
    $region107: #{qc_whisper_encoder.1} parent=1 // pred_check_branch
      %229 = sbr.rel (0) target = $region109
    $region108: #{qc_whisper_encoder.1} parent=1 // pred_region
      %231 = dma.done [#allocation8], 32
    $region109: #{qc_whisper_encoder.1} parent=1 // pred_fallthru
      _
    // Predicated region
    $region110: #{qc_whisper_encoder.1} parent=1 // pred_check
      _
    $region111: #{qc_whisper_encoder.1} parent=1 // pred_check_branch
      %233 = sbr.rel (0) target = $region113
    $region112: #{qc_whisper_encoder.1} parent=1 // pred_region
      %235 = dma.done [#allocation8], 32
    $region113: #{qc_whisper_encoder.1} parent=1 // pred_fallthru
      _
    // Predicated region
    $region114: #{qc_whisper_encoder.1} parent=1 // pred_check
      _
    $region115: #{qc_whisper_encoder.1} parent=1 // pred_check_branch
      %237 = sbr.rel (0) target = $region117
    $region116: #{qc_whisper_encoder.1} parent=1 // pred_region
      %239 = dma.done [#allocation11], 32
    $region117: #{qc_whisper_encoder.1} parent=1 // pred_fallthru
      _
    // Predicated region
    $region118: #{qc_whisper_encoder.1} parent=1 // pred_check
      _
    $region119: #{qc_whisper_encoder.1} parent=1 // pred_check_branch
      %241 = sbr.rel (0) target = $region121
    $region120: #{qc_whisper_encoder.1} parent=1 // pred_region
      %243 = dma.done [#allocation11], 32
    $region121: #{qc_whisper_encoder.1} parent=1 // pred_fallthru
      _
    // Predicated region
    $region122: #{qc_whisper_encoder.1} parent=1 // pred_check
      _
    $region123: #{qc_whisper_encoder.1} parent=1 // pred_check_branch
      %245 = sbr.rel (0) target = $region125
    $region124: #{qc_whisper_encoder.1} parent=1 // pred_region
      %247 = dma.done [#allocation14], 1024
    $region125: #{qc_whisper_encoder.1} parent=1 // pred_fallthru
      _
    // Predicated region
    $region126: #{qc_whisper_encoder.1} parent=1 // pred_check
      _
    $region127: #{qc_whisper_encoder.1} parent=1 // pred_check_branch
      %249 = sbr.rel (0) target = $region129
    $region128: #{qc_whisper_encoder.1} parent=1 // pred_region
      %251 = dma.done [#allocation14], 32
    $region129: #{qc_whisper_encoder.1} parent=1 // pred_fallthru
      _
    // Predicated region
    $region130: #{qc_whisper_encoder.1} parent=1 // pred_check
      _
    $region131: #{qc_whisper_encoder.1} parent=1 // pred_check_branch
      %253 = sbr.rel (0) target = $region133
    $region132: #{qc_whisper_encoder.1} parent=1 // pred_region
      %255 = dma.done [#allocation17], 32
    $region133: #{qc_whisper_encoder.1} parent=1 // pred_fallthru
      _
    // Predicated region
    $region134: #{qc_whisper_encoder.1} parent=1 // pred_check
      _
    $region135: #{qc_whisper_encoder.1} parent=1 // pred_check_branch
      %257 = sbr.rel (0) target = $region137
    $region136: #{qc_whisper_encoder.1} parent=1 // pred_region
      %259 = dma.done [#allocation17], 16
    $region137: #{qc_whisper_encoder.1} parent=1 // pred_fallthru
      _
    // Predicated region
    $region138: #{qc_whisper_encoder.1} parent=1 // pred_check
      _
    $region139: #{qc_whisper_encoder.1} parent=1 // pred_check_branch
      %261 = sbr.rel (0) target = $region141
    $region140: #{qc_whisper_encoder.1} parent=1 // pred_region
      %263 = dma.done [#allocation20], 16
    $region141: #{qc_whisper_encoder.1} parent=1 // pred_fallthru
      _
    // Predicated region
    $region142: #{qc_whisper_encoder.1} parent=1 // pred_check
      _
    $region143: #{qc_whisper_encoder.1} parent=1 // pred_check_branch
      %265 = sbr.rel (0) target = $region145
    $region144: #{qc_whisper_encoder.1} parent=1 // pred_region
      %267 = dma.done [#allocation20], 16
    $region145: #{qc_whisper_encoder.1} parent=1 // pred_fallthru
      _
    %v268 = vld [vmem:[#allocation2] sm:$0xff]
    %v269 = vld [vmem:[#allocation2 + $0x8] sm:$0xff]
    %v270 = vld [vmem:[#allocation2 + $0x10] sm:$0xff]
    %v271 = vld [vmem:[%s3] sm:$0x1]
    %v272 = vld [vmem:[%s0] sm:$0xff]
    %v274 = vperm.slane %v271, 0
    %vm276 = vcmask 195584
    %v278 = vsel %vm276, %v272, 0
    %280 = vmatpush.msra.mxu0 0.0
    %281 = vmatpush.msra.mxu0 0.0
    %282 = vmatpush.msra.mxu0 0.0
    %283 = vmatpush.msra.mxu0 0.0
    %284 = vmatpush.msra.mxu0 0.0
    %285 = vmatpush.msra.mxu0 0.0
    %286 = vmatpush.msra.mxu0 0.0
    %287 = vmatpush.msra.mxu0 0.0
    %288 = vmatpush.msra.mxu0 0.0
    %289 = vmatpush.msra.mxu0 0.0
    %290 = vmatpush.msra.mxu0 0.0
    %291 = vmatpush.msra.mxu0 0.0
    %292 = vmatpush.msra.mxu0 0.0
    %293 = vmatpush.msra.mxu0 %v270
    %294 = vmatpush.msra.mxu0 %v269
    %295 = vmatpush.msra.mxu0 %v268
    %296 = vmatmul.f32.gmra.mxu0 %v278
    %v297 = vpop.f32.mrf.mxu0
    %v298 = vadd.f32 %v274, %v297
    %299 = vdwg.mxu0
    %v300 = vmul.f32 %v298, 0.5
    %v301 = vrcp.pop 1.4142135
    %v302 = vmul.f32 1.4142135, %v301
    %v303 = vsub.f32 1.0, %v302
    %v304 = vmul.f32 %v301, %v303
    %v305 = vadd.f32 %v301, %v304
    %vm306 = vweird.f32 %v301
    %v307 = vsel %vm306, %v301, %v305
    %v308 = vmul.f32 %v298, %v307
    %v309 = vmul.f32 %v308, %v308
    %v310 = vmin.f32 16.0, %v309
    %v311 = vmul.f32 %v310, 2.1237322e-06
    %v312 = vadd.f32 %v311, 0.00028619796
    %v313 = vmul.f32 %v310, %v312
    %v314 = vadd.f32 %v313, 0.0036580483
    %v315 = vmul.f32 %v310, %v314
    %v316 = vadd.f32 %v315, 0.05243302
    %v317 = vmul.f32 %v310, %v316
    %v318 = vadd.f32 %v317, 0.18741608
    %v319 = vmul.f32 %v310, %v318
    %v320 = vadd.f32 %v319, 1.1283791
    %v321 = vmul.f32 %v308, %v320
    %v322 = vmul.f32 %v310, 3.8918573e-05
    %v323 = vadd.f32 %v322, 0.001143296
    %v324 = vmul.f32 %v310, %v323
    %v325 = vadd.f32 %v324, 0.014752088
    %v326 = vmul.f32 %v310, %v325
    %v327 = vadd.f32 %v326, 0.112945676
    %v328 = vmul.f32 %v310, %v327
    %v329 = vadd.f32 %v328, 0.4994258
    %v330 = vmul.f32 %v310, %v329
    %v331 = vadd.f32 %v330, 1.0
    %v332 = vrcp.pop %v331
    %v333 = vmul.f32 %v331, %v332
    %v334 = vsub.f32 1.0, %v333
    %v335 = vmul.f32 %v332, %v334
    %v336 = vadd.f32 %v332, %v335
    %vm337 = vweird.f32 %v331
    %vm338 = vweird.f32 %v332
    %vm339 = vmor %vm337, %vm338
    %v340 = vsel %vm339, %v332, %v336
    %v341 = vand.u32 2147483647, %v331
    %vm342 = vcmp.eq.f32.partialorder %v341, 8.507059e+37
    %v343 = vand.u32 %v331, 2147483648
    %v344 = vor.u32 1.1754944e-38, %v343
    %v345 = vsel %vm342, %v344, %v340
    %v346 = vmul.f32 %v321, %v345
    %v347 = vmin.f32 %v346, 1.0
    %v348 = vmax.f32 %v347, -1.0
    %v349 = vadd.f32 %v348, 1.0
    %v350 = vmul.f32 %v300, %v349
    %v351 = vld [vmem:[%s1] sm:$0xff]
    %v353 = vsel %vm276, %v351, 0
    %355 = vmatpush.msra.mxu0 0.0
    %356 = vmatpush.msra.mxu0 0.0
    %357 = vmatpush.msra.mxu0 0.0
    %358 = vmatpush.msra.mxu0 0.0
    %359 = vmatpush.msra.mxu0 0.0
    %360 = vmatpush.msra.mxu0 0.0
    %361 = vmatpush.msra.mxu0 0.0
    %362 = vmatpush.msra.mxu0 0.0
    %363 = vmatpush.msra.mxu0 0.0
    %364 = vmatpush.msra.mxu0 0.0
    %365 = vmatpush.msra.mxu0 0.0
    %366 = vmatpush.msra.mxu0 0.0
    %367 = vmatpush.msra.mxu0 0.0
    %368 = vmatpush.msra.mxu0 %v270
    %369 = vmatpush.msra.mxu0 %v269
    %370 = vmatpush.msra.mxu0 %v268
    %371 = vmatmul.f32.gmra.mxu0 %v353
    %v372 = vpop.f32.mrf.mxu0
    %v373 = vadd.f32 %v274, %v372
    %374 = vdwg.mxu0
    %v375 = vmul.f32 %v373, 0.5
    %v376 = vmul.f32 %v373, %v307
    %v377 = vmul.f32 %v376, %v376
    %v378 = vmin.f32 16.0, %v377
    %v379 = vmul.f32 %v378, 2.1237322e-06
    %v380 = vadd.f32 %v379, 0.00028619796
    %v381 = vmul.f32 %v378, %v380
    %v382 = vadd.f32 %v381, 0.0036580483
    %v383 = vmul.f32 %v378, %v382
    %v384 = vadd.f32 %v383, 0.05243302
    %v385 = vmul.f32 %v378, %v384
    %v386 = vadd.f32 %v385, 0.18741608
    %v387 = vmul.f32 %v378, %v386
    %v388 = vadd.f32 %v387, 1.1283791
    %v389 = vmul.f32 %v376, %v388
    %v390 = vmul.f32 %v378, 3.8918573e-05
    %v391 = vadd.f32 %v390, 0.001143296
    %v392 = vmul.f32 %v378, %v391
    %v393 = vadd.f32 %v392, 0.014752088
    %v394 = vmul.f32 %v378, %v393
    %v395 = vadd.f32 %v394, 0.112945676
    %v396 = vmul.f32 %v378, %v395
    %v397 = vadd.f32 %v396, 0.4994258
    %v398 = vmul.f32 %v378, %v397
    %v399 = vadd.f32 %v398, 1.0
    %v400 = vrcp.pop %v399
    %v401 = vmul.f32 %v399, %v400
    %v402 = vsub.f32 1.0, %v401
    %v403 = vmul.f32 %v400, %v402
    %v404 = vadd.f32 %v400, %v403
    %vm405 = vweird.f32 %v399
    %vm406 = vweird.f32 %v400
    %vm407 = vmor %vm405, %vm406
    %v408 = vsel %vm407, %v400, %v404
    %v409 = vand.u32 2147483647, %v399
    %vm410 = vcmp.eq.f32.partialorder %v409, 8.507059e+37
    %v411 = vand.u32 %v399, 2147483648
    %v412 = vor.u32 1.1754944e-38, %v411
    %v413 = vsel %vm410, %v412, %v408
    %v414 = vmul.f32 %v389, %v413
    %v415 = vmin.f32 %v414, 1.0
    %v416 = vmax.f32 %v415, -1.0
    %v417 = vadd.f32 %v416, 1.0
    %v418 = vmul.f32 %v375, %v417
    %v419 = vlaneseq
    %v420 = vshrl.u32 %v419, 7
    %vm421 = vcmp.eq.s32.totalorder %v420, 0
    %v422 = vrot.slane %v418, 7
    %v423 = vsel %vm421, 0.0, %v422
    %v424 = vld [vmem:[%s4] sm:$0xff]
    %v425 = vld [vmem:[%s4 + $0x8] sm:$0xff]
    %v426 = vld [vmem:[%s4 + $0x10] sm:$0xff]
    %v427 = vld [vmem:[%s4 + $0x18] sm:$0xff]
    %s428 = scalar_lea.vmem %s4, 32
    %v429 = vld [vmem:[%s428] sm:$0xff]
    %v430 = vld [vmem:[%s428 + $0x8] sm:$0xff]
    %v431 = vld [vmem:[%s428 + $0x10] sm:$0xff]
    %v432 = vld [vmem:[%s428 + $0x18] sm:$0xff]
    %vm433 = vcmask 261120
    %v435 = vsel %vm433, %v350, 0
    %437 = vmatpush.msra.mxu0 0.0
    %438 = vmatpush.msra.mxu0 0.0
    %439 = vmatpush.msra.mxu0 0.0
    %440 = vmatpush.msra.mxu0 0.0
    %441 = vmatpush.msra.mxu0 0.0
    %442 = vmatpush.msra.mxu0 0.0
    %443 = vmatpush.msra.mxu0 0.0
    %444 = vmatpush.msra.mxu0 0.0
    %445 = vmatpush.msra.mxu0 0.0
    %446 = vmatpush.msra.mxu0 0.0
    %447 = vmatpush.msra.mxu0 0.0
    %448 = vmatpush.msra.mxu0 0.0
    %449 = vmatpush.msra.mxu0 %v432
    %450 = vmatpush.msra.mxu0 %v431
    %451 = vmatpush.msra.mxu0 %v430
    %452 = vmatpush.msra.mxu0 %v429
    %453 = vmatmul.f32.gmra.mxu0 %v435
    %v454 = vpop.f32.mrf.mxu0
    %v455 = vadd.f32 0.0, %v454
    %456 = vdwg.mxu0
    %v458 = vsel %vm433, %v423, 0
    %460 = vmatpush.msra.mxu0 0.0
    %461 = vmatpush.msra.mxu0 0.0
    %462 = vmatpush.msra.mxu0 0.0
    %463 = vmatpush.msra.mxu0 0.0
    %464 = vmatpush.msra.mxu0 0.0
    %465 = vmatpush.msra.mxu0 0.0
    %466 = vmatpush.msra.mxu0 0.0
    %467 = vmatpush.msra.mxu0 0.0
    %468 = vmatpush.msra.mxu0 0.0
    %469 = vmatpush.msra.mxu0 0.0
    %470 = vmatpush.msra.mxu0 0.0
    %471 = vmatpush.msra.mxu0 0.0
    %472 = vmatpush.msra.mxu0 %v427
    %473 = vmatpush.msra.mxu0 %v426
    %474 = vmatpush.msra.mxu0 %v425
    %475 = vmatpush.msra.mxu0 %v424
    %476 = vmatmul.f32.gmra.mxu0 %v458
    %v477 = vpop.f32.mrf.mxu0
    %v478 = vadd.f32 %v455, %v477
    %479 = vdwg.mxu0
    %s480 = scalar_lea.vmem %s4, 64
    %v481 = vld [vmem:[%s480] sm:$0xff]
    %v482 = vld [vmem:[%s480 + $0x8] sm:$0xff]
    %v483 = vld [vmem:[%s480 + $0x10] sm:$0xff]
    %v484 = vld [vmem:[%s480 + $0x18] sm:$0xff]
    %v486 = vsel %vm433, %v418, 0
    %488 = vmatpush.msra.mxu0 0.0
    %489 = vmatpush.msra.mxu0 0.0
    %490 = vmatpush.msra.mxu0 0.0
    %491 = vmatpush.msra.mxu0 0.0
    %492 = vmatpush.msra.mxu0 0.0
    %493 = vmatpush.msra.mxu0 0.0
    %494 = vmatpush.msra.mxu0 0.0
    %495 = vmatpush.msra.mxu0 0.0
    %496 = vmatpush.msra.mxu0 0.0
    %497 = vmatpush.msra.mxu0 0.0
    %498 = vmatpush.msra.mxu0 0.0
    %499 = vmatpush.msra.mxu0 0.0
    %500 = vmatpush.msra.mxu0 %v484
    %501 = vmatpush.msra.mxu0 %v483
    %502 = vmatpush.msra.mxu0 %v482
    %503 = vmatpush.msra.mxu0 %v481
    %504 = vmatmul.f32.gmra.mxu0 %v486
    %v505 = vpop.f32.mrf.mxu0
    %v506 = vadd.f32 0.0, %v505
    %507 = vdwg.mxu0
    %v508 = vadd.f32 %v478, %v506
    %v509 = vld [vmem:[#allocation4] sm:$0x1]
    %v511 = vperm.slane %v509, 0
    %v513 = vadd.f32 %v508, %v511
    %v514 = vmul.f32 %v513, 0.5
    %v515 = vmul.f32 %v513, %v307
    %v516 = vmul.f32 %v515, %v515
    %v517 = vmin.f32 16.0, %v516
    %v518 = vmul.f32 %v517, 2.1237322e-06
    %v519 = vadd.f32 %v518, 0.00028619796
    %v520 = vmul.f32 %v517, %v519
    %v521 = vadd.f32 %v520, 0.0036580483
    %v522 = vmul.f32 %v517, %v521
    %v523 = vadd.f32 %v522, 0.05243302
    %v524 = vmul.f32 %v517, %v523
    %v525 = vadd.f32 %v524, 0.18741608
    %v526 = vmul.f32 %v517, %v525
    %v527 = vadd.f32 %v526, 1.1283791
    %v528 = vmul.f32 %v515, %v527
    %v529 = vmul.f32 %v517, 3.8918573e-05
    %v530 = vadd.f32 %v529, 0.001143296
    %v531 = vmul.f32 %v517, %v530
    %v532 = vadd.f32 %v531, 0.014752088
    %v533 = vmul.f32 %v517, %v532
    %v534 = vadd.f32 %v533, 0.112945676
    %v535 = vmul.f32 %v517, %v534
    %v536 = vadd.f32 %v535, 0.4994258
    %v537 = vmul.f32 %v517, %v536
    %v538 = vadd.f32 %v537, 1.0
    %v539 = vrcp.pop %v538
    %v540 = vmul.f32 %v538, %v539
    %v541 = vsub.f32 1.0, %v540
    %v542 = vmul.f32 %v539, %v541
    %v543 = vadd.f32 %v539, %v542
    %vm544 = vweird.f32 %v538
    %vm545 = vweird.f32 %v539
    %vm546 = vmor %vm544, %vm545
    %v547 = vsel %vm546, %v539, %v543
    %v548 = vand.u32 2147483647, %v538
    %vm549 = vcmp.eq.f32.partialorder %v548, 8.507059e+37
    %v550 = vand.u32 %v538, 2147483648
    %v551 = vor.u32 1.1754944e-38, %v550
    %v552 = vsel %vm549, %v551, %v547
    %v553 = vmul.f32 %v528, %v552
    %v554 = vmin.f32 %v553, 1.0
    %v555 = vmax.f32 %v554, -1.0
    %v556 = vadd.f32 %v555, 1.0
    %v557 = vmul.f32 %v514, %v556
    %v558 = vld [vmem:[%s6] sm:$0xff]
    %v559 = vadd.f32 %v557, %v558
    %v560 = vld [vmem:[%s7] sm:$0x1]
    %v561 = vld [vmem:[#allocation6] sm:$0x1]
    %v562 = vsel %vm433, %v559, 0.0
    %563 = vadd.xlane.f32.xlu0 %v562
    %v564 = vpop.xlane.xlu0 %563
    %v565 = vrcp.pop 32.0
    %v566 = vmul.f32 32.0, %v565
    %v567 = vsub.f32 1.0, %v566
    %v568 = vmul.f32 %v565, %v567
    %v569 = vadd.f32 %v565, %v568
    %vm570 = vweird.f32 %v565
    %v571 = vsel %vm570, %v565, %v569
    %v572 = vmul.f32 %v564, %v571
    %v573 = vsub.f32 %v559, %v572
    %v574 = vmul.f32 %v573, %v573
    %v575 = vsel %vm433, %v574, 0.0
    %576 = vadd.xlane.f32.xlu0 %v575
    %v577 = vpop.xlane.xlu0 %576
    %v578 = vmul.f32 %v577, %v571
    %v579 = vadd.f32 %v578, 1e-05
    %v580 = vrsqrt.pop %v579
    %v581 = vmul.f32 %v580, %v579
    %v582 = vmul.f32 %v581, %v580
    %v583 = vmul.f32 0.5, %v582
    %v584 = vsub.f32 1.5, %v583
    %v585 = vmul.f32 %v580, %v584
    %vm586 = vweird.f32 %v579
    %vm587 = vweird.f32 %v580
    %vm588 = vmor %vm586, %vm587
    %v589 = vsel %vm588, %v580, %v585
    %v590 = vmul.f32 %v573, %v589
    %v592 = vperm.slane %v560, 0
    %v594 = vmul.f32 %v590, %v592
    %v596 = vperm.slane %v561, 0
    %v598 = vadd.f32 %v594, %v596
    %v599 = vld [vmem:[%s9] sm:$0xff]
    %v600 = vld [vmem:[%s9 + $0x8] sm:$0xff]
    %v601 = vld [vmem:[%s9 + $0x10] sm:$0xff]
    %v602 = vld [vmem:[%s9 + $0x18] sm:$0xff]
    %v603 = vld [vmem:[#allocation7] sm:$0x1]
    %v605 = vperm.slane %v603, 0
    %v608 = vsel %vm433, %v598, 0
    %610 = vmatpush.msra.mxu0 0.0
    %611 = vmatpush.msra.mxu0 0.0
    %612 = vmatpush.msra.mxu0 0.0
    %613 = vmatpush.msra.mxu0 0.0
    %614 = vmatpush.msra.mxu0 0.0
    %615 = vmatpush.msra.mxu0 0.0
    %616 = vmatpush.msra.mxu0 0.0
    %617 = vmatpush.msra.mxu0 0.0
    %618 = vmatpush.msra.mxu0 0.0
    %619 = vmatpush.msra.mxu0 0.0
    %620 = vmatpush.msra.mxu0 0.0
    %621 = vmatpush.msra.mxu0 0.0
    %622 = vmatpush.msra.mxu0 %v602
    %623 = vmatpush.msra.mxu0 %v601
    %624 = vmatpush.msra.mxu0 %v600
    %625 = vmatpush.msra.mxu0 %v599
    %626 = vmatmul.f32.gmra.mxu0 %v608
    %v627 = vpop.f32.mrf.mxu0
    %v628 = vadd.f32 %v605, %v627
    %629 = vdwg.mxu0
    %631 = vrot.lane.b32.xlu0 %v628, 120
    %v632 = vpop.permute.xlu0 %631
    %634 = vrot.lane.b32.xlu0 %v628, 112
    %v635 = vpop.permute.xlu0 %634
    %637 = vrot.lane.b32.xlu0 %v628, 104
    %v638 = vpop.permute.xlu0 %637
    %v640 = vrot.slane %v635, 4
    %vm641 = vcmask 1047556
    %v642 = vsel %vm641, %v640, %v628
    %v643 = vrot.slane %v628, 4
    %v644 = vsel %vm641, %v635, %v643
    %v646 = vunpack.c.l.s4 1983009808
    %v647 = vunpack.c.0.s8 %v646
    %v648 = vperm.slane %v642, %v647
    %v650 = vunpack.c.l.s4 1983009808
    %v651 = vunpack.c.0.s8 %v650
    %v652 = vperm.slane %v644, %v651
    %v653 = vrot.slane %v638, 4
    %v654 = vsel %vm641, %v653, %v632
    %v655 = vrot.slane %v632, 4
    %v656 = vsel %vm641, %v638, %v655
    %v658 = vunpack.c.l.s4 1983009808
    %v659 = vunpack.c.0.s8 %v658
    %v660 = vperm.slane %v654, %v659
    %v662 = vunpack.c.l.s4 1983009808
    %v663 = vunpack.c.0.s8 %v662
    %v664 = vperm.slane %v656, %v663
    %v665 = vrot.slane %v660, 4
    %v666 = vsel %vm641, %v665, %v648
    %v667 = vrot.slane %v648, 4
    %v668 = vsel %vm641, %v660, %v667
    %v670 = vunpack.c.l.s4 1934713408
    %v671 = vunpack.c.0.s8 %v670
    %v672 = vperm.slane %v666, %v671
    %v674 = vunpack.c.l.s4 1934713408
    %v675 = vunpack.c.0.s8 %v674
    %v676 = vperm.slane %v668, %v675
    %v677 = vrot.slane %v664, 4
    %v678 = vsel %vm641, %v677, %v652
    %v679 = vrot.slane %v652, 4
    %v680 = vsel %vm641, %v664, %v679
    %v682 = vunpack.c.l.s4 1934713408
    %v683 = vunpack.c.0.s8 %v682
    %v684 = vperm.slane %v678, %v683
    %v686 = vunpack.c.l.s4 1934713408
    %v687 = vunpack.c.0.s8 %v686
    %v688 = vperm.slane %v680, %v687
    %v689 = vrot.slane %v672, 4
    %v690 = vsel %vm641, 0.0, %v689
    %v691 = vrot.slane %v676, 4
    %v692 = vsel %vm641, 0.0, %v691
    %v693 = vrot.slane %v684, 4
    %v694 = vsel %vm641, 0.0, %v693
    %v695 = vrot.slane %v688, 4
    %v696 = vsel %vm641, 0.0, %v695
    %v697 = vsel %vm641, %v691, %v672
    %v699 = vunpack.c.l.s4 1983009808
    %v700 = vunpack.c.0.s8 %v699
    %v701 = vperm.slane %v697, %v700
    %v702 = vrot.slane %v692, 4
    %v703 = vsel %vm641, %v702, %v690
    %v705 = vunpack.c.l.s4 1983009808
    %v706 = vunpack.c.0.s8 %v705
    %v707 = vperm.slane %v703, %v706
    %v708 = vsel %vm641, %v695, %v684
    %v710 = vunpack.c.l.s4 1983009808
    %v711 = vunpack.c.0.s8 %v710
    %v712 = vperm.slane %v708, %v711
    %v713 = vrot.slane %v696, 4
    %v714 = vsel %vm641, %v713, %v694
    %v716 = vunpack.c.l.s4 1983009808
    %v717 = vunpack.c.0.s8 %v716
    %v718 = vperm.slane %v714, %v717
    %v719 = vrot.slane %v707, 4
    %v720 = vsel %vm641, %v719, %v701
    %v721 = vrot.slane %v701, 4
    %v722 = vsel %vm641, %v707, %v721
    %v724 = vunpack.c.l.s4 1934713408
    %v725 = vunpack.c.0.s8 %v724
    %v726 = vperm.slane %v720, %v725
    %v728 = vunpack.c.l.s4 1934713408
    %v729 = vunpack.c.0.s8 %v728
    %v730 = vperm.slane %v722, %v729
    %v731 = vrot.slane %v718, 4
    %v732 = vsel %vm641, %v731, %v712
    %v733 = vrot.slane %v712, 4
    %v734 = vsel %vm641, %v718, %v733
    %v736 = vunpack.c.l.s4 1934713408
    %v737 = vunpack.c.0.s8 %v736
    %v738 = vperm.slane %v732, %v737
    %v740 = vunpack.c.l.s4 1934713408
    %v741 = vunpack.c.0.s8 %v740
    %v742 = vperm.slane %v734, %v741
    %v743 = vrot.slane %v738, 4
    %v744 = vsel %vm641, %v743, %v726
    %v745 = vrot.slane %v726, 4
    %v746 = vsel %vm641, %v738, %v745
    %v747 = vrot.slane %v742, 4
    %v748 = vsel %vm641, %v747, %v730
    %v749 = vrot.slane %v730, 4
    %v750 = vsel %vm641, %v742, %v749
    %751 = vrot.lane.b32.xlu0 %v628, 96
    %v752 = vpop.permute.xlu0 %751
    %753 = vrot.lane.b32.xlu0 %v632, 96
    %v754 = vpop.permute.xlu0 %753
    %755 = vrot.lane.b32.xlu0 %v635, 96
    %v756 = vpop.permute.xlu0 %755
    %757 = vrot.lane.b32.xlu0 %v638, 96
    %v758 = vpop.permute.xlu0 %757
    %v763 = vrot.slane %v756, 4
    %v764 = vsel %vm641, %v763, %v752
    %v765 = vrot.slane %v752, 4
    %v766 = vsel %vm641, %v756, %v765
    %v768 = vunpack.c.l.s4 1983009808
    %v769 = vunpack.c.0.s8 %v768
    %v770 = vperm.slane %v764, %v769
    %v772 = vunpack.c.l.s4 1983009808
    %v773 = vunpack.c.0.s8 %v772
    %v774 = vperm.slane %v766, %v773
    %v775 = vrot.slane %v758, 4
    %v776 = vsel %vm641, %v775, %v754
    %v777 = vrot.slane %v754, 4
    %v778 = vsel %vm641, %v758, %v777
    %v780 = vunpack.c.l.s4 1983009808
    %v781 = vunpack.c.0.s8 %v780
    %v782 = vperm.slane %v776, %v781
    %v784 = vunpack.c.l.s4 1983009808
    %v785 = vunpack.c.0.s8 %v784
    %v786 = vperm.slane %v778, %v785
    %v787 = vrot.slane %v782, 4
    %v788 = vsel %vm641, %v787, %v770
    %v789 = vrot.slane %v770, 4
    %v790 = vsel %vm641, %v782, %v789
    %v792 = vunpack.c.l.s4 1934713408
    %v793 = vunpack.c.0.s8 %v792
    %v794 = vperm.slane %v788, %v793
    %v796 = vunpack.c.l.s4 1934713408
    %v797 = vunpack.c.0.s8 %v796
    %v798 = vperm.slane %v790, %v797
    %v799 = vrot.slane %v786, 4
    %v800 = vsel %vm641, %v799, %v774
    %v801 = vrot.slane %v774, 4
    %v802 = vsel %vm641, %v786, %v801
    %v804 = vunpack.c.l.s4 1934713408
    %v805 = vunpack.c.0.s8 %v804
    %v806 = vperm.slane %v800, %v805
    %v808 = vunpack.c.l.s4 1934713408
    %v809 = vunpack.c.0.s8 %v808
    %v810 = vperm.slane %v802, %v809
    %v811 = vrot.slane %v794, 4
    %v812 = vsel %vm641, 0.0, %v811
    %v813 = vrot.slane %v798, 4
    %v814 = vsel %vm641, 0.0, %v813
    %v815 = vrot.slane %v806, 4
    %v816 = vsel %vm641, 0.0, %v815
    %v817 = vrot.slane %v810, 4
    %v818 = vsel %vm641, 0.0, %v817
    %v819 = vsel %vm641, %v813, %v794
    %v821 = vunpack.c.l.s4 1983009808
    %v822 = vunpack.c.0.s8 %v821
    %v823 = vperm.slane %v819, %v822
    %v824 = vrot.slane %v814, 4
    %v825 = vsel %vm641, %v824, %v812
    %v827 = vunpack.c.l.s4 1983009808
    %v828 = vunpack.c.0.s8 %v827
    %v829 = vperm.slane %v825, %v828
    %v830 = vsel %vm641, %v817, %v806
    %v832 = vunpack.c.l.s4 1983009808
    %v833 = vunpack.c.0.s8 %v832
    %v834 = vperm.slane %v830, %v833
    %v835 = vrot.slane %v818, 4
    %v836 = vsel %vm641, %v835, %v816
    %v838 = vunpack.c.l.s4 1983009808
    %v839 = vunpack.c.0.s8 %v838
    %v840 = vperm.slane %v836, %v839
    %v841 = vrot.slane %v829, 4
    %v842 = vsel %vm641, %v841, %v823
    %v843 = vrot.slane %v823, 4
    %v844 = vsel %vm641, %v829, %v843
    %v846 = vunpack.c.l.s4 1934713408
    %v847 = vunpack.c.0.s8 %v846
    %v848 = vperm.slane %v842, %v847
    %v850 = vunpack.c.l.s4 1934713408
    %v851 = vunpack.c.0.s8 %v850
    %v852 = vperm.slane %v844, %v851
    %v853 = vrot.slane %v840, 4
    %v854 = vsel %vm641, %v853, %v834
    %v855 = vrot.slane %v834, 4
    %v856 = vsel %vm641, %v840, %v855
    %v858 = vunpack.c.l.s4 1934713408
    %v859 = vunpack.c.0.s8 %v858
    %v860 = vperm.slane %v854, %v859
    %v862 = vunpack.c.l.s4 1934713408
    %v863 = vunpack.c.0.s8 %v862
    %v864 = vperm.slane %v856, %v863
    %v865 = vrot.slane %v860, 4
    %v866 = vsel %vm641, %v865, %v848
    %v867 = vrot.slane %v848, 4
    %v868 = vsel %vm641, %v860, %v867
    %v869 = vrot.slane %v864, 4
    %v870 = vsel %vm641, %v869, %v852
    %v871 = vrot.slane %v852, 4
    %v872 = vsel %vm641, %v864, %v871
    %873 = vrot.lane.b32.xlu0 %v628, 64
    %v874 = vpop.permute.xlu0 %873
    %875 = vrot.lane.b32.xlu0 %v632, 64
    %v876 = vpop.permute.xlu0 %875
    %877 = vrot.lane.b32.xlu0 %v635, 64
    %v878 = vpop.permute.xlu0 %877
    %879 = vrot.lane.b32.xlu0 %v638, 64
    %v880 = vpop.permute.xlu0 %879
    %v885 = vrot.slane %v878, 4
    %v886 = vsel %vm641, %v885, %v874
    %v887 = vrot.slane %v874, 4
    %v888 = vsel %vm641, %v878, %v887
    %v890 = vunpack.c.l.s4 1983009808
    %v891 = vunpack.c.0.s8 %v890
    %v892 = vperm.slane %v886, %v891
    %v894 = vunpack.c.l.s4 1983009808
    %v895 = vunpack.c.0.s8 %v894
    %v896 = vperm.slane %v888, %v895
    %v897 = vrot.slane %v880, 4
    %v898 = vsel %vm641, %v897, %v876
    %v899 = vrot.slane %v876, 4
    %v900 = vsel %vm641, %v880, %v899
    %v902 = vunpack.c.l.s4 1983009808
    %v903 = vunpack.c.0.s8 %v902
    %v904 = vperm.slane %v898, %v903
    %v906 = vunpack.c.l.s4 1983009808
    %v907 = vunpack.c.0.s8 %v906
    %v908 = vperm.slane %v900, %v907
    %v909 = vrot.slane %v904, 4
    %v910 = vsel %vm641, %v909, %v892
    %v911 = vrot.slane %v892, 4
    %v912 = vsel %vm641, %v904, %v911
    %v914 = vunpack.c.l.s4 1934713408
    %v915 = vunpack.c.0.s8 %v914
    %v916 = vperm.slane %v910, %v915
    %v918 = vunpack.c.l.s4 1934713408
    %v919 = vunpack.c.0.s8 %v918
    %v920 = vperm.slane %v912, %v919
    %v921 = vrot.slane %v908, 4
    %v922 = vsel %vm641, %v921, %v896
    %v923 = vrot.slane %v896, 4
    %v924 = vsel %vm641, %v908, %v923
    %v926 = vunpack.c.l.s4 1934713408
    %v927 = vunpack.c.0.s8 %v926
    %v928 = vperm.slane %v922, %v927
    %v930 = vunpack.c.l.s4 1934713408
    %v931 = vunpack.c.0.s8 %v930
    %v932 = vperm.slane %v924, %v931
    %v933 = vrot.slane %v916, 4
    %v934 = vsel %vm641, 0.0, %v933
    %v935 = vrot.slane %v920, 4
    %v936 = vsel %vm641, 0.0, %v935
    %v937 = vrot.slane %v928, 4
    %v938 = vsel %vm641, 0.0, %v937
    %v939 = vrot.slane %v932, 4
    %v940 = vsel %vm641, 0.0, %v939
    %v941 = vsel %vm641, %v935, %v916
    %v943 = vunpack.c.l.s4 1983009808
    %v944 = vunpack.c.0.s8 %v943
    %v945 = vperm.slane %v941, %v944
    %v946 = vrot.slane %v936, 4
    %v947 = vsel %vm641, %v946, %v934
    %v949 = vunpack.c.l.s4 1983009808
    %v950 = vunpack.c.0.s8 %v949
    %v951 = vperm.slane %v947, %v950
    %v952 = vsel %vm641, %v939, %v928
    %v954 = vunpack.c.l.s4 1983009808
    %v955 = vunpack.c.0.s8 %v954
    %v956 = vperm.slane %v952, %v955
    %v957 = vrot.slane %v940, 4
    %v958 = vsel %vm641, %v957, %v938
    %v960 = vunpack.c.l.s4 1983009808
    %v961 = vunpack.c.0.s8 %v960
    %v962 = vperm.slane %v958, %v961
    %v963 = vrot.slane %v951, 4
    %v964 = vsel %vm641, %v963, %v945
    %v965 = vrot.slane %v945, 4
    %v966 = vsel %vm641, %v951, %v965
    %v968 = vunpack.c.l.s4 1934713408
    %v969 = vunpack.c.0.s8 %v968
    %v970 = vperm.slane %v964, %v969
    %v972 = vunpack.c.l.s4 1934713408
    %v973 = vunpack.c.0.s8 %v972
    %v974 = vperm.slane %v966, %v973
    %v975 = vrot.slane %v962, 4
    %v976 = vsel %vm641, %v975, %v956
    %v977 = vrot.slane %v956, 4
    %v978 = vsel %vm641, %v962, %v977
    %v980 = vunpack.c.l.s4 1934713408
    %v981 = vunpack.c.0.s8 %v980
    %v982 = vperm.slane %v976, %v981
    %v984 = vunpack.c.l.s4 1934713408
    %v985 = vunpack.c.0.s8 %v984
    %v986 = vperm.slane %v978, %v985
    %v987 = vrot.slane %v982, 4
    %v988 = vsel %vm641, %v987, %v970
    %v989 = vrot.slane %v970, 4
    %v990 = vsel %vm641, %v982, %v989
    %v991 = vrot.slane %v986, 4
    %v992 = vsel %vm641, %v991, %v974
    %v993 = vrot.slane %v974, 4
    %v994 = vsel %vm641, %v986, %v993
    %vm995 = vcmask 64512
    %v997 = vsel %vm995, %v744, 0
    %v1000 = vsel %vm995, %v866, 0
    %1002 = vmatpush.xpose.msra.mxu0 0.0
    %1003 = vmatpush.xpose.msra.mxu0 0.0
    %1004 = vmatpush.xpose.msra.mxu0 0.0
    %1005 = vmatpush.xpose.msra.mxu0 0.0
    %1006 = vmatpush.xpose.msra.mxu0 0.0
    %1007 = vmatpush.xpose.msra.mxu0 0.0
    %1008 = vmatpush.xpose.msra.mxu0 0.0
    %1009 = vmatpush.xpose.msra.mxu0 0.0
    %1010 = vmatpush.xpose.msra.mxu0 0.0
    %1011 = vmatpush.xpose.msra.mxu0 0.0
    %1012 = vmatpush.xpose.msra.mxu0 0.0
    %1013 = vmatpush.xpose.msra.mxu0 0.0
    %1014 = vmatpush.xpose.msra.mxu0 0.0
    %1015 = vmatpush.xpose.msra.mxu0 0.0
    %1016 = vmatpush.xpose.msra.mxu0 0.0
    %1017 = vmatpush.xpose.msra.mxu0 %v1000
    %1018 = vmatmul.f32.gmra.mxu0 %v997
    %v1019 = vpop.f32.mrf.mxu0
    %v1020 = vadd.f32 0.0, %v1019
    %1021 = vdwg.mxu0
    %v1023 = vsel %vm995, %v746, 0
    %v1026 = vsel %vm995, %v868, 0
    %1028 = vmatpush.xpose.msra.mxu0 0.0
    %1029 = vmatpush.xpose.msra.mxu0 0.0
    %1030 = vmatpush.xpose.msra.mxu0 0.0
    %1031 = vmatpush.xpose.msra.mxu0 0.0
    %1032 = vmatpush.xpose.msra.mxu0 0.0
    %1033 = vmatpush.xpose.msra.mxu0 0.0
    %1034 = vmatpush.xpose.msra.mxu0 0.0
    %1035 = vmatpush.xpose.msra.mxu0 0.0
    %1036 = vmatpush.xpose.msra.mxu0 0.0
    %1037 = vmatpush.xpose.msra.mxu0 0.0
    %1038 = vmatpush.xpose.msra.mxu0 0.0
    %1039 = vmatpush.xpose.msra.mxu0 0.0
    %1040 = vmatpush.xpose.msra.mxu0 0.0
    %1041 = vmatpush.xpose.msra.mxu0 0.0
    %1042 = vmatpush.xpose.msra.mxu0 0.0
    %1043 = vmatpush.xpose.msra.mxu0 %v1026
    %1044 = vmatmul.f32.gmra.mxu0 %v1023
    %v1045 = vpop.f32.mrf.mxu0
    %v1046 = vadd.f32 0.0, %v1045
    %1047 = vdwg.mxu0
    %v1049 = vsel %vm995, %v748, 0
    %v1052 = vsel %vm995, %v870, 0
    %1054 = vmatpush.xpose.msra.mxu0 0.0
    %1055 = vmatpush.xpose.msra.mxu0 0.0
    %1056 = vmatpush.xpose.msra.mxu0 0.0
    %1057 = vmatpush.xpose.msra.mxu0 0.0
    %1058 = vmatpush.xpose.msra.mxu0 0.0
    %1059 = vmatpush.xpose.msra.mxu0 0.0
    %1060 = vmatpush.xpose.msra.mxu0 0.0
    %1061 = vmatpush.xpose.msra.mxu0 0.0
    %1062 = vmatpush.xpose.msra.mxu0 0.0
    %1063 = vmatpush.xpose.msra.mxu0 0.0
    %1064 = vmatpush.xpose.msra.mxu0 0.0
    %1065 = vmatpush.xpose.msra.mxu0 0.0
    %1066 = vmatpush.xpose.msra.mxu0 0.0
    %1067 = vmatpush.xpose.msra.mxu0 0.0
    %1068 = vmatpush.xpose.msra.mxu0 0.0
    %1069 = vmatpush.xpose.msra.mxu0 %v1052
    %1070 = vmatmul.f32.gmra.mxu0 %v1049
    %v1071 = vpop.f32.mrf.mxu0
    %v1072 = vadd.f32 0.0, %v1071
    %1073 = vdwg.mxu0
    %v1075 = vsel %vm995, %v750, 0
    %v1078 = vsel %vm995, %v872, 0
    %1080 = vmatpush.xpose.msra.mxu0 0.0
    %1081 = vmatpush.xpose.msra.mxu0 0.0
    %1082 = vmatpush.xpose.msra.mxu0 0.0
    %1083 = vmatpush.xpose.msra.mxu0 0.0
    %1084 = vmatpush.xpose.msra.mxu0 0.0
    %1085 = vmatpush.xpose.msra.mxu0 0.0
    %1086 = vmatpush.xpose.msra.mxu0 0.0
    %1087 = vmatpush.xpose.msra.mxu0 0.0
    %1088 = vmatpush.xpose.msra.mxu0 0.0
    %1089 = vmatpush.xpose.msra.mxu0 0.0
    %1090 = vmatpush.xpose.msra.mxu0 0.0
    %1091 = vmatpush.xpose.msra.mxu0 0.0
    %1092 = vmatpush.xpose.msra.mxu0 0.0
    %1093 = vmatpush.xpose.msra.mxu0 0.0
    %1094 = vmatpush.xpose.msra.mxu0 0.0
    %1095 = vmatpush.xpose.msra.mxu0 %v1078
    %1096 = vmatmul.f32.gmra.mxu0 %v1075
    %v1097 = vpop.f32.mrf.mxu0
    %v1098 = vadd.f32 0.0, %v1097
    %1099 = vdwg.mxu0
    %v1100 = vsel %vm995, %v1020, -inf
    %1101 = vmax.xlane.f32.xlu0 %v1100
    %v1102 = vpop.xlane.xlu0 %1101
    %v1103 = vsel %vm995, %v1046, -inf
    %1104 = vmax.xlane.f32.xlu0 %v1103
    %v1105 = vpop.xlane.xlu0 %1104
    %v1106 = vsel %vm995, %v1072, -inf
    %1107 = vmax.xlane.f32.xlu0 %v1106
    %v1108 = vpop.xlane.xlu0 %1107
    %v1109 = vsel %vm995, %v1098, -inf
    %1110 = vmax.xlane.f32.xlu0 %v1109
    %v1111 = vpop.xlane.xlu0 %1110
    %v1112 = vsub.f32 %v1020, %v1102
    %v1113 = vsub.f32 %v1046, %v1105
    %v1114 = vsub.f32 %v1072, %v1108
    %v1115 = vsub.f32 %v1098, %v1111
    %v1116 = vmul.f32 %v1112, 1.442695
    %v1117 = vpow.pop %v1116
    %v1118 = vmul.f32 %v1113, 1.442695
    %v1119 = vpow.pop %v1118
    %v1120 = vmul.f32 %v1114, 1.442695
    %v1121 = vpow.pop %v1120
    %v1122 = vmul.f32 %v1115, 1.442695
    %v1123 = vpow.pop %v1122
    %v1124 = vsel %vm995, %v1117, 0.0
    %1125 = vadd.xlane.f32.xlu0 %v1124
    %v1126 = vpop.xlane.xlu0 %1125
    %v1127 = vsel %vm995, %v1119, 0.0
    %1128 = vadd.xlane.f32.xlu0 %v1127
    %v1129 = vpop.xlane.xlu0 %1128
    %v1130 = vsel %vm995, %v1121, 0.0
    %1131 = vadd.xlane.f32.xlu0 %v1130
    %v1132 = vpop.xlane.xlu0 %1131
    %v1133 = vsel %vm995, %v1123, 0.0
    %1134 = vadd.xlane.f32.xlu0 %v1133
    %v1135 = vpop.xlane.xlu0 %1134
    %v1136 = vrcp.pop %v1126
    %v1137 = vrcp.pop %v1129
    %v1138 = vrcp.pop %v1132
    %v1139 = vrcp.pop %v1135
    %v1140 = vmul.f32 %v1117, %v1136
    %v1141 = vmul.f32 %v1119, %v1137
    %v1142 = vmul.f32 %v1121, %v1138
    %v1143 = vmul.f32 %v1123, %v1139
    %v1145 = vsel %vm995, %v1140, 0
    %1147 = vmatpush.msra.mxu0 0.0
    %1148 = vmatpush.msra.mxu0 0.0
    %1149 = vmatpush.msra.mxu0 0.0
    %1150 = vmatpush.msra.mxu0 0.0
    %1151 = vmatpush.msra.mxu0 0.0
    %1152 = vmatpush.msra.mxu0 0.0
    %1153 = vmatpush.msra.mxu0 0.0
    %1154 = vmatpush.msra.mxu0 0.0
    %1155 = vmatpush.msra.mxu0 0.0
    %1156 = vmatpush.msra.mxu0 0.0
    %1157 = vmatpush.msra.mxu0 0.0
    %1158 = vmatpush.msra.mxu0 0.0
    %1159 = vmatpush.msra.mxu0 0.0
    %1160 = vmatpush.msra.mxu0 0.0
    %1161 = vmatpush.msra.mxu0 0.0
    %1162 = vmatpush.msra.mxu0 %v988
    %1163 = vmatmul.f32.gmra.mxu0 %v1145
    %v1164 = vpop.f32.mrf.mxu0
    %v1165 = vadd.f32 0.0, %v1164
    %1166 = vdwg.mxu0
    %v1168 = vsel %vm995, %v1141, 0
    %1170 = vmatpush.msra.mxu0 0.0
    %1171 = vmatpush.msra.mxu0 0.0
    %1172 = vmatpush.msra.mxu0 0.0
    %1173 = vmatpush.msra.mxu0 0.0
    %1174 = vmatpush.msra.mxu0 0.0
    %1175 = vmatpush.msra.mxu0 0.0
    %1176 = vmatpush.msra.mxu0 0.0
    %1177 = vmatpush.msra.mxu0 0.0
    %1178 = vmatpush.msra.mxu0 0.0
    %1179 = vmatpush.msra.mxu0 0.0
    %1180 = vmatpush.msra.mxu0 0.0
    %1181 = vmatpush.msra.mxu0 0.0
    %1182 = vmatpush.msra.mxu0 0.0
    %1183 = vmatpush.msra.mxu0 0.0
    %1184 = vmatpush.msra.mxu0 0.0
    %1185 = vmatpush.msra.mxu0 %v990
    %1186 = vmatmul.f32.gmra.mxu0 %v1168
    %v1187 = vpop.f32.mrf.mxu0
    %v1188 = vadd.f32 0.0, %v1187
    %1189 = vdwg.mxu0
    %v1191 = vsel %vm995, %v1142, 0
    %1193 = vmatpush.msra.mxu0 0.0
    %1194 = vmatpush.msra.mxu0 0.0
    %1195 = vmatpush.msra.mxu0 0.0
    %1196 = vmatpush.msra.mxu0 0.0
    %1197 = vmatpush.msra.mxu0 0.0
    %1198 = vmatpush.msra.mxu0 0.0
    %1199 = vmatpush.msra.mxu0 0.0
    %1200 = vmatpush.msra.mxu0 0.0
    %1201 = vmatpush.msra.mxu0 0.0
    %1202 = vmatpush.msra.mxu0 0.0
    %1203 = vmatpush.msra.mxu0 0.0
    %1204 = vmatpush.msra.mxu0 0.0
    %1205 = vmatpush.msra.mxu0 0.0
    %1206 = vmatpush.msra.mxu0 0.0
    %1207 = vmatpush.msra.mxu0 0.0
    %1208 = vmatpush.msra.mxu0 %v992
    %1209 = vmatmul.f32.gmra.mxu0 %v1191
    %v1210 = vpop.f32.mrf.mxu0
    %v1211 = vadd.f32 0.0, %v1210
    %1212 = vdwg.mxu0
    %v1214 = vsel %vm995, %v1143, 0
    %1216 = vmatpush.msra.mxu0 0.0
    %1217 = vmatpush.msra.mxu0 0.0
    %1218 = vmatpush.msra.mxu0 0.0
    %1219 = vmatpush.msra.mxu0 0.0
    %1220 = vmatpush.msra.mxu0 0.0
    %1221 = vmatpush.msra.mxu0 0.0
    %1222 = vmatpush.msra.mxu0 0.0
    %1223 = vmatpush.msra.mxu0 0.0
    %1224 = vmatpush.msra.mxu0 0.0
    %1225 = vmatpush.msra.mxu0 0.0
    %1226 = vmatpush.msra.mxu0 0.0
    %1227 = vmatpush.msra.mxu0 0.0
    %1228 = vmatpush.msra.mxu0 0.0
    %1229 = vmatpush.msra.mxu0 0.0
    %1230 = vmatpush.msra.mxu0 0.0
    %1231 = vmatpush.msra.mxu0 %v994
    %1232 = vmatmul.f32.gmra.mxu0 %v1214
    %v1233 = vpop.f32.mrf.mxu0
    %v1234 = vadd.f32 0.0, %v1233
    %1235 = vdwg.mxu0
    %v1236 = vrot.slane %v1211, 4
    %v1237 = vsel %vm641, %v1236, %v1165
    %v1238 = vrot.slane %v1165, 4
    %v1239 = vsel %vm641, %v1211, %v1238
    %v1241 = vunpack.c.l.s4 1983009808
    %v1242 = vunpack.c.0.s8 %v1241
    %v1243 = vperm.slane %v1237, %v1242
    %v1245 = vunpack.c.l.s4 1983009808
    %v1246 = vunpack.c.0.s8 %v1245
    %v1247 = vperm.slane %v1239, %v1246
    %v1248 = vrot.slane %v1234, 4
    %v1249 = vsel %vm641, %v1248, %v1188
    %v1250 = vrot.slane %v1188, 4
    %v1251 = vsel %vm641, %v1234, %v1250
    %v1253 = vunpack.c.l.s4 1983009808
    %v1254 = vunpack.c.0.s8 %v1253
    %v1255 = vperm.slane %v1249, %v1254
    %v1257 = vunpack.c.l.s4 1983009808
    %v1258 = vunpack.c.0.s8 %v1257
    %v1259 = vperm.slane %v1251, %v1258
    %v1260 = vrot.slane %v1255, 4
    %v1261 = vsel %vm641, %v1260, %v1243
    %v1262 = vrot.slane %v1243, 4
    %v1263 = vsel %vm641, %v1255, %v1262
    %v1265 = vunpack.c.l.s4 1934713408
    %v1266 = vunpack.c.0.s8 %v1265
    %v1267 = vperm.slane %v1261, %v1266
    %v1269 = vunpack.c.l.s4 1934713408
    %v1270 = vunpack.c.0.s8 %v1269
    %v1271 = vperm.slane %v1263, %v1270
    %v1272 = vrot.slane %v1259, 4
    %v1273 = vsel %vm641, %v1272, %v1247
    %v1274 = vrot.slane %v1247, 4
    %v1275 = vsel %vm641, %v1259, %v1274
    %v1277 = vunpack.c.l.s4 1934713408
    %v1278 = vunpack.c.0.s8 %v1277
    %v1279 = vperm.slane %v1273, %v1278
    %v1281 = vunpack.c.l.s4 1934713408
    %v1282 = vunpack.c.0.s8 %v1281
    %v1283 = vperm.slane %v1275, %v1282
    %v1284 = vrot.slane %v1267, 4
    %v1285 = vsel %vm641, 0.0, %v1284
    %v1286 = vrot.slane %v1271, 4
    %v1287 = vsel %vm641, 0.0, %v1286
    %v1288 = vrot.slane %v1279, 4
    %v1289 = vsel %vm641, 0.0, %v1288
    %v1290 = vrot.slane %v1283, 4
    %v1291 = vsel %vm641, 0.0, %v1290
    %v1292 = vsel %vm641, %v1286, %v1267
    %v1294 = vunpack.c.l.s4 1983009808
    %v1295 = vunpack.c.0.s8 %v1294
    %v1296 = vperm.slane %v1292, %v1295
    %v1297 = vrot.slane %v1287, 4
    %v1298 = vsel %vm641, %v1297, %v1285
    %v1300 = vunpack.c.l.s4 1983009808
    %v1301 = vunpack.c.0.s8 %v1300
    %v1302 = vperm.slane %v1298, %v1301
    %v1303 = vsel %vm641, %v1290, %v1279
    %v1305 = vunpack.c.l.s4 1983009808
    %v1306 = vunpack.c.0.s8 %v1305
    %v1307 = vperm.slane %v1303, %v1306
    %v1308 = vrot.slane %v1291, 4
    %v1309 = vsel %vm641, %v1308, %v1289
    %v1311 = vunpack.c.l.s4 1983009808
    %v1312 = vunpack.c.0.s8 %v1311
    %v1313 = vperm.slane %v1309, %v1312
    %v1314 = vrot.slane %v1302, 4
    %v1315 = vsel %vm641, %v1314, %v1296
    %v1316 = vrot.slane %v1296, 4
    %v1317 = vsel %vm641, %v1302, %v1316
    %v1319 = vunpack.c.l.s4 1934713408
    %v1320 = vunpack.c.0.s8 %v1319
    %v1321 = vperm.slane %v1315, %v1320
    %v1323 = vunpack.c.l.s4 1934713408
    %v1324 = vunpack.c.0.s8 %v1323
    %v1325 = vperm.slane %v1317, %v1324
    %v1326 = vrot.slane %v1313, 4
    %v1327 = vsel %vm641, %v1326, %v1307
    %v1328 = vrot.slane %v1307, 4
    %v1329 = vsel %vm641, %v1313, %v1328
    %v1331 = vunpack.c.l.s4 1934713408
    %v1332 = vunpack.c.0.s8 %v1331
    %v1333 = vperm.slane %v1327, %v1332
    %v1335 = vunpack.c.l.s4 1934713408
    %v1336 = vunpack.c.0.s8 %v1335
    %v1337 = vperm.slane %v1329, %v1336
    %v1338 = vrot.slane %v1333, 4
    %v1339 = vsel %vm641, %v1338, %v1321
    %v1340 = vrot.slane %v1321, 4
    %v1341 = vsel %vm641, %v1333, %v1340
    %v1342 = vrot.slane %v1337, 4
    %v1343 = vsel %vm641, %v1342, %v1325
    %v1344 = vrot.slane %v1325, 4
    %v1345 = vsel %vm641, %v1337, %v1344
    %1347 = vrot.lane.b32.xlu0 %v1341, 8
    %v1348 = vpop.permute.xlu0 %1347
    %1351 = vrot.lane.b32.xlu0 %v1343, 16
    %v1352 = vpop.permute.xlu0 %1351
    %1355 = vrot.lane.b32.xlu0 %v1345, 24
    %v1356 = vpop.permute.xlu0 %1355
    %v1358 = vsel %vm995, %v1339, %v1348
    %vm1359 = vcmask 130048
    %v1360 = vsel %vm1359, %v1358, %v1352
    %v1361 = vsel %vm276, %v1360, %v1356
    %v1362 = vld [vmem:[%s11] sm:$0xff]
    %v1363 = vld [vmem:[%s11 + $0x8] sm:$0xff]
    %v1364 = vld [vmem:[%s11 + $0x10] sm:$0xff]
    %v1365 = vld [vmem:[%s11 + $0x18] sm:$0xff]
    %v1367 = vsel %vm433, %v1361, 0
    %1369 = vmatpush.msra.mxu0 0.0
    %1370 = vmatpush.msra.mxu0 0.0
    %1371 = vmatpush.msra.mxu0 0.0
    %1372 = vmatpush.msra.mxu0 0.0
    %1373 = vmatpush.msra.mxu0 0.0
    %1374 = vmatpush.msra.mxu0 0.0
    %1375 = vmatpush.msra.mxu0 0.0
    %1376 = vmatpush.msra.mxu0 0.0
    %1377 = vmatpush.msra.mxu0 0.0
    %1378 = vmatpush.msra.mxu0 0.0
    %1379 = vmatpush.msra.mxu0 0.0
    %1380 = vmatpush.msra.mxu0 0.0
    %1381 = vmatpush.msra.mxu0 %v1365
    %1382 = vmatpush.msra.mxu0 %v1364
    %1383 = vmatpush.msra.mxu0 %v1363
    %1384 = vmatpush.msra.mxu0 %v1362
    %1385 = vmatmul.f32.gmra.mxu0 %v1367
    %v1386 = vpop.f32.mrf.mxu0
    %v1387 = vadd.f32 0.0, %v1386
    %1388 = vdwg.mxu0
    %v1389 = vadd.f32 %v559, %v1387
    %v1390 = vld [vmem:[#allocation9] sm:$0x1]
    %v1392 = vperm.slane %v1390, 0
    %v1394 = vadd.f32 %v1389, %v1392
    %v1395 = vld [vmem:[#allocation10] sm:$0x1]
    %v1396 = vld [vmem:[#allocation12] sm:$0x1]
    %v1397 = vsel %vm433, %v1394, 0.0
    %1398 = vadd.xlane.f32.xlu0 %v1397
    %v1399 = vpop.xlane.xlu0 %1398
    %v1400 = vmul.f32 %v1399, %v571
    %v1401 = vsub.f32 %v1394, %v1400
    %v1402 = vmul.f32 %v1401, %v1401
    %v1403 = vsel %vm433, %v1402, 0.0
    %1404 = vadd.xlane.f32.xlu0 %v1403
    %v1405 = vpop.xlane.xlu0 %1404
    %v1406 = vmul.f32 %v1405, %v571
    %v1407 = vadd.f32 %v1406, 1e-05
    %v1408 = vrsqrt.pop %v1407
    %v1409 = vmul.f32 %v1408, %v1407
    %v1410 = vmul.f32 %v1409, %v1408
    %v1411 = vmul.f32 0.5, %v1410
    %v1412 = vsub.f32 1.5, %v1411
    %v1413 = vmul.f32 %v1408, %v1412
    %vm1414 = vweird.f32 %v1407
    %vm1415 = vweird.f32 %v1408
    %vm1416 = vmor %vm1414, %vm1415
    %v1417 = vsel %vm1416, %v1408, %v1413
    %v1418 = vmul.f32 %v1401, %v1417
    %v1420 = vperm.slane %v1395, 0
    %v1422 = vmul.f32 %v1418, %v1420
    %v1424 = vperm.slane %v1396, 0
    %v1426 = vadd.f32 %v1422, %v1424
    %v1427 = vld [vmem:[#allocation13] sm:$0xff]
    %v1428 = vld [vmem:[#allocation13 + $0x8] sm:$0xff]
    %v1429 = vld [vmem:[#allocation13 + $0x10] sm:$0xff]
    %v1430 = vld [vmem:[#allocation13 + $0x18] sm:$0xff]
    %v1431 = vld [vmem:[#allocation15] sm:$0x1]
    %v1433 = vperm.slane %v1431, 0
    %v1436 = vsel %vm433, %v1426, 0
    %1438 = vmatpush.msra.mxu0 0.0
    %1439 = vmatpush.msra.mxu0 0.0
    %1440 = vmatpush.msra.mxu0 0.0
    %1441 = vmatpush.msra.mxu0 0.0
    %1442 = vmatpush.msra.mxu0 0.0
    %1443 = vmatpush.msra.mxu0 0.0
    %1444 = vmatpush.msra.mxu0 0.0
    %1445 = vmatpush.msra.mxu0 0.0
    %1446 = vmatpush.msra.mxu0 0.0
    %1447 = vmatpush.msra.mxu0 0.0
    %1448 = vmatpush.msra.mxu0 0.0
    %1449 = vmatpush.msra.mxu0 0.0
    %1450 = vmatpush.msra.mxu0 %v1430
    %1451 = vmatpush.msra.mxu0 %v1429
    %1452 = vmatpush.msra.mxu0 %v1428
    %1453 = vmatpush.msra.mxu0 %v1427
    %1454 = vmatmul.f32.gmra.mxu0 %v1436
    %v1455 = vpop.f32.mrf.mxu0
    %v1456 = vadd.f32 %v1433, %v1455
    %1457 = vdwg.mxu0
    %v1458 = vmul.f32 %v1456, 0.5
    %v1459 = vmul.f32 %v1456, %v307
    %v1460 = vmul.f32 %v1459, %v1459
    %v1461 = vmin.f32 16.0, %v1460
    %v1462 = vmul.f32 %v1461, 2.1237322e-06
    %v1463 = vadd.f32 %v1462, 0.00028619796
    %v1464 = vmul.f32 %v1461, %v1463
    %v1465 = vadd.f32 %v1464, 0.0036580483
    %v1466 = vmul.f32 %v1461, %v1465
    %v1467 = vadd.f32 %v1466, 0.05243302
    %v1468 = vmul.f32 %v1461, %v1467
    %v1469 = vadd.f32 %v1468, 0.18741608
    %v1470 = vmul.f32 %v1461, %v1469
    %v1471 = vadd.f32 %v1470, 1.1283791
    %v1472 = vmul.f32 %v1459, %v1471
    %v1473 = vmul.f32 %v1461, 3.8918573e-05
    %v1474 = vadd.f32 %v1473, 0.001143296
    %v1475 = vmul.f32 %v1461, %v1474
    %v1476 = vadd.f32 %v1475, 0.014752088
    %v1477 = vmul.f32 %v1461, %v1476
    %v1478 = vadd.f32 %v1477, 0.112945676
    %v1479 = vmul.f32 %v1461, %v1478
    %v1480 = vadd.f32 %v1479, 0.4994258
    %v1481 = vmul.f32 %v1461, %v1480
    %v1482 = vadd.f32 %v1481, 1.0
    %v1483 = vrcp.pop %v1482
    %v1484 = vmul.f32 %v1482, %v1483
    %v1485 = vsub.f32 1.0, %v1484
    %v1486 = vmul.f32 %v1483, %v1485
    %v1487 = vadd.f32 %v1483, %v1486
    %vm1488 = vweird.f32 %v1482
    %vm1489 = vweird.f32 %v1483
    %vm1490 = vmor %vm1488, %vm1489
    %v1491 = vsel %vm1490, %v1483, %v1487
    %v1492 = vand.u32 2147483647, %v1482
    %vm1493 = vcmp.eq.f32.partialorder %v1492, 8.507059e+37
    %v1494 = vand.u32 %v1482, 2147483648
    %v1495 = vor.u32 1.1754944e-38, %v1494
    %v1496 = vsel %vm1493, %v1495, %v1491
    %v1497 = vmul.f32 %v1472, %v1496
    %v1498 = vmin.f32 %v1497, 1.0
    %v1499 = vmax.f32 %v1498, -1.0
    %v1500 = vadd.f32 %v1499, 1.0
    %v1501 = vmul.f32 %v1458, %v1500
    %v1502 = vld [vmem:[%s17] sm:$0xff]
    %v1503 = vld [vmem:[%s17 + $0x8] sm:$0xff]
    %v1504 = vld [vmem:[%s17 + $0x10] sm:$0xff]
    %v1505 = vld [vmem:[%s17 + $0x18] sm:$0xff]
    %v1506 = vld [vmem:[%s17 + $0x20] sm:$0xff]
    %v1507 = vld [vmem:[%s17 + $0x28] sm:$0xff]
    %v1508 = vld [vmem:[%s17 + $0x30] sm:$0xff]
    %v1509 = vld [vmem:[%s17 + $0x38] sm:$0xff]
    %vm1510 = vcmask 523264
    %v1512 = vsel %vm1510, %v1501, 0
    %1514 = vmatpush.msra.mxu0 0.0
    %1515 = vmatpush.msra.mxu0 0.0
    %1516 = vmatpush.msra.mxu0 0.0
    %1517 = vmatpush.msra.mxu0 0.0
    %1518 = vmatpush.msra.mxu0 0.0
    %1519 = vmatpush.msra.mxu0 0.0
    %1520 = vmatpush.msra.mxu0 0.0
    %1521 = vmatpush.msra.mxu0 0.0
    %1522 = vmatpush.msra.mxu0 %v1509
    %1523 = vmatpush.msra.mxu0 %v1508
    %1524 = vmatpush.msra.mxu0 %v1507
    %1525 = vmatpush.msra.mxu0 %v1506
    %1526 = vmatpush.msra.mxu0 %v1505
    %1527 = vmatpush.msra.mxu0 %v1504
    %1528 = vmatpush.msra.mxu0 %v1503
    %1529 = vmatpush.msra.mxu0 %v1502
    %1530 = vmatmul.f32.gmra.mxu0 %v1512
    %v1531 = vpop.f32.mrf.mxu0
    %v1532 = vadd.f32 0.0, %v1531
    %1533 = vdwg.mxu0
    %v1534 = vadd.f32 %v1394, %v1532
    %v1535 = vld [vmem:[#allocation16] sm:$0x1]
    %v1537 = vperm.slane %v1535, 0
    %v1539 = vadd.f32 %v1534, %v1537
    %s1540 = scalar_lea.vmem %s7, 1
    %v1541 = vld [vmem:[%s1540] sm:$0x1]
    %s1542 = scalar_lea.vmem [#allocation6], 1
    %v1543 = vld [vmem:[%s1542] sm:$0x1]
    %v1544 = vsel %vm433, %v1539, 0.0
    %1545 = vadd.xlane.f32.xlu0 %v1544
    %v1546 = vpop.xlane.xlu0 %1545
    %v1547 = vmul.f32 %v1546, %v571
    %v1548 = vsub.f32 %v1539, %v1547
    %v1549 = vmul.f32 %v1548, %v1548
    %v1550 = vsel %vm433, %v1549, 0.0
    %1551 = vadd.xlane.f32.xlu0 %v1550
    %v1552 = vpop.xlane.xlu0 %1551
    %v1553 = vmul.f32 %v1552, %v571
    %v1554 = vadd.f32 %v1553, 1e-05
    %v1555 = vrsqrt.pop %v1554
    %v1556 = vmul.f32 %v1555, %v1554
    %v1557 = vmul.f32 %v1556, %v1555
    %v1558 = vmul.f32 0.5, %v1557
    %v1559 = vsub.f32 1.5, %v1558
    %v1560 = vmul.f32 %v1555, %v1559
    %vm1561 = vweird.f32 %v1554
    %vm1562 = vweird.f32 %v1555
    %vm1563 = vmor %vm1561, %vm1562
    %v1564 = vsel %vm1563, %v1555, %v1560
    %v1565 = vmul.f32 %v1548, %v1564
    %v1567 = vperm.slane %v1541, 0
    %v1569 = vmul.f32 %v1565, %v1567
    %v1571 = vperm.slane %v1543, 0
    %v1573 = vadd.f32 %v1569, %v1571
    %s1574 = scalar_lea.vmem %s9, 32
    %v1575 = vld [vmem:[%s1574] sm:$0xff]
    %v1576 = vld [vmem:[%s1574 + $0x8] sm:$0xff]
    %v1577 = vld [vmem:[%s1574 + $0x10] sm:$0xff]
    %v1578 = vld [vmem:[%s1574 + $0x18] sm:$0xff]
    %s1579 = scalar_lea.vmem [#allocation7], 1
    %v1580 = vld [vmem:[%s1579] sm:$0x1]
    %v1582 = vperm.slane %v1580, 0
    %v1585 = vsel %vm433, %v1573, 0
    %1587 = vmatpush.msra.mxu0 0.0
    %1588 = vmatpush.msra.mxu0 0.0
    %1589 = vmatpush.msra.mxu0 0.0
    %1590 = vmatpush.msra.mxu0 0.0
    %1591 = vmatpush.msra.mxu0 0.0
    %1592 = vmatpush.msra.mxu0 0.0
    %1593 = vmatpush.msra.mxu0 0.0
    %1594 = vmatpush.msra.mxu0 0.0
    %1595 = vmatpush.msra.mxu0 0.0
    %1596 = vmatpush.msra.mxu0 0.0
    %1597 = vmatpush.msra.mxu0 0.0
    %1598 = vmatpush.msra.mxu0 0.0
    %1599 = vmatpush.msra.mxu0 %v1578
    %1600 = vmatpush.msra.mxu0 %v1577
    %1601 = vmatpush.msra.mxu0 %v1576
    %1602 = vmatpush.msra.mxu0 %v1575
    %1603 = vmatmul.f32.gmra.mxu0 %v1585
    %v1604 = vpop.f32.mrf.mxu0
    %v1605 = vadd.f32 %v1582, %v1604
    %1606 = vdwg.mxu0
    %1608 = vrot.lane.b32.xlu0 %v1605, 120
    %v1609 = vpop.permute.xlu0 %1608
    %1611 = vrot.lane.b32.xlu0 %v1605, 112
    %v1612 = vpop.permute.xlu0 %1611
    %1614 = vrot.lane.b32.xlu0 %v1605, 104
    %v1615 = vpop.permute.xlu0 %1614
    %v1617 = vrot.slane %v1612, 4
    %v1618 = vsel %vm641, %v1617, %v1605
    %v1619 = vrot.slane %v1605, 4
    %v1620 = vsel %vm641, %v1612, %v1619
    %v1622 = vunpack.c.l.s4 1983009808
    %v1623 = vunpack.c.0.s8 %v1622
    %v1624 = vperm.slane %v1618, %v1623
    %v1626 = vunpack.c.l.s4 1983009808
    %v1627 = vunpack.c.0.s8 %v1626
    %v1628 = vperm.slane %v1620, %v1627
    %v1629 = vrot.slane %v1615, 4
    %v1630 = vsel %vm641, %v1629, %v1609
    %v1631 = vrot.slane %v1609, 4
    %v1632 = vsel %vm641, %v1615, %v1631
    %v1634 = vunpack.c.l.s4 1983009808
    %v1635 = vunpack.c.0.s8 %v1634
    %v1636 = vperm.slane %v1630, %v1635
    %v1638 = vunpack.c.l.s4 1983009808
    %v1639 = vunpack.c.0.s8 %v1638
    %v1640 = vperm.slane %v1632, %v1639
    %v1641 = vrot.slane %v1636, 4
    %v1642 = vsel %vm641, %v1641, %v1624
    %v1643 = vrot.slane %v1624, 4
    %v1644 = vsel %vm641, %v1636, %v1643
    %v1646 = vunpack.c.l.s4 1934713408
    %v1647 = vunpack.c.0.s8 %v1646
    %v1648 = vperm.slane %v1642, %v1647
    %v1650 = vunpack.c.l.s4 1934713408
    %v1651 = vunpack.c.0.s8 %v1650
    %v1652 = vperm.slane %v1644, %v1651
    %v1653 = vrot.slane %v1640, 4
    %v1654 = vsel %vm641, %v1653, %v1628
    %v1655 = vrot.slane %v1628, 4
    %v1656 = vsel %vm641, %v1640, %v1655
    %v1658 = vunpack.c.l.s4 1934713408
    %v1659 = vunpack.c.0.s8 %v1658
    %v1660 = vperm.slane %v1654, %v1659
    %v1662 = vunpack.c.l.s4 1934713408
    %v1663 = vunpack.c.0.s8 %v1662
    %v1664 = vperm.slane %v1656, %v1663
    %v1665 = vrot.slane %v1648, 4
    %v1666 = vsel %vm641, 0.0, %v1665
    %v1667 = vrot.slane %v1652, 4
    %v1668 = vsel %vm641, 0.0, %v1667
    %v1669 = vrot.slane %v1660, 4
    %v1670 = vsel %vm641, 0.0, %v1669
    %v1671 = vrot.slane %v1664, 4
    %v1672 = vsel %vm641, 0.0, %v1671
    %v1673 = vsel %vm641, %v1667, %v1648
    %v1675 = vunpack.c.l.s4 1983009808
    %v1676 = vunpack.c.0.s8 %v1675
    %v1677 = vperm.slane %v1673, %v1676
    %v1678 = vrot.slane %v1668, 4
    %v1679 = vsel %vm641, %v1678, %v1666
    %v1681 = vunpack.c.l.s4 1983009808
    %v1682 = vunpack.c.0.s8 %v1681
    %v1683 = vperm.slane %v1679, %v1682
    %v1684 = vsel %vm641, %v1671, %v1660
    %v1686 = vunpack.c.l.s4 1983009808
    %v1687 = vunpack.c.0.s8 %v1686
    %v1688 = vperm.slane %v1684, %v1687
    %v1689 = vrot.slane %v1672, 4
    %v1690 = vsel %vm641, %v1689, %v1670
    %v1692 = vunpack.c.l.s4 1983009808
    %v1693 = vunpack.c.0.s8 %v1692
    %v1694 = vperm.slane %v1690, %v1693
    %v1695 = vrot.slane %v1683, 4
    %v1696 = vsel %vm641, %v1695, %v1677
    %v1697 = vrot.slane %v1677, 4
    %v1698 = vsel %vm641, %v1683, %v1697
    %v1700 = vunpack.c.l.s4 1934713408
    %v1701 = vunpack.c.0.s8 %v1700
    %v1702 = vperm.slane %v1696, %v1701
    %v1704 = vunpack.c.l.s4 1934713408
    %v1705 = vunpack.c.0.s8 %v1704
    %v1706 = vperm.slane %v1698, %v1705
    %v1707 = vrot.slane %v1694, 4
    %v1708 = vsel %vm641, %v1707, %v1688
    %v1709 = vrot.slane %v1688, 4
    %v1710 = vsel %vm641, %v1694, %v1709
    %v1712 = vunpack.c.l.s4 1934713408
    %v1713 = vunpack.c.0.s8 %v1712
    %v1714 = vperm.slane %v1708, %v1713
    %v1716 = vunpack.c.l.s4 1934713408
    %v1717 = vunpack.c.0.s8 %v1716
    %v1718 = vperm.slane %v1710, %v1717
    %v1719 = vrot.slane %v1714, 4
    %v1720 = vsel %vm641, %v1719, %v1702
    %v1721 = vrot.slane %v1702, 4
    %v1722 = vsel %vm641, %v1714, %v1721
    %v1723 = vrot.slane %v1718, 4
    %v1724 = vsel %vm641, %v1723, %v1706
    %v1725 = vrot.slane %v1706, 4
    %v1726 = vsel %vm641, %v1718, %v1725
    %1727 = vrot.lane.b32.xlu0 %v1605, 96
    %v1728 = vpop.permute.xlu0 %1727
    %1729 = vrot.lane.b32.xlu0 %v1609, 96
    %v1730 = vpop.permute.xlu0 %1729
    %1731 = vrot.lane.b32.xlu0 %v1612, 96
    %v1732 = vpop.permute.xlu0 %1731
    %1733 = vrot.lane.b32.xlu0 %v1615, 96
    %v1734 = vpop.permute.xlu0 %1733
    %v1739 = vrot.slane %v1732, 4
    %v1740 = vsel %vm641, %v1739, %v1728
    %v1741 = vrot.slane %v1728, 4
    %v1742 = vsel %vm641, %v1732, %v1741
    %v1744 = vunpack.c.l.s4 1983009808
    %v1745 = vunpack.c.0.s8 %v1744
    %v1746 = vperm.slane %v1740, %v1745
    %v1748 = vunpack.c.l.s4 1983009808
    %v1749 = vunpack.c.0.s8 %v1748
    %v1750 = vperm.slane %v1742, %v1749
    %v1751 = vrot.slane %v1734, 4
    %v1752 = vsel %vm641, %v1751, %v1730
    %v1753 = vrot.slane %v1730, 4
    %v1754 = vsel %vm641, %v1734, %v1753
    %v1756 = vunpack.c.l.s4 1983009808
    %v1757 = vunpack.c.0.s8 %v1756
    %v1758 = vperm.slane %v1752, %v1757
    %v1760 = vunpack.c.l.s4 1983009808
    %v1761 = vunpack.c.0.s8 %v1760
    %v1762 = vperm.slane %v1754, %v1761
    %v1763 = vrot.slane %v1758, 4
    %v1764 = vsel %vm641, %v1763, %v1746
    %v1765 = vrot.slane %v1746, 4
    %v1766 = vsel %vm641, %v1758, %v1765
    %v1768 = vunpack.c.l.s4 1934713408
    %v1769 = vunpack.c.0.s8 %v1768
    %v1770 = vperm.slane %v1764, %v1769
    %v1772 = vunpack.c.l.s4 1934713408
    %v1773 = vunpack.c.0.s8 %v1772
    %v1774 = vperm.slane %v1766, %v1773
    %v1775 = vrot.slane %v1762, 4
    %v1776 = vsel %vm641, %v1775, %v1750
    %v1777 = vrot.slane %v1750, 4
    %v1778 = vsel %vm641, %v1762, %v1777
    %v1780 = vunpack.c.l.s4 1934713408
    %v1781 = vunpack.c.0.s8 %v1780
    %v1782 = vperm.slane %v1776, %v1781
    %v1784 = vunpack.c.l.s4 1934713408
    %v1785 = vunpack.c.0.s8 %v1784
    %v1786 = vperm.slane %v1778, %v1785
    %v1787 = vrot.slane %v1770, 4
    %v1788 = vsel %vm641, 0.0, %v1787
    %v1789 = vrot.slane %v1774, 4
    %v1790 = vsel %vm641, 0.0, %v1789
    %v1791 = vrot.slane %v1782, 4
    %v1792 = vsel %vm641, 0.0, %v1791
    %v1793 = vrot.slane %v1786, 4
    %v1794 = vsel %vm641, 0.0, %v1793
    %v1795 = vsel %vm641, %v1789, %v1770
    %v1797 = vunpack.c.l.s4 1983009808
    %v1798 = vunpack.c.0.s8 %v1797
    %v1799 = vperm.slane %v1795, %v1798
    %v1800 = vrot.slane %v1790, 4
    %v1801 = vsel %vm641, %v1800, %v1788
    %v1803 = vunpack.c.l.s4 1983009808
    %v1804 = vunpack.c.0.s8 %v1803
    %v1805 = vperm.slane %v1801, %v1804
    %v1806 = vsel %vm641, %v1793, %v1782
    %v1808 = vunpack.c.l.s4 1983009808
    %v1809 = vunpack.c.0.s8 %v1808
    %v1810 = vperm.slane %v1806, %v1809
    %v1811 = vrot.slane %v1794, 4
    %v1812 = vsel %vm641, %v1811, %v1792
    %v1814 = vunpack.c.l.s4 1983009808
    %v1815 = vunpack.c.0.s8 %v1814
    %v1816 = vperm.slane %v1812, %v1815
    %v1817 = vrot.slane %v1805, 4
    %v1818 = vsel %vm641, %v1817, %v1799
    %v1819 = vrot.slane %v1799, 4
    %v1820 = vsel %vm641, %v1805, %v1819
    %v1822 = vunpack.c.l.s4 1934713408
    %v1823 = vunpack.c.0.s8 %v1822
    %v1824 = vperm.slane %v1818, %v1823
    %v1826 = vunpack.c.l.s4 1934713408
    %v1827 = vunpack.c.0.s8 %v1826
    %v1828 = vperm.slane %v1820, %v1827
    %v1829 = vrot.slane %v1816, 4
    %v1830 = vsel %vm641, %v1829, %v1810
    %v1831 = vrot.slane %v1810, 4
    %v1832 = vsel %vm641, %v1816, %v1831
    %v1834 = vunpack.c.l.s4 1934713408
    %v1835 = vunpack.c.0.s8 %v1834
    %v1836 = vperm.slane %v1830, %v1835
    %v1838 = vunpack.c.l.s4 1934713408
    %v1839 = vunpack.c.0.s8 %v1838
    %v1840 = vperm.slane %v1832, %v1839
    %v1841 = vrot.slane %v1836, 4
    %v1842 = vsel %vm641, %v1841, %v1824
    %v1843 = vrot.slane %v1824, 4
    %v1844 = vsel %vm641, %v1836, %v1843
    %v1845 = vrot.slane %v1840, 4
    %v1846 = vsel %vm641, %v1845, %v1828
    %v1847 = vrot.slane %v1828, 4
    %v1848 = vsel %vm641, %v1840, %v1847
    %1849 = vrot.lane.b32.xlu0 %v1605, 64
    %v1850 = vpop.permute.xlu0 %1849
    %1851 = vrot.lane.b32.xlu0 %v1609, 64
    %v1852 = vpop.permute.xlu0 %1851
    %1853 = vrot.lane.b32.xlu0 %v1612, 64
    %v1854 = vpop.permute.xlu0 %1853
    %1855 = vrot.lane.b32.xlu0 %v1615, 64
    %v1856 = vpop.permute.xlu0 %1855
    %v1861 = vrot.slane %v1854, 4
    %v1862 = vsel %vm641, %v1861, %v1850
    %v1863 = vrot.slane %v1850, 4
    %v1864 = vsel %vm641, %v1854, %v1863
    %v1866 = vunpack.c.l.s4 1983009808
    %v1867 = vunpack.c.0.s8 %v1866
    %v1868 = vperm.slane %v1862, %v1867
    %v1870 = vunpack.c.l.s4 1983009808
    %v1871 = vunpack.c.0.s8 %v1870
    %v1872 = vperm.slane %v1864, %v1871
    %v1873 = vrot.slane %v1856, 4
    %v1874 = vsel %vm641, %v1873, %v1852
    %v1875 = vrot.slane %v1852, 4
    %v1876 = vsel %vm641, %v1856, %v1875
    %v1878 = vunpack.c.l.s4 1983009808
    %v1879 = vunpack.c.0.s8 %v1878
    %v1880 = vperm.slane %v1874, %v1879
    %v1882 = vunpack.c.l.s4 1983009808
    %v1883 = vunpack.c.0.s8 %v1882
    %v1884 = vperm.slane %v1876, %v1883
    %v1885 = vrot.slane %v1880, 4
    %v1886 = vsel %vm641, %v1885, %v1868
    %v1887 = vrot.slane %v1868, 4
    %v1888 = vsel %vm641, %v1880, %v1887
    %v1890 = vunpack.c.l.s4 1934713408
    %v1891 = vunpack.c.0.s8 %v1890
    %v1892 = vperm.slane %v1886, %v1891
    %v1894 = vunpack.c.l.s4 1934713408
    %v1895 = vunpack.c.0.s8 %v1894
    %v1896 = vperm.slane %v1888, %v1895
    %v1897 = vrot.slane %v1884, 4
    %v1898 = vsel %vm641, %v1897, %v1872
    %v1899 = vrot.slane %v1872, 4
    %v1900 = vsel %vm641, %v1884, %v1899
    %v1902 = vunpack.c.l.s4 1934713408
    %v1903 = vunpack.c.0.s8 %v1902
    %v1904 = vperm.slane %v1898, %v1903
    %v1906 = vunpack.c.l.s4 1934713408
    %v1907 = vunpack.c.0.s8 %v1906
    %v1908 = vperm.slane %v1900, %v1907
    %v1909 = vrot.slane %v1892, 4
    %v1910 = vsel %vm641, 0.0, %v1909
    %v1911 = vrot.slane %v1896, 4
    %v1912 = vsel %vm641, 0.0, %v1911
    %v1913 = vrot.slane %v1904, 4
    %v1914 = vsel %vm641, 0.0, %v1913
    %v1915 = vrot.slane %v1908, 4
    %v1916 = vsel %vm641, 0.0, %v1915
    %v1917 = vsel %vm641, %v1911, %v1892
    %v1919 = vunpack.c.l.s4 1983009808
    %v1920 = vunpack.c.0.s8 %v1919
    %v1921 = vperm.slane %v1917, %v1920
    %v1922 = vrot.slane %v1912, 4
    %v1923 = vsel %vm641, %v1922, %v1910
    %v1925 = vunpack.c.l.s4 1983009808
    %v1926 = vunpack.c.0.s8 %v1925
    %v1927 = vperm.slane %v1923, %v1926
    %v1928 = vsel %vm641, %v1915, %v1904
    %v1930 = vunpack.c.l.s4 1983009808
    %v1931 = vunpack.c.0.s8 %v1930
    %v1932 = vperm.slane %v1928, %v1931
    %v1933 = vrot.slane %v1916, 4
    %v1934 = vsel %vm641, %v1933, %v1914
    %v1936 = vunpack.c.l.s4 1983009808
    %v1937 = vunpack.c.0.s8 %v1936
    %v1938 = vperm.slane %v1934, %v1937
    %v1939 = vrot.slane %v1927, 4
    %v1940 = vsel %vm641, %v1939, %v1921
    %v1941 = vrot.slane %v1921, 4
    %v1942 = vsel %vm641, %v1927, %v1941
    %v1944 = vunpack.c.l.s4 1934713408
    %v1945 = vunpack.c.0.s8 %v1944
    %v1946 = vperm.slane %v1940, %v1945
    %v1948 = vunpack.c.l.s4 1934713408
    %v1949 = vunpack.c.0.s8 %v1948
    %v1950 = vperm.slane %v1942, %v1949
    %v1951 = vrot.slane %v1938, 4
    %v1952 = vsel %vm641, %v1951, %v1932
    %v1953 = vrot.slane %v1932, 4
    %v1954 = vsel %vm641, %v1938, %v1953
    %v1956 = vunpack.c.l.s4 1934713408
    %v1957 = vunpack.c.0.s8 %v1956
    %v1958 = vperm.slane %v1952, %v1957
    %v1960 = vunpack.c.l.s4 1934713408
    %v1961 = vunpack.c.0.s8 %v1960
    %v1962 = vperm.slane %v1954, %v1961
    %v1963 = vrot.slane %v1958, 4
    %v1964 = vsel %vm641, %v1963, %v1946
    %v1965 = vrot.slane %v1946, 4
    %v1966 = vsel %vm641, %v1958, %v1965
    %v1967 = vrot.slane %v1962, 4
    %v1968 = vsel %vm641, %v1967, %v1950
    %v1969 = vrot.slane %v1950, 4
    %v1970 = vsel %vm641, %v1962, %v1969
    %v1972 = vsel %vm995, %v1720, 0
    %v1975 = vsel %vm995, %v1842, 0
    %1977 = vmatpush.xpose.msra.mxu0 0.0
    %1978 = vmatpush.xpose.msra.mxu0 0.0
    %1979 = vmatpush.xpose.msra.mxu0 0.0
    %1980 = vmatpush.xpose.msra.mxu0 0.0
    %1981 = vmatpush.xpose.msra.mxu0 0.0
    %1982 = vmatpush.xpose.msra.mxu0 0.0
    %1983 = vmatpush.xpose.msra.mxu0 0.0
    %1984 = vmatpush.xpose.msra.mxu0 0.0
    %1985 = vmatpush.xpose.msra.mxu0 0.0
    %1986 = vmatpush.xpose.msra.mxu0 0.0
    %1987 = vmatpush.xpose.msra.mxu0 0.0
    %1988 = vmatpush.xpose.msra.mxu0 0.0
    %1989 = vmatpush.xpose.msra.mxu0 0.0
    %1990 = vmatpush.xpose.msra.mxu0 0.0
    %1991 = vmatpush.xpose.msra.mxu0 0.0
    %1992 = vmatpush.xpose.msra.mxu0 %v1975
    %1993 = vmatmul.f32.gmra.mxu0 %v1972
    %v1994 = vpop.f32.mrf.mxu0
    %v1995 = vadd.f32 0.0, %v1994
    %1996 = vdwg.mxu0
    %v1998 = vsel %vm995, %v1722, 0
    %v2001 = vsel %vm995, %v1844, 0
    %2003 = vmatpush.xpose.msra.mxu0 0.0
    %2004 = vmatpush.xpose.msra.mxu0 0.0
    %2005 = vmatpush.xpose.msra.mxu0 0.0
    %2006 = vmatpush.xpose.msra.mxu0 0.0
    %2007 = vmatpush.xpose.msra.mxu0 0.0
    %2008 = vmatpush.xpose.msra.mxu0 0.0
    %2009 = vmatpush.xpose.msra.mxu0 0.0
    %2010 = vmatpush.xpose.msra.mxu0 0.0
    %2011 = vmatpush.xpose.msra.mxu0 0.0
    %2012 = vmatpush.xpose.msra.mxu0 0.0
    %2013 = vmatpush.xpose.msra.mxu0 0.0
    %2014 = vmatpush.xpose.msra.mxu0 0.0
    %2015 = vmatpush.xpose.msra.mxu0 0.0
    %2016 = vmatpush.xpose.msra.mxu0 0.0
    %2017 = vmatpush.xpose.msra.mxu0 0.0
    %2018 = vmatpush.xpose.msra.mxu0 %v2001
    %2019 = vmatmul.f32.gmra.mxu0 %v1998
    %v2020 = vpop.f32.mrf.mxu0
    %v2021 = vadd.f32 0.0, %v2020
    %2022 = vdwg.mxu0
    %v2024 = vsel %vm995, %v1724, 0
    %v2027 = vsel %vm995, %v1846, 0
    %2029 = vmatpush.xpose.msra.mxu0 0.0
    %2030 = vmatpush.xpose.msra.mxu0 0.0
    %2031 = vmatpush.xpose.msra.mxu0 0.0
    %2032 = vmatpush.xpose.msra.mxu0 0.0
    %2033 = vmatpush.xpose.msra.mxu0 0.0
    %2034 = vmatpush.xpose.msra.mxu0 0.0
    %2035 = vmatpush.xpose.msra.mxu0 0.0
    %2036 = vmatpush.xpose.msra.mxu0 0.0
    %2037 = vmatpush.xpose.msra.mxu0 0.0
    %2038 = vmatpush.xpose.msra.mxu0 0.0
    %2039 = vmatpush.xpose.msra.mxu0 0.0
    %2040 = vmatpush.xpose.msra.mxu0 0.0
    %2041 = vmatpush.xpose.msra.mxu0 0.0
    %2042 = vmatpush.xpose.msra.mxu0 0.0
    %2043 = vmatpush.xpose.msra.mxu0 0.0
    %2044 = vmatpush.xpose.msra.mxu0 %v2027
    %2045 = vmatmul.f32.gmra.mxu0 %v2024
    %v2046 = vpop.f32.mrf.mxu0
    %v2047 = vadd.f32 0.0, %v2046
    %2048 = vdwg.mxu0
    %v2050 = vsel %vm995, %v1726, 0
    %v2053 = vsel %vm995, %v1848, 0
    %2055 = vmatpush.xpose.msra.mxu0 0.0
    %2056 = vmatpush.xpose.msra.mxu0 0.0
    %2057 = vmatpush.xpose.msra.mxu0 0.0
    %2058 = vmatpush.xpose.msra.mxu0 0.0
    %2059 = vmatpush.xpose.msra.mxu0 0.0
    %2060 = vmatpush.xpose.msra.mxu0 0.0
    %2061 = vmatpush.xpose.msra.mxu0 0.0
    %2062 = vmatpush.xpose.msra.mxu0 0.0
    %2063 = vmatpush.xpose.msra.mxu0 0.0
    %2064 = vmatpush.xpose.msra.mxu0 0.0
    %2065 = vmatpush.xpose.msra.mxu0 0.0
    %2066 = vmatpush.xpose.msra.mxu0 0.0
    %2067 = vmatpush.xpose.msra.mxu0 0.0
    %2068 = vmatpush.xpose.msra.mxu0 0.0
    %2069 = vmatpush.xpose.msra.mxu0 0.0
    %2070 = vmatpush.xpose.msra.mxu0 %v2053
    %2071 = vmatmul.f32.gmra.mxu0 %v2050
    %v2072 = vpop.f32.mrf.mxu0
    %v2073 = vadd.f32 0.0, %v2072
    %2074 = vdwg.mxu0
    %v2075 = vsel %vm995, %v1995, -inf
    %2076 = vmax.xlane.f32.xlu0 %v2075
    %v2077 = vpop.xlane.xlu0 %2076
    %v2078 = vsel %vm995, %v2021, -inf
    %2079 = vmax.xlane.f32.xlu0 %v2078
    %v2080 = vpop.xlane.xlu0 %2079
    %v2081 = vsel %vm995, %v2047, -inf
    %2082 = vmax.xlane.f32.xlu0 %v2081
    %v2083 = vpop.xlane.xlu0 %2082
    %v2084 = vsel %vm995, %v2073, -inf
    %2085 = vmax.xlane.f32.xlu0 %v2084
    %v2086 = vpop.xlane.xlu0 %2085
    %v2087 = vsub.f32 %v1995, %v2077
    %v2088 = vsub.f32 %v2021, %v2080
    %v2089 = vsub.f32 %v2047, %v2083
    %v2090 = vsub.f32 %v2073, %v2086
    %v2091 = vmul.f32 %v2087, 1.442695
    %v2092 = vpow.pop %v2091
    %v2093 = vmul.f32 %v2088, 1.442695
    %v2094 = vpow.pop %v2093
    %v2095 = vmul.f32 %v2089, 1.442695
    %v2096 = vpow.pop %v2095
    %v2097 = vmul.f32 %v2090, 1.442695
    %v2098 = vpow.pop %v2097
    %v2099 = vsel %vm995, %v2092, 0.0
    %2100 = vadd.xlane.f32.xlu0 %v2099
    %v2101 = vpop.xlane.xlu0 %2100
    %v2102 = vsel %vm995, %v2094, 0.0
    %2103 = vadd.xlane.f32.xlu0 %v2102
    %v2104 = vpop.xlane.xlu0 %2103
    %v2105 = vsel %vm995, %v2096, 0.0
    %2106 = vadd.xlane.f32.xlu0 %v2105
    %v2107 = vpop.xlane.xlu0 %2106
    %v2108 = vsel %vm995, %v2098, 0.0
    %2109 = vadd.xlane.f32.xlu0 %v2108
    %v2110 = vpop.xlane.xlu0 %2109
    %v2111 = vrcp.pop %v2101
    %v2112 = vrcp.pop %v2104
    %v2113 = vrcp.pop %v2107
    %v2114 = vrcp.pop %v2110
    %v2115 = vmul.f32 %v2092, %v2111
    %v2116 = vmul.f32 %v2094, %v2112
    %v2117 = vmul.f32 %v2096, %v2113
    %v2118 = vmul.f32 %v2098, %v2114
    %v2120 = vsel %vm995, %v2115, 0
    %2122 = vmatpush.msra.mxu0 0.0
    %2123 = vmatpush.msra.mxu0 0.0
    %2124 = vmatpush.msra.mxu0 0.0
    %2125 = vmatpush.msra.mxu0 0.0
    %2126 = vmatpush.msra.mxu0 0.0
    %2127 = vmatpush.msra.mxu0 0.0
    %2128 = vmatpush.msra.mxu0 0.0
    %2129 = vmatpush.msra.mxu0 0.0
    %2130 = vmatpush.msra.mxu0 0.0
    %2131 = vmatpush.msra.mxu0 0.0
    %2132 = vmatpush.msra.mxu0 0.0
    %2133 = vmatpush.msra.mxu0 0.0
    %2134 = vmatpush.msra.mxu0 0.0
    %2135 = vmatpush.msra.mxu0 0.0
    %2136 = vmatpush.msra.mxu0 0.0
    %2137 = vmatpush.msra.mxu0 %v1964
    %2138 = vmatmul.f32.gmra.mxu0 %v2120
    %v2139 = vpop.f32.mrf.mxu0
    %v2140 = vadd.f32 0.0, %v2139
    %2141 = vdwg.mxu0
    %v2143 = vsel %vm995, %v2116, 0
    %2145 = vmatpush.msra.mxu0 0.0
    %2146 = vmatpush.msra.mxu0 0.0
    %2147 = vmatpush.msra.mxu0 0.0
    %2148 = vmatpush.msra.mxu0 0.0
    %2149 = vmatpush.msra.mxu0 0.0
    %2150 = vmatpush.msra.mxu0 0.0
    %2151 = vmatpush.msra.mxu0 0.0
    %2152 = vmatpush.msra.mxu0 0.0
    %2153 = vmatpush.msra.mxu0 0.0
    %2154 = vmatpush.msra.mxu0 0.0
    %2155 = vmatpush.msra.mxu0 0.0
    %2156 = vmatpush.msra.mxu0 0.0
    %2157 = vmatpush.msra.mxu0 0.0
    %2158 = vmatpush.msra.mxu0 0.0
    %2159 = vmatpush.msra.mxu0 0.0
    %2160 = vmatpush.msra.mxu0 %v1966
    %2161 = vmatmul.f32.gmra.mxu0 %v2143
    %v2162 = vpop.f32.mrf.mxu0
    %v2163 = vadd.f32 0.0, %v2162
    %2164 = vdwg.mxu0
    %v2166 = vsel %vm995, %v2117, 0
    %2168 = vmatpush.msra.mxu0 0.0
    %2169 = vmatpush.msra.mxu0 0.0
    %2170 = vmatpush.msra.mxu0 0.0
    %2171 = vmatpush.msra.mxu0 0.0
    %2172 = vmatpush.msra.mxu0 0.0
    %2173 = vmatpush.msra.mxu0 0.0
    %2174 = vmatpush.msra.mxu0 0.0
    %2175 = vmatpush.msra.mxu0 0.0
    %2176 = vmatpush.msra.mxu0 0.0
    %2177 = vmatpush.msra.mxu0 0.0
    %2178 = vmatpush.msra.mxu0 0.0
    %2179 = vmatpush.msra.mxu0 0.0
    %2180 = vmatpush.msra.mxu0 0.0
    %2181 = vmatpush.msra.mxu0 0.0
    %2182 = vmatpush.msra.mxu0 0.0
    %2183 = vmatpush.msra.mxu0 %v1968
    %2184 = vmatmul.f32.gmra.mxu0 %v2166
    %v2185 = vpop.f32.mrf.mxu0
    %v2186 = vadd.f32 0.0, %v2185
    %2187 = vdwg.mxu0
    %v2189 = vsel %vm995, %v2118, 0
    %2191 = vmatpush.msra.mxu0 0.0
    %2192 = vmatpush.msra.mxu0 0.0
    %2193 = vmatpush.msra.mxu0 0.0
    %2194 = vmatpush.msra.mxu0 0.0
    %2195 = vmatpush.msra.mxu0 0.0
    %2196 = vmatpush.msra.mxu0 0.0
    %2197 = vmatpush.msra.mxu0 0.0
    %2198 = vmatpush.msra.mxu0 0.0
    %2199 = vmatpush.msra.mxu0 0.0
    %2200 = vmatpush.msra.mxu0 0.0
    %2201 = vmatpush.msra.mxu0 0.0
    %2202 = vmatpush.msra.mxu0 0.0
    %2203 = vmatpush.msra.mxu0 0.0
    %2204 = vmatpush.msra.mxu0 0.0
    %2205 = vmatpush.msra.mxu0 0.0
    %2206 = vmatpush.msra.mxu0 %v1970
    %2207 = vmatmul.f32.gmra.mxu0 %v2189
    %v2208 = vpop.f32.mrf.mxu0
    %v2209 = vadd.f32 0.0, %v2208
    %2210 = vdwg.mxu0
    %v2211 = vrot.slane %v2186, 4
    %v2212 = vsel %vm641, %v2211, %v2140
    %v2213 = vrot.slane %v2140, 4
    %v2214 = vsel %vm641, %v2186, %v2213
    %v2216 = vunpack.c.l.s4 1983009808
    %v2217 = vunpack.c.0.s8 %v2216
    %v2218 = vperm.slane %v2212, %v2217
    %v2220 = vunpack.c.l.s4 1983009808
    %v2221 = vunpack.c.0.s8 %v2220
    %v2222 = vperm.slane %v2214, %v2221
    %v2223 = vrot.slane %v2209, 4
    %v2224 = vsel %vm641, %v2223, %v2163
    %v2225 = vrot.slane %v2163, 4
    %v2226 = vsel %vm641, %v2209, %v2225
    %v2228 = vunpack.c.l.s4 1983009808
    %v2229 = vunpack.c.0.s8 %v2228
    %v2230 = vperm.slane %v2224, %v2229
    %v2232 = vunpack.c.l.s4 1983009808
    %v2233 = vunpack.c.0.s8 %v2232
    %v2234 = vperm.slane %v2226, %v2233
    %v2235 = vrot.slane %v2230, 4
    %v2236 = vsel %vm641, %v2235, %v2218
    %v2237 = vrot.slane %v2218, 4
    %v2238 = vsel %vm641, %v2230, %v2237
    %v2240 = vunpack.c.l.s4 1934713408
    %v2241 = vunpack.c.0.s8 %v2240
    %v2242 = vperm.slane %v2236, %v2241
    %v2244 = vunpack.c.l.s4 1934713408
    %v2245 = vunpack.c.0.s8 %v2244
    %v2246 = vperm.slane %v2238, %v2245
    %v2247 = vrot.slane %v2234, 4
    %v2248 = vsel %vm641, %v2247, %v2222
    %v2249 = vrot.slane %v2222, 4
    %v2250 = vsel %vm641, %v2234, %v2249
    %v2252 = vunpack.c.l.s4 1934713408
    %v2253 = vunpack.c.0.s8 %v2252
    %v2254 = vperm.slane %v2248, %v2253
    %v2256 = vunpack.c.l.s4 1934713408
    %v2257 = vunpack.c.0.s8 %v2256
    %v2258 = vperm.slane %v2250, %v2257
    %v2259 = vrot.slane %v2242, 4
    %v2260 = vsel %vm641, 0.0, %v2259
    %v2261 = vrot.slane %v2246, 4
    %v2262 = vsel %vm641, 0.0, %v2261
    %v2263 = vrot.slane %v2254, 4
    %v2264 = vsel %vm641, 0.0, %v2263
    %v2265 = vrot.slane %v2258, 4
    %v2266 = vsel %vm641, 0.0, %v2265
    %v2267 = vsel %vm641, %v2261, %v2242
    %v2269 = vunpack.c.l.s4 1983009808
    %v2270 = vunpack.c.0.s8 %v2269
    %v2271 = vperm.slane %v2267, %v2270
    %v2272 = vrot.slane %v2262, 4
    %v2273 = vsel %vm641, %v2272, %v2260
    %v2275 = vunpack.c.l.s4 1983009808
    %v2276 = vunpack.c.0.s8 %v2275
    %v2277 = vperm.slane %v2273, %v2276
    %v2278 = vsel %vm641, %v2265, %v2254
    %v2280 = vunpack.c.l.s4 1983009808
    %v2281 = vunpack.c.0.s8 %v2280
    %v2282 = vperm.slane %v2278, %v2281
    %v2283 = vrot.slane %v2266, 4
    %v2284 = vsel %vm641, %v2283, %v2264
    %v2286 = vunpack.c.l.s4 1983009808
    %v2287 = vunpack.c.0.s8 %v2286
    %v2288 = vperm.slane %v2284, %v2287
    %v2289 = vrot.slane %v2277, 4
    %v2290 = vsel %vm641, %v2289, %v2271
    %v2291 = vrot.slane %v2271, 4
    %v2292 = vsel %vm641, %v2277, %v2291
    %v2294 = vunpack.c.l.s4 1934713408
    %v2295 = vunpack.c.0.s8 %v2294
    %v2296 = vperm.slane %v2290, %v2295
    %v2298 = vunpack.c.l.s4 1934713408
    %v2299 = vunpack.c.0.s8 %v2298
    %v2300 = vperm.slane %v2292, %v2299
    %v2301 = vrot.slane %v2288, 4
    %v2302 = vsel %vm641, %v2301, %v2282
    %v2303 = vrot.slane %v2282, 4
    %v2304 = vsel %vm641, %v2288, %v2303
    %v2306 = vunpack.c.l.s4 1934713408
    %v2307 = vunpack.c.0.s8 %v2306
    %v2308 = vperm.slane %v2302, %v2307
    %v2310 = vunpack.c.l.s4 1934713408
    %v2311 = vunpack.c.0.s8 %v2310
    %v2312 = vperm.slane %v2304, %v2311
    %v2313 = vrot.slane %v2308, 4
    %v2314 = vsel %vm641, %v2313, %v2296
    %v2315 = vrot.slane %v2296, 4
    %v2316 = vsel %vm641, %v2308, %v2315
    %v2317 = vrot.slane %v2312, 4
    %v2318 = vsel %vm641, %v2317, %v2300
    %v2319 = vrot.slane %v2300, 4
    %v2320 = vsel %vm641, %v2312, %v2319
    %2322 = vrot.lane.b32.xlu0 %v2316, 8
    %v2323 = vpop.permute.xlu0 %2322
    %2326 = vrot.lane.b32.xlu0 %v2318, 16
    %v2327 = vpop.permute.xlu0 %2326
    %2330 = vrot.lane.b32.xlu0 %v2320, 24
    %v2331 = vpop.permute.xlu0 %2330
    %v2333 = vsel %vm995, %v2314, %v2323
    %v2334 = vsel %vm1359, %v2333, %v2327
    %v2335 = vsel %vm276, %v2334, %v2331
    %s2336 = scalar_lea.vmem %s11, 32
    %v2337 = vld [vmem:[%s2336] sm:$0xff]
    %v2338 = vld [vmem:[%s2336 + $0x8] sm:$0xff]
    %v2339 = vld [vmem:[%s2336 + $0x10] sm:$0xff]
    %v2340 = vld [vmem:[%s2336 + $0x18] sm:$0xff]
    %v2342 = vsel %vm433, %v2335, 0
    %2344 = vmatpush.msra.mxu0 0.0
    %2345 = vmatpush.msra.mxu0 0.0
    %2346 = vmatpush.msra.mxu0 0.0
    %2347 = vmatpush.msra.mxu0 0.0
    %2348 = vmatpush.msra.mxu0 0.0
    %2349 = vmatpush.msra.mxu0 0.0
    %2350 = vmatpush.msra.mxu0 0.0
    %2351 = vmatpush.msra.mxu0 0.0
    %2352 = vmatpush.msra.mxu0 0.0
    %2353 = vmatpush.msra.mxu0 0.0
    %2354 = vmatpush.msra.mxu0 0.0
    %2355 = vmatpush.msra.mxu0 0.0
    %2356 = vmatpush.msra.mxu0 %v2340
    %2357 = vmatpush.msra.mxu0 %v2339
    %2358 = vmatpush.msra.mxu0 %v2338
    %2359 = vmatpush.msra.mxu0 %v2337
    %2360 = vmatmul.f32.gmra.mxu0 %v2342
    %v2361 = vpop.f32.mrf.mxu0
    %v2362 = vadd.f32 0.0, %v2361
    %2363 = vdwg.mxu0
    %v2364 = vadd.f32 %v1539, %v2362
    %s2365 = scalar_lea.vmem [#allocation9], 1
    %v2366 = vld [vmem:[%s2365] sm:$0x1]
    %v2368 = vperm.slane %v2366, 0
    %v2370 = vadd.f32 %v2364, %v2368
    %s2371 = scalar_lea.vmem [#allocation10], 1
    %v2372 = vld [vmem:[%s2371] sm:$0x1]
    %s2373 = scalar_lea.vmem [#allocation12], 1
    %v2374 = vld [vmem:[%s2373] sm:$0x1]
    %v2375 = vsel %vm433, %v2370, 0.0
    %2376 = vadd.xlane.f32.xlu0 %v2375
    %v2377 = vpop.xlane.xlu0 %2376
    %v2378 = vmul.f32 %v2377, %v571
    %v2379 = vsub.f32 %v2370, %v2378
    %v2380 = vmul.f32 %v2379, %v2379
    %v2381 = vsel %vm433, %v2380, 0.0
    %2382 = vadd.xlane.f32.xlu0 %v2381
    %v2383 = vpop.xlane.xlu0 %2382
    %v2384 = vmul.f32 %v2383, %v571
    %v2385 = vadd.f32 %v2384, 1e-05
    %v2386 = vrsqrt.pop %v2385
    %v2387 = vmul.f32 %v2386, %v2385
    %v2388 = vmul.f32 %v2387, %v2386
    %v2389 = vmul.f32 0.5, %v2388
    %v2390 = vsub.f32 1.5, %v2389
    %v2391 = vmul.f32 %v2386, %v2390
    %vm2392 = vweird.f32 %v2385
    %vm2393 = vweird.f32 %v2386
    %vm2394 = vmor %vm2392, %vm2393
    %v2395 = vsel %vm2394, %v2386, %v2391
    %v2396 = vmul.f32 %v2379, %v2395
    %v2398 = vperm.slane %v2372, 0
    %v2400 = vmul.f32 %v2396, %v2398
    %v2402 = vperm.slane %v2374, 0
    %v2404 = vadd.f32 %v2400, %v2402
    %s2405 = scalar_lea.vmem [#allocation13], 32
    %v2406 = vld [vmem:[%s2405] sm:$0xff]
    %v2407 = vld [vmem:[%s2405 + $0x8] sm:$0xff]
    %v2408 = vld [vmem:[%s2405 + $0x10] sm:$0xff]
    %v2409 = vld [vmem:[%s2405 + $0x18] sm:$0xff]
    %s2410 = scalar_lea.vmem [#allocation15], 1
    %v2411 = vld [vmem:[%s2410] sm:$0x1]
    %v2413 = vperm.slane %v2411, 0
    %v2416 = vsel %vm433, %v2404, 0
    %2418 = vmatpush.msra.mxu0 0.0
    %2419 = vmatpush.msra.mxu0 0.0
    %2420 = vmatpush.msra.mxu0 0.0
    %2421 = vmatpush.msra.mxu0 0.0
    %2422 = vmatpush.msra.mxu0 0.0
    %2423 = vmatpush.msra.mxu0 0.0
    %2424 = vmatpush.msra.mxu0 0.0
    %2425 = vmatpush.msra.mxu0 0.0
    %2426 = vmatpush.msra.mxu0 0.0
    %2427 = vmatpush.msra.mxu0 0.0
    %2428 = vmatpush.msra.mxu0 0.0
    %2429 = vmatpush.msra.mxu0 0.0
    %2430 = vmatpush.msra.mxu0 %v2409
    %2431 = vmatpush.msra.mxu0 %v2408
    %2432 = vmatpush.msra.mxu0 %v2407
    %2433 = vmatpush.msra.mxu0 %v2406
    %2434 = vmatmul.f32.gmra.mxu0 %v2416
    %v2435 = vpop.f32.mrf.mxu0
    %v2436 = vadd.f32 %v2413, %v2435
    %2437 = vdwg.mxu0
    %v2438 = vmul.f32 %v2436, 0.5
    %v2439 = vmul.f32 %v2436, %v307
    %v2440 = vmul.f32 %v2439, %v2439
    %v2441 = vmin.f32 16.0, %v2440
    %v2442 = vmul.f32 %v2441, 2.1237322e-06
    %v2443 = vadd.f32 %v2442, 0.00028619796
    %v2444 = vmul.f32 %v2441, %v2443
    %v2445 = vadd.f32 %v2444, 0.0036580483
    %v2446 = vmul.f32 %v2441, %v2445
    %v2447 = vadd.f32 %v2446, 0.05243302
    %v2448 = vmul.f32 %v2441, %v2447
    %v2449 = vadd.f32 %v2448, 0.18741608
    %v2450 = vmul.f32 %v2441, %v2449
    %v2451 = vadd.f32 %v2450, 1.1283791
    %v2452 = vmul.f32 %v2439, %v2451
    %v2453 = vmul.f32 %v2441, 3.8918573e-05
    %v2454 = vadd.f32 %v2453, 0.001143296
    %v2455 = vmul.f32 %v2441, %v2454
    %v2456 = vadd.f32 %v2455, 0.014752088
    %v2457 = vmul.f32 %v2441, %v2456
    %v2458 = vadd.f32 %v2457, 0.112945676
    %v2459 = vmul.f32 %v2441, %v2458
    %v2460 = vadd.f32 %v2459, 0.4994258
    %v2461 = vmul.f32 %v2441, %v2460
    %v2462 = vadd.f32 %v2461, 1.0
    %v2463 = vrcp.pop %v2462
    %v2464 = vmul.f32 %v2462, %v2463
    %v2465 = vsub.f32 1.0, %v2464
    %v2466 = vmul.f32 %v2463, %v2465
    %v2467 = vadd.f32 %v2463, %v2466
    %vm2468 = vweird.f32 %v2462
    %vm2469 = vweird.f32 %v2463
    %vm2470 = vmor %vm2468, %vm2469
    %v2471 = vsel %vm2470, %v2463, %v2467
    %v2472 = vand.u32 2147483647, %v2462
    %vm2473 = vcmp.eq.f32.partialorder %v2472, 8.507059e+37
    %v2474 = vand.u32 %v2462, 2147483648
    %v2475 = vor.u32 1.1754944e-38, %v2474
    %v2476 = vsel %vm2473, %v2475, %v2471
    %v2477 = vmul.f32 %v2452, %v2476
    %v2478 = vmin.f32 %v2477, 1.0
    %v2479 = vmax.f32 %v2478, -1.0
    %v2480 = vadd.f32 %v2479, 1.0
    %v2481 = vmul.f32 %v2438, %v2480
    %s2482 = scalar_lea.vmem %s17, 64
    %v2483 = vld [vmem:[%s2482] sm:$0xff]
    %v2484 = vld [vmem:[%s2482 + $0x8] sm:$0xff]
    %v2485 = vld [vmem:[%s2482 + $0x10] sm:$0xff]
    %v2486 = vld [vmem:[%s2482 + $0x18] sm:$0xff]
    %v2487 = vld [vmem:[%s2482 + $0x20] sm:$0xff]
    %v2488 = vld [vmem:[%s2482 + $0x28] sm:$0xff]
    %v2489 = vld [vmem:[%s2482 + $0x30] sm:$0xff]
    %v2490 = vld [vmem:[%s2482 + $0x38] sm:$0xff]
    %v2492 = vsel %vm1510, %v2481, 0
    %2494 = vmatpush.msra.mxu0 0.0
    %2495 = vmatpush.msra.mxu0 0.0
    %2496 = vmatpush.msra.mxu0 0.0
    %2497 = vmatpush.msra.mxu0 0.0
    %2498 = vmatpush.msra.mxu0 0.0
    %2499 = vmatpush.msra.mxu0 0.0
    %2500 = vmatpush.msra.mxu0 0.0
    %2501 = vmatpush.msra.mxu0 0.0
    %2502 = vmatpush.msra.mxu0 %v2490
    %2503 = vmatpush.msra.mxu0 %v2489
    %2504 = vmatpush.msra.mxu0 %v2488
    %2505 = vmatpush.msra.mxu0 %v2487
    %2506 = vmatpush.msra.mxu0 %v2486
    %2507 = vmatpush.msra.mxu0 %v2485
    %2508 = vmatpush.msra.mxu0 %v2484
    %2509 = vmatpush.msra.mxu0 %v2483
    %2510 = vmatmul.f32.gmra.mxu0 %v2492
    %v2511 = vpop.f32.mrf.mxu0
    %v2512 = vadd.f32 0.0, %v2511
    %2513 = vdwg.mxu0
    %v2514 = vadd.f32 %v2370, %v2512
    %s2515 = scalar_lea.vmem [#allocation16], 1
    %v2516 = vld [vmem:[%s2515] sm:$0x1]
    %v2518 = vperm.slane %v2516, 0
    %v2520 = vadd.f32 %v2514, %v2518
    %v2521 = vld [vmem:[#allocation18] sm:$0x1]
    %v2522 = vld [vmem:[#allocation19] sm:$0x1]
    %v2523 = vsel %vm433, %v2520, 0.0
    %2524 = vadd.xlane.f32.xlu0 %v2523
    %v2525 = vpop.xlane.xlu0 %2524
    %v2526 = vmul.f32 %v2525, %v571
    %v2527 = vsub.f32 %v2520, %v2526
    %v2528 = vmul.f32 %v2527, %v2527
    %v2529 = vsel %vm433, %v2528, 0.0
    %2530 = vadd.xlane.f32.xlu0 %v2529
    %v2531 = vpop.xlane.xlu0 %2530
    %v2532 = vmul.f32 %v2531, %v571
    %v2533 = vadd.f32 %v2532, 1e-05
    %v2534 = vrsqrt.pop %v2533
    %v2535 = vmul.f32 %v2534, %v2533
    %v2536 = vmul.f32 %v2535, %v2534
    %v2537 = vmul.f32 0.5, %v2536
    %v2538 = vsub.f32 1.5, %v2537
    %v2539 = vmul.f32 %v2534, %v2538
    %vm2540 = vweird.f32 %v2533
    %vm2541 = vweird.f32 %v2534
    %vm2542 = vmor %vm2540, %vm2541
    %v2543 = vsel %vm2542, %v2534, %v2539
    %v2544 = vmul.f32 %v2527, %v2543
    %v2546 = vperm.slane %v2521, 0
    %v2548 = vmul.f32 %v2544, %v2546
    %v2550 = vperm.slane %v2522, 0
    %v2552 = vadd.f32 %v2548, %v2550
    %v2553 = vld [vmem:[%s21] sm:$0xff]
    %v2554 = vld [vmem:[%s21 + $0x8] sm:$0xff]
    %v2555 = vld [vmem:[%s21 + $0x10] sm:$0xff]
    %v2556 = vld [vmem:[%s21 + $0x18] sm:$0xff]
    %v2557 = vld [vmem:[#allocation21] sm:$0x1]
    %v2559 = vperm.slane %v2557, 0
    %v2562 = vsel %vm433, %v2552, 0
    %2564 = vmatpush.msra.mxu0 0.0
    %2565 = vmatpush.msra.mxu0 0.0
    %2566 = vmatpush.msra.mxu0 0.0
    %2567 = vmatpush.msra.mxu0 0.0
    %2568 = vmatpush.msra.mxu0 0.0
    %2569 = vmatpush.msra.mxu0 0.0
    %2570 = vmatpush.msra.mxu0 0.0
    %2571 = vmatpush.msra.mxu0 0.0
    %2572 = vmatpush.msra.mxu0 0.0
    %2573 = vmatpush.msra.mxu0 0.0
    %2574 = vmatpush.msra.mxu0 0.0
    %2575 = vmatpush.msra.mxu0 0.0
    %2576 = vmatpush.msra.mxu0 %v2556
    %2577 = vmatpush.msra.mxu0 %v2555
    %2578 = vmatpush.msra.mxu0 %v2554
    %2579 = vmatpush.msra.mxu0 %v2553
    %2580 = vmatmul.f32.gmra.mxu0 %v2562
    %v2581 = vpop.f32.mrf.mxu0
    %v2582 = vadd.f32 %v2559, %v2581
    %2583 = vdwg.mxu0
    %2584 = vst [vmem:[%s23] sm:$0xff] %v2582
    // Predicated region
    $region146: #{qc_whisper_encoder.1} parent=1 // pred_check
      _
    $region147: #{qc_whisper_encoder.1} parent=1 // pred_check_branch
      %2586 = sbr.rel (0) target = $region149
    $region148: #{qc_whisper_encoder.1} parent=1 // pred_region
      _
    $region149: #{qc_whisper_encoder.1} parent=1 // pred_fallthru
      _
    // Predicated region
    $region150: #{qc_whisper_encoder.1} parent=1 // pred_check
      _
    $region151: #{qc_whisper_encoder.1} parent=1 // pred_check_branch
      %2588 = sbr.rel (0) target = $region153
    $region152: #{qc_whisper_encoder.1} parent=1 // pred_region
      _
    $region153: #{qc_whisper_encoder.1} parent=1 // pred_fallthru
      _
    %2589 = vsyncpa [#allocation3], 1
    %2590 = vsyncpa [#allocation5], 1
    %2591 = vsyncpa [#allocation8], 1
    %2592 = vsyncpa [#allocation11], 1
    %2593 = vsyncpa [#allocation14], 1
    %2594 = vsyncpa [#allocation17], 1
    %2595 = vsyncpa [#allocation20], 1

</llo_original>
